<compile_context>
chip_gen: v7x
topology: tpu7x:2x2x1
jax: 0.10.0
libtpu: 0.0.40
codegen_flags: <defaults>
</compile_context>

<pallas_src>
import functools

import jax
import jax.numpy as jnp
from jax import lax
from jax.experimental import pallas as pl
from jax.experimental.pallas import tpu as pltpu

LN_EPS = 1e-5  # nn.TransformerEncoderLayer default layer_norm_eps


def _layernorm(x, gamma, beta):
    mean = jnp.mean(x, axis=-1, keepdims=True)
    var = jnp.mean((x - mean) ** 2, axis=-1, keepdims=True)
    return (x - mean) * lax.rsqrt(var + LN_EPS) * gamma + beta


def _layer_weights_kernel(
    x_ref,     # (TB, L, H) f32   TB batch elements, no cls slot (handled separately)
    pos_ref,   # (L, H)     f32   layer_pos_emb (grid-invariant)
    wk_ref,    # (H, H)     md    key projection, input-major
    wv_ref,    # (H, H)     md    value projection, input-major
    wo_ref,    # (H, H)     md    attention output projection, input-major
    w1_ref,    # (H, FF)    md    FFN in
    b1_ref,    # (1, FF)    f32
    w2_ref,    # (FF, H)    md    FFN out
    lw_ref,    # (H, LPAD)  md    layer_weights head (lane-padded to 128)
    lwb_ref,   # (1, LPAD)  f32   head bias (-1e30 in padded columns)
    vecs_ref,  # (12, H)    f32   packed grid-invariant rows, see pack_params
    out_ref,   # (TB, LPAD) f32
    *, ff_chunk, n_ff, matmul_dtype,
):
    tb, l, h = x_ref.shape
    md = matmul_dtype

    q_scaled = vecs_ref[0:1, :]     # (cls @ Wq^T + bq) / sqrt(H)   (nhead=1 -> head_dim=H)
    v_cls = vecs_ref[1:2, :]        # cls @ Wv^T + bv
    cls_row = vecs_ref[2:3, :]      # cls parameter (residual path)
    s_cls = vecs_ref[3:4, 0:1]      # (1,1) scalar: q_scaled . k_cls (cls->cls score)
    bk = vecs_ref[4:5, :]
    bv = vecs_ref[5:6, :]
    bo = vecs_ref[6:7, :]
    g1 = vecs_ref[7:8, :]
    be1 = vecs_ref[8:9, :]
    b2 = vecs_ref[9:10, :]
    g2 = vecs_ref[10:11, :]
    be2 = vecs_ref[11:12, :]

    # src = x + layer_pos_emb  (the cls row of the sequence is grid-invariant -> precomputed)
    src = x_ref[...] + pos_ref[...]                         # (TB, L, H) f32
    src2 = src.reshape(tb * l, h)

    # ---- key / value projections (separate matmuls: no mid-lane-tile split at H=32) ----
    k = jnp.dot(src2.astype(md), wk_ref[...], preferred_element_type=jnp.float32) + bk
    v = jnp.dot(src2.astype(md), wv_ref[...], preferred_element_type=jnp.float32) + bv
    k3 = k.reshape(tb, l, h)
    v3 = v.reshape(tb, l, h)

    # ---- attention for the cls query only (the only row feeding the head) ----
    # scores: VPU multiply + lane reduce against the shared scaled query.
    s = jnp.sum(k3 * q_scaled[None, :, :], axis=-1, keepdims=True)      # (TB, L, 1)
    m = jnp.maximum(jnp.max(s, axis=1, keepdims=True), s_cls[None, :, :])  # (TB, 1, 1)
    e = jnp.exp(s - m)                                                   # (TB, L, 1)
    e_cls = jnp.exp(s_cls[None, :, :] - m)                               # (TB, 1, 1)
    denom = jnp.sum(e, axis=1, keepdims=True) + e_cls                    # (TB, 1, 1)
    attn = jnp.sum(e * v3, axis=1, keepdims=True) + e_cls * v_cls[None, :, :]  # (TB, 1, H)
    attn = (attn / denom).reshape(tb, h)                                 # exact softmax divide

    attn = jnp.dot(attn.astype(md), wo_ref[...],
                   preferred_element_type=jnp.float32) + bo              # (TB, H)

    # ---- residual + layernorm 1 (post-norm, norm_first=False) ----
    x1 = _layernorm(cls_row + attn, g1, be1)                             # (TB, H) f32

    # ---- feed-forward (ReLU), chunked over the FF dimension ----
    def ff_body(c, acc):
        off = pl.multiple_of(c * ff_chunk, ff_chunk)
        hc = jnp.dot(x1.astype(md), w1_ref[:, pl.ds(off, ff_chunk)],
                     preferred_element_type=jnp.float32) + b1_ref[:, pl.ds(off, ff_chunk)]
        hc = jnp.maximum(hc, 0.0)
        return acc + jnp.dot(hc.astype(md), w2_ref[pl.ds(off, ff_chunk), :],
                             preferred_element_type=jnp.float32)

    ff = lax.fori_loop(0, n_ff, ff_body, jnp.zeros((tb, h), jnp.float32), unroll=True)

    # ---- residual + layernorm 2 ----
    x2 = _layernorm(x1 + ff + b2, g2, be2)                               # (TB, H)

    # ---- linear(num_layers) -> softmax; padded bias = -1e30 so padded lanes contribute 0 ----
    logits = jnp.dot(x2.astype(md), lw_ref[...],
                     preferred_element_type=jnp.float32) + lwb_ref[...]  # (TB, LPAD)
    logits = logits - jnp.max(logits, axis=-1, keepdims=True)
    ez = jnp.exp(logits)
    out_ref[...] = (ez / jnp.sum(ez, axis=-1, keepdims=True)).astype(out_ref.dtype)


def init_params(key, hidden_size, num_layers, dim_feedforward=2048):
    """Deterministic synthetic parameters in PyTorch (out, in) layout."""
    H, L, FF = hidden_size, num_layers, dim_feedforward
    ks = jax.random.split(key, 12)

    def rnd(k, shape, scale=0.05):
        return (scale * jax.random.normal(k, shape)).astype(jnp.float32)

    return dict(
        pos=jax.random.normal(ks[0], (L, H)).astype(jnp.float32),   # layer_pos_emb ~ randn
        cls=jnp.zeros((1, H), jnp.float32),                         # cls token (zeros init)
        wq=rnd(ks[1], (H, H)), bq=rnd(ks[2], (H,)),
        wk=rnd(ks[3], (H, H)), bk=rnd(ks[4], (H,)),
        wv=rnd(ks[5], (H, H)), bv=rnd(ks[6], (H,)),
        wo=rnd(ks[7], (H, H)), bo=jnp.zeros((H,), jnp.float32),
        ln1_g=jnp.ones((H,), jnp.float32), ln1_b=jnp.zeros((H,), jnp.float32),
        w1=rnd(ks[8], (FF, H)), b1=jnp.zeros((FF,), jnp.float32),
        w2=rnd(ks[9], (H, FF)), b2=jnp.zeros((H,), jnp.float32),
        ln2_g=jnp.ones((H,), jnp.float32), ln2_b=jnp.zeros((H,), jnp.float32),
        lw=rnd(ks[10], (L, H)), lwb=rnd(ks[11], (L,)),
    )


def pack_params(p, matmul_dtype=jnp.bfloat16, lane_pad=128):
    """One-time packing: pre-transpose weights, hoist the grid-invariant cls query/key/value,
    lane-pad the output head, pack bias/LN vectors, cast matmul weights.

    matmul_dtype=bf16 is the default (recommended on v5e/v6e/v7x); biases / LN params / pos
    table stay f32 so all elementwise math runs in f32 (v5e has no bf16 VPU/EUP).
    """
    H = p["wq"].shape[1]
    L = p["lw"].shape[0]
    FF = p["w1"].shape[0]
    md = matmul_dtype
    LPAD = ((L + lane_pad - 1) // lane_pad) * lane_pad
    LPAD = max(LPAD, lane_pad)
    scale = 1.0 / (H ** 0.5)   # nhead=1 -> head_dim == hidden_size

    cls = p["cls"].reshape(1, H).astype(jnp.float32)
    q_cls = cls @ p["wq"].T + p["bq"]            # grid-invariant: cls is a shared parameter
    k_cls = cls @ p["wk"].T + p["bk"]
    v_cls = cls @ p["wv"].T + p["bv"]
    q_scaled = (q_cls * scale).astype(jnp.float32)
    s_cls = jnp.sum(q_scaled * k_cls)            # scalar cls->cls attention score

    lw_pad = jnp.zeros((H, LPAD), jnp.float32).at[:, :L].set(p["lw"].T)
    lwb_pad = jnp.full((1, LPAD), -1e30, jnp.float32).at[0, :L].set(p["lwb"])

    vecs = jnp.stack([
        q_scaled[0], v_cls[0], cls[0], jnp.full((H,), s_cls, jnp.float32),
        p["bk"], p["bv"], p["bo"],
        p["ln1_g"], p["ln1_b"], p["b2"], p["ln2_g"], p["ln2_b"],
    ], axis=0).astype(jnp.float32)                                        # (12, H)

    return dict(
        pos=p["pos"].astype(jnp.float32),                                 # (L, H)
        wk=p["wk"].T.astype(md), wv=p["wv"].T.astype(md), wo=p["wo"].T.astype(md),
        w1=p["w1"].T.astype(md), b1=p["b1"].reshape(1, FF).astype(jnp.float32),
        w2=p["w2"].T.astype(md),
        lw=lw_pad.astype(md), lwb=lwb_pad,                                 # (H,LPAD),(1,LPAD)
        vecs=vecs,
    )


@functools.lru_cache(maxsize=1)
def _single_buffer_supported():
    """Deterministic feature probe: does this JAX build accept single-buffered grid-invariant
    inputs via pipeline_mode=pl.Buffered(1)?  Probes a tiny separate kernel once; failures here
    never mask errors in the real kernel (which is built without try/except)."""
    if not hasattr(pl, "Buffered"):
        return False

    def _probe(w_ref, o_ref):
        o_ref[...] = w_ref[...] * 2.0

    try:
        fn = pl.pallas_call(
            _probe,
            out_shape=jax.ShapeDtypeStruct((16, 128), jnp.float32),
            grid=(2,),
            in_specs=[pl.BlockSpec((8, 128), lambda i: (0, 0),
                                   pipeline_mode=pl.Buffered(1))],
            out_specs=pl.BlockSpec((8, 128), lambda i: (i, 0)),
        )
        jax.jit(fn).lower(jnp.zeros((8, 128), jnp.float32))
        return True
    except Exception:
        return False


def _choose_tb(batch):
    """Batch tile: up to 64 rows, multiple of 8, and >=2 grid steps when the batch allows
    (keeps both v7x TensorCores busy; on v5e/v6e larger-but-few steps is still fine)."""
    b8 = ((batch + 7) // 8) * 8
    if b8 <= 8:
        return 8
    return max(8, min(64, ((b8 // 2 + 7) // 8) * 8))


def _choose_ff_chunk(ff, tb):
    """Keep the (TB, ff_chunk) f32 FFN activation well inside the vreg file."""
    target = 512 if tb <= 32 else 256
    if ff <= target:
        return ff
    for c in (target, 512, 256, 128):
        if c <= ff and ff % c == 0:
            return c
    return ff


def _forward(x, kp, *, tb, single_buffer_weights):
    B, L, H = x.shape
    FF = kp["w1"].shape[1]
    LPAD = kp["lw"].shape[1]
    md = kp["wk"].dtype
    TB = tb
    assert TB % 8 == 0, "tb must be a multiple of 8 (sublane-aligned blocks)"
    B_pad = ((B + TB - 1) // TB) * TB
    n_steps = B_pad // TB

    xp = x.astype(jnp.float32)
    if B_pad != B:
        xp = jnp.pad(xp, ((0, B_pad - B), (0, 0), (0, 0)))   # batch-dim pad only

    ff_chunk = _choose_ff_chunk(FF, TB)
    n_ff = FF // ff_chunk

    kernel = functools.partial(_layer_weights_kernel,
                               ff_chunk=ff_chunk, n_ff=n_ff, matmul_dtype=md)

    def wspec(shape):
        # Grid-invariant 2-D operand; single-buffer when the build supports it.
        if single_buffer_weights:
            return pl.BlockSpec(shape, lambda b: (0, 0), pipeline_mode=pl.Buffered(1))
        return pl.BlockSpec(shape, lambda b: (0, 0))

    inputs = (xp, kp["pos"], kp["wk"], kp["wv"], kp["wo"],
              kp["w1"], kp["b1"], kp["w2"], kp["lw"], kp["lwb"], kp["vecs"])

    in_specs = [
        pl.BlockSpec((TB, L, H), lambda b: (b, 0, 0)),    # TB batch elements per grid step
        wspec((L, H)),
        wspec((H, H)), wspec((H, H)), wspec((H, H)),
        wspec((H, FF)), wspec((1, FF)), wspec((FF, H)),
        wspec((H, LPAD)), wspec((1, LPAD)),
        wspec((12, H)),
    ]

    # VMEM budget: resident weights (1x if single-buffered), double-buffered x/out blocks,
    # plus activation slack.  Never over-ask (v7x scoped default is 32 MiB).
    weight_bytes = sum(int(a.size) * a.dtype.itemsize for a in inputs[1:])
    wmult = 1 if single_buffer_weights else 2
    in_block = TB * L * H * 4
    out_block = TB * LPAD * 4
    vmem_limit = wmult * weight_bytes + 2 * (in_block + out_block) + (6 << 20)
    vmem_limit = int(min(max(vmem_limit, 8 << 20), 32 << 20))

    out = pl.pallas_call(
        kernel,
        out_shape=jax.ShapeDtypeStruct((B_pad, LPAD), jnp.float32),
        grid=(n_steps,),
        in_specs=in_specs,
        out_specs=pl.BlockSpec((TB, LPAD), lambda b: (b, 0)),   # lane-dense (TB,128) stores
        compiler_params=pltpu.CompilerParams(
            dimension_semantics=("parallel",),
            vmem_limit_bytes=vmem_limit),
    )(*inputs)
    return out[:B, :L]


def layer_weights_forward(x, packed_params, *, tb=None):
    """x: (B, num_layers, hidden); returns (B, num_layers) softmax layer weights."""
    if tb is None:
        tb = _choose_tb(x.shape[0])
    return _forward(x, packed_params, tb=tb,
                    single_buffer_weights=_single_buffer_supported())


def reference_forward(x, p):
    """Pure-JAX reference mirroring PyTorch eval-mode semantics (PyTorch weight layout)."""
    B, L, H = x.shape
    xx = x + p["pos"][None]
    cls = jnp.broadcast_to(p["cls"][None], (B, 1, H))
    src = jnp.concatenate([cls, xx], axis=1)
    q = src @ p["wq"].T + p["bq"]
    k = src @ p["wk"].T + p["bk"]
    v = src @ p["wv"].T + p["bv"]
    scores = jnp.einsum("bqh,bkh->bqk", q, k) / (H ** 0.5)
    a = jax.nn.softmax(scores, axis=-1)
    attn = jnp.einsum("bqk,bkh->bqh", a, v) @ p["wo"].T + p["bo"]

    def ln(z, g, b):
        m = z.mean(-1, keepdims=True)
        var = ((z - m) ** 2).mean(-1, keepdims=True)
        return (z - m) / jnp.sqrt(var + LN_EPS) * g + b

    x1 = ln(src + attn, p["ln1_g"], p["ln1_b"])
    ff = jax.nn.relu(x1 @ p["w1"].T + p["b1"]) @ p["w2"].T + p["b2"]
    x2 = ln(x1 + ff, p["ln2_g"], p["ln2_b"])
    logits = x2[:, 0, :] @ p["lw"].T + p["lwb"]
    return jax.nn.softmax(logits, axis=-1)


if __name__ == "__main__":
    B, L, H = 10, 8, 32   # batch=10, num_layers=8, hidden=32
    key = jax.random.PRNGKey(0)
    kx, kp = jax.random.split(key)
    x = jax.random.normal(kx, (B, L, H), jnp.float32)
    params = init_params(kp, H, L)
    ref = reference_forward(x, params)

    # f32 matmul path (tight tolerance; softmax divisions are exact in-kernel).
    packed_f32 = pack_params(params, jnp.float32)
    out = jax.block_until_ready(layer_weights_forward(x, packed_f32))   # heuristic TB -> 2 steps
    assert out.shape == (B, L)
    assert bool(jnp.allclose(out, ref, rtol=3e-3, atol=3e-3)), (out, ref)

    # Default bf16 matmul operands (v5e/v6e/v7x-friendly); f32 accumulation & elementwise math.
    packed_bf16 = pack_params(params)
    out_bf16 = jax.block_until_ready(layer_weights_forward(x, packed_bf16, tb=16))
    assert out_bf16.shape == (B, L)
    assert bool(jnp.allclose(out_bf16, ref, rtol=5e-2, atol=5e-2)), (out_bf16, ref)

    print("KERNEL_OK")
</pallas_src>

<mosaic_0001>
module attributes {stable_mosaic.version = 11 : i64} {
  func.func @_layer_weights_kernel(%arg0: i32, %arg1: memref<8x8x32xf32, #tpu.memory_space<vmem>>, %arg2: memref<8x32xf32, #tpu.memory_space<vmem>>, %arg3: memref<32x32xf32, #tpu.memory_space<vmem>>, %arg4: memref<32x32xf32, #tpu.memory_space<vmem>>, %arg5: memref<32x32xf32, #tpu.memory_space<vmem>>, %arg6: memref<32x2048xf32, #tpu.memory_space<vmem>>, %arg7: memref<1x2048xf32, #tpu.memory_space<vmem>>, %arg8: memref<2048x32xf32, #tpu.memory_space<vmem>>, %arg9: memref<32x128xf32, #tpu.memory_space<vmem>>, %arg10: memref<1x128xf32, #tpu.memory_space<vmem>>, %arg11: memref<12x32xf32, #tpu.memory_space<vmem>>, %arg12: memref<8x128xf32, #tpu.memory_space<vmem>>) attributes {dimension_semantics = [#tpu.dimension_semantics<parallel>], iteration_bounds = array<i64: 2>, scalar_prefetch = 0 : i64, scratch_operands = 0 : i64, tpu.core_type = #tpu.core_type<tc>, window_params = [{transform_indices = @transform_0, window_bounds = array<i64: 8, 8, 32>}, {pipeline_mode = #tpu.pipeline_mode<synchronous>, transform_indices = @transform_1, window_bounds = array<i64: 8, 32>}, {pipeline_mode = #tpu.pipeline_mode<synchronous>, transform_indices = @transform_2, window_bounds = array<i64: 32, 32>}, {pipeline_mode = #tpu.pipeline_mode<synchronous>, transform_indices = @transform_3, window_bounds = array<i64: 32, 32>}, {pipeline_mode = #tpu.pipeline_mode<synchronous>, transform_indices = @transform_4, window_bounds = array<i64: 32, 32>}, {pipeline_mode = #tpu.pipeline_mode<synchronous>, transform_indices = @transform_5, window_bounds = array<i64: 32, 2048>}, {pipeline_mode = #tpu.pipeline_mode<synchronous>, transform_indices = @transform_6, window_bounds = array<i64: 1, 2048>}, {pipeline_mode = #tpu.pipeline_mode<synchronous>, transform_indices = @transform_7, window_bounds = array<i64: 2048, 32>}, {pipeline_mode = #tpu.pipeline_mode<synchronous>, transform_indices = @transform_8, window_bounds = array<i64: 32, 128>}, {pipeline_mode = #tpu.pipeline_mode<synchronous>, transform_indices = @transform_9, window_bounds = array<i64: 1, 128>}, {pipeline_mode = #tpu.pipeline_mode<synchronous>, transform_indices = @transform_10, window_bounds = array<i64: 12, 32>}, {transform_indices = @transform_11, window_bounds = array<i64: 8, 128>}]} {
    %c0 = arith.constant 0 : index
    %c0_0 = arith.constant 0 : index
    %0 = vector.load %arg11[%c0, %c0_0] : memref<12x32xf32, #tpu.memory_space<vmem>>, vector<1x32xf32>
    %c1 = arith.constant 1 : index
    %c0_1 = arith.constant 0 : index
    %1 = vector.load %arg11[%c1, %c0_1] : memref<12x32xf32, #tpu.memory_space<vmem>>, vector<1x32xf32>
    %c2 = arith.constant 2 : index
    %c0_2 = arith.constant 0 : index
    %2 = vector.load %arg11[%c2, %c0_2] : memref<12x32xf32, #tpu.memory_space<vmem>>, vector<1x32xf32>
    %c3 = arith.constant 3 : index
    %c0_3 = arith.constant 0 : index
    %3 = vector.load %arg11[%c3, %c0_3] : memref<12x32xf32, #tpu.memory_space<vmem>>, vector<1x1xf32>
    %c4 = arith.constant 4 : index
    %c0_4 = arith.constant 0 : index
    %4 = vector.load %arg11[%c4, %c0_4] : memref<12x32xf32, #tpu.memory_space<vmem>>, vector<1x32xf32>
    %c5 = arith.constant 5 : index
    %c0_5 = arith.constant 0 : index
    %5 = vector.load %arg11[%c5, %c0_5] : memref<12x32xf32, #tpu.memory_space<vmem>>, vector<1x32xf32>
    %c6 = arith.constant 6 : index
    %c0_6 = arith.constant 0 : index
    %6 = vector.load %arg11[%c6, %c0_6] : memref<12x32xf32, #tpu.memory_space<vmem>>, vector<1x32xf32>
    %c7 = arith.constant 7 : index
    %c0_7 = arith.constant 0 : index
    %7 = vector.load %arg11[%c7, %c0_7] : memref<12x32xf32, #tpu.memory_space<vmem>>, vector<1x32xf32>
    %c8 = arith.constant 8 : index
    %c0_8 = arith.constant 0 : index
    %8 = vector.load %arg11[%c8, %c0_8] : memref<12x32xf32, #tpu.memory_space<vmem>>, vector<1x32xf32>
    %c9 = arith.constant 9 : index
    %c0_9 = arith.constant 0 : index
    %9 = vector.load %arg11[%c9, %c0_9] : memref<12x32xf32, #tpu.memory_space<vmem>>, vector<1x32xf32>
    %c10 = arith.constant 10 : index
    %c0_10 = arith.constant 0 : index
    %10 = vector.load %arg11[%c10, %c0_10] : memref<12x32xf32, #tpu.memory_space<vmem>>, vector<1x32xf32>
    %c11 = arith.constant 11 : index
    %c0_11 = arith.constant 0 : index
    %11 = vector.load %arg11[%c11, %c0_11] : memref<12x32xf32, #tpu.memory_space<vmem>>, vector<1x32xf32>
    %c0_12 = arith.constant 0 : index
    %c0_13 = arith.constant 0 : index
    %c0_14 = arith.constant 0 : index
    %12 = vector.load %arg1[%c0_12, %c0_13, %c0_14] : memref<8x8x32xf32, #tpu.memory_space<vmem>>, vector<8x8x32xf32>
    %c0_15 = arith.constant 0 : index
    %c0_16 = arith.constant 0 : index
    %13 = vector.load %arg2[%c0_15, %c0_16] : memref<8x32xf32, #tpu.memory_space<vmem>>, vector<8x32xf32>
    %14 = vector.shape_cast %13 : vector<8x32xf32> to vector<1x8x32xf32>
    %15 = vector.broadcast %14 : vector<1x8x32xf32> to vector<8x8x32xf32>
    %16 = arith.addf %12, %15 : vector<8x8x32xf32>
    %17 = vector.shape_cast %16 : vector<8x8x32xf32> to vector<64x32xf32>
    %c0_17 = arith.constant 0 : index
    %c0_18 = arith.constant 0 : index
    %18 = vector.load %arg3[%c0_17, %c0_18] : memref<32x32xf32, #tpu.memory_space<vmem>>, vector<32x32xf32>
    %cst = arith.constant dense<0.000000e+00> : vector<64x32xf32>
    %19 = tpu.matmul %17, %18, %cst {dimension_numbers = #tpu.dot_dimension_numbers<[1], [0], [0], [1], [0, 0, 1, 1], [], []>} : vector<64x32xf32>, vector<32x32xf32>, vector<64x32xf32> -> vector<64x32xf32>
    %20 = vector.broadcast %4 : vector<1x32xf32> to vector<64x32xf32>
    %21 = arith.addf %19, %20 : vector<64x32xf32>
    %c0_19 = arith.constant 0 : index
    %c0_20 = arith.constant 0 : index
    %22 = vector.load %arg4[%c0_19, %c0_20] : memref<32x32xf32, #tpu.memory_space<vmem>>, vector<32x32xf32>
    %cst_21 = arith.constant dense<0.000000e+00> : vector<64x32xf32>
    %23 = tpu.matmul %17, %22, %cst_21 {dimension_numbers = #tpu.dot_dimension_numbers<[1], [0], [0], [1], [0, 0, 1, 1], [], []>} : vector<64x32xf32>, vector<32x32xf32>, vector<64x32xf32> -> vector<64x32xf32>
    %24 = vector.broadcast %5 : vector<1x32xf32> to vector<64x32xf32>
    %25 = arith.addf %23, %24 : vector<64x32xf32>
    %26 = vector.shape_cast %21 : vector<64x32xf32> to vector<8x8x32xf32>
    %27 = vector.shape_cast %25 : vector<64x32xf32> to vector<8x8x32xf32>
    %28 = vector.shape_cast %0 : vector<1x32xf32> to vector<1x1x32xf32>
    %29 = vector.broadcast %28 : vector<1x1x32xf32> to vector<8x8x32xf32>
    %30 = arith.mulf %26, %29 : vector<8x8x32xf32>
    %cst_22 = arith.constant dense<0.000000e+00> : vector<8x8xf32>
    %31 = vector.multi_reduction <add>, %30, %cst_22 [2] : vector<8x8x32xf32> to vector<8x8xf32>
    %32 = vector.shape_cast %31 : vector<8x8xf32> to vector<8x8x1xf32>
    %cst_23 = arith.constant dense<0xFF800000> : vector<8x1xf32>
    %33 = vector.multi_reduction <maximumf>, %32, %cst_23 [1] : vector<8x8x1xf32> to vector<8x1xf32>
    %34 = vector.shape_cast %33 : vector<8x1xf32> to vector<8x1x1xf32>
    %35 = vector.shape_cast %3 : vector<1x1xf32> to vector<1x1x1xf32>
    %36 = vector.broadcast %35 : vector<1x1x1xf32> to vector<8x1x1xf32>
    %37 = arith.maximumf %34, %36 : vector<8x1x1xf32>
    %38 = vector.broadcast %37 : vector<8x1x1xf32> to vector<8x8x1xf32>
    %39 = arith.subf %32, %38 : vector<8x8x1xf32>
    %40 = math.exp %39 : vector<8x8x1xf32>
    %41 = vector.shape_cast %3 : vector<1x1xf32> to vector<1x1x1xf32>
    %42 = vector.broadcast %41 : vector<1x1x1xf32> to vector<8x1x1xf32>
    %43 = arith.subf %42, %37 : vector<8x1x1xf32>
    %44 = math.exp %43 : vector<8x1x1xf32>
    %cst_24 = arith.constant dense<0.000000e+00> : vector<8x1xf32>
    %45 = vector.multi_reduction <add>, %40, %cst_24 [1] : vector<8x8x1xf32> to vector<8x1xf32>
    %46 = vector.shape_cast %45 : vector<8x1xf32> to vector<8x1x1xf32>
    %47 = arith.addf %46, %44 : vector<8x1x1xf32>
    %48 = vector.broadcast %40 : vector<8x8x1xf32> to vector<8x8x32xf32>
    %49 = arith.mulf %48, %27 : vector<8x8x32xf32>
    %cst_25 = arith.constant dense<0.000000e+00> : vector<8x32xf32>
    %50 = vector.multi_reduction <add>, %49, %cst_25 [1] : vector<8x8x32xf32> to vector<8x32xf32>
    %51 = vector.shape_cast %50 : vector<8x32xf32> to vector<8x1x32xf32>
    %52 = vector.shape_cast %1 : vector<1x32xf32> to vector<1x1x32xf32>
    %53 = vector.broadcast %44 : vector<8x1x1xf32> to vector<8x1x32xf32>
    %54 = vector.broadcast %52 : vector<1x1x32xf32> to vector<8x1x32xf32>
    %55 = arith.mulf %53, %54 : vector<8x1x32xf32>
    %56 = arith.addf %51, %55 : vector<8x1x32xf32>
    %57 = vector.broadcast %47 : vector<8x1x1xf32> to vector<8x1x32xf32>
    %58 = arith.divf %56, %57 : vector<8x1x32xf32>
    %59 = vector.shape_cast %58 : vector<8x1x32xf32> to vector<8x32xf32>
    %c0_26 = arith.constant 0 : index
    %c0_27 = arith.constant 0 : index
    %60 = vector.load %arg5[%c0_26, %c0_27] : memref<32x32xf32, #tpu.memory_space<vmem>>, vector<32x32xf32>
    %cst_28 = arith.constant dense<0.000000e+00> : vector<8x32xf32>
    %61 = tpu.matmul %59, %60, %cst_28 {dimension_numbers = #tpu.dot_dimension_numbers<[1], [0], [0], [1], [0, 0, 1, 1], [], []>} : vector<8x32xf32>, vector<32x32xf32>, vector<8x32xf32> -> vector<8x32xf32>
    %62 = vector.broadcast %6 : vector<1x32xf32> to vector<8x32xf32>
    %63 = arith.addf %61, %62 : vector<8x32xf32>
    %64 = vector.broadcast %2 : vector<1x32xf32> to vector<8x32xf32>
    %65 = arith.addf %64, %63 : vector<8x32xf32>
    %cst_29 = arith.constant dense<0.000000e+00> : vector<8xf32>
    %66 = vector.multi_reduction <add>, %65, %cst_29 [1] : vector<8x32xf32> to vector<8xf32>
    %67 = vector.shape_cast %66 : vector<8xf32> to vector<8x1xf32>
    %cst_30 = arith.constant 3.200000e+01 : f32
    %68 = vector.broadcast %cst_30 : f32 to vector<8x1xf32>
    %69 = arith.divf %67, %68 : vector<8x1xf32>
    %70 = vector.broadcast %69 : vector<8x1xf32> to vector<8x32xf32>
    %71 = arith.subf %65, %70 : vector<8x32xf32>
    %72 = arith.mulf %71, %71 : vector<8x32xf32>
    %cst_31 = arith.constant dense<0.000000e+00> : vector<8xf32>
    %73 = vector.multi_reduction <add>, %72, %cst_31 [1] : vector<8x32xf32> to vector<8xf32>
    %74 = vector.shape_cast %73 : vector<8xf32> to vector<8x1xf32>
    %cst_32 = arith.constant 3.200000e+01 : f32
    %75 = vector.broadcast %cst_32 : f32 to vector<8x1xf32>
    %76 = arith.divf %74, %75 : vector<8x1xf32>
    %77 = vector.broadcast %69 : vector<8x1xf32> to vector<8x32xf32>
    %78 = arith.subf %65, %77 : vector<8x32xf32>
    %cst_33 = arith.constant 9.99999974E-6 : f32
    %79 = vector.broadcast %cst_33 : f32 to vector<8x1xf32>
    %80 = arith.addf %76, %79 : vector<8x1xf32>
    %81 = math.rsqrt %80 : vector<8x1xf32>
    %82 = vector.broadcast %81 : vector<8x1xf32> to vector<8x32xf32>
    %83 = arith.mulf %78, %82 : vector<8x32xf32>
    %84 = vector.broadcast %7 : vector<1x32xf32> to vector<8x32xf32>
    %85 = arith.mulf %83, %84 : vector<8x32xf32>
    %86 = vector.broadcast %8 : vector<1x32xf32> to vector<8x32xf32>
    %87 = arith.addf %85, %86 : vector<8x32xf32>
    %cst_34 = arith.constant 0.000000e+00 : f32
    %88 = vector.broadcast %cst_34 : f32 to vector<8x32xf32>
    %c0_i32 = arith.constant 0 : i32
    %c512_i32 = arith.constant 512 : i32
    %89 = arith.muli %c0_i32, %c512_i32 : i32
    %90 = tpu.assume_multiple %89, 512 : i32
    %c0_35 = arith.constant 0 : index
    %91 = arith.index_cast %90 : i32 to index
    %92 = vector.load %arg6[%c0_35, %91] : memref<32x2048xf32, #tpu.memory_space<vmem>>, vector<32x512xf32>
    %cst_36 = arith.constant dense<0.000000e+00> : vector<8x512xf32>
    %93 = tpu.matmul %87, %92, %cst_36 {dimension_numbers = #tpu.dot_dimension_numbers<[1], [0], [0], [1], [0, 0, 1, 1], [], []>} : vector<8x32xf32>, vector<32x512xf32>, vector<8x512xf32> -> vector<8x512xf32>
    %c0_37 = arith.constant 0 : index
    %94 = arith.index_cast %90 : i32 to index
    %95 = vector.load %arg7[%c0_37, %94] : memref<1x2048xf32, #tpu.memory_space<vmem>>, vector<1x512xf32>
    %96 = vector.broadcast %95 : vector<1x512xf32> to vector<8x512xf32>
    %97 = arith.addf %93, %96 : vector<8x512xf32>
    %cst_38 = arith.constant 0.000000e+00 : f32
    %98 = vector.broadcast %cst_38 : f32 to vector<8x512xf32>
    %99 = arith.maximumf %97, %98 : vector<8x512xf32>
    %100 = arith.index_cast %90 : i32 to index
    %c0_39 = arith.constant 0 : index
    %101 = vector.load %arg8[%100, %c0_39] : memref<2048x32xf32, #tpu.memory_space<vmem>>, vector<512x32xf32>
    %cst_40 = arith.constant dense<0.000000e+00> : vector<8x32xf32>
    %102 = tpu.matmul %99, %101, %cst_40 {dimension_numbers = #tpu.dot_dimension_numbers<[1], [0], [0], [1], [0, 0, 1, 1], [], []>} : vector<8x512xf32>, vector<512x32xf32>, vector<8x32xf32> -> vector<8x32xf32>
    %103 = arith.addf %88, %102 : vector<8x32xf32>
    %c1_i32 = arith.constant 1 : i32
    %c512_i32_41 = arith.constant 512 : i32
    %104 = arith.muli %c1_i32, %c512_i32_41 : i32
    %105 = tpu.assume_multiple %104, 512 : i32
    %c0_42 = arith.constant 0 : index
    %106 = arith.index_cast %105 : i32 to index
    %107 = vector.load %arg6[%c0_42, %106] : memref<32x2048xf32, #tpu.memory_space<vmem>>, vector<32x512xf32>
    %cst_43 = arith.constant dense<0.000000e+00> : vector<8x512xf32>
    %108 = tpu.matmul %87, %107, %cst_43 {dimension_numbers = #tpu.dot_dimension_numbers<[1], [0], [0], [1], [0, 0, 1, 1], [], []>} : vector<8x32xf32>, vector<32x512xf32>, vector<8x512xf32> -> vector<8x512xf32>
    %c0_44 = arith.constant 0 : index
    %109 = arith.index_cast %105 : i32 to index
    %110 = vector.load %arg7[%c0_44, %109] : memref<1x2048xf32, #tpu.memory_space<vmem>>, vector<1x512xf32>
    %111 = vector.broadcast %110 : vector<1x512xf32> to vector<8x512xf32>
    %112 = arith.addf %108, %111 : vector<8x512xf32>
    %cst_45 = arith.constant 0.000000e+00 : f32
    %113 = vector.broadcast %cst_45 : f32 to vector<8x512xf32>
    %114 = arith.maximumf %112, %113 : vector<8x512xf32>
    %115 = arith.index_cast %105 : i32 to index
    %c0_46 = arith.constant 0 : index
    %116 = vector.load %arg8[%115, %c0_46] : memref<2048x32xf32, #tpu.memory_space<vmem>>, vector<512x32xf32>
    %cst_47 = arith.constant dense<0.000000e+00> : vector<8x32xf32>
    %117 = tpu.matmul %114, %116, %cst_47 {dimension_numbers = #tpu.dot_dimension_numbers<[1], [0], [0], [1], [0, 0, 1, 1], [], []>} : vector<8x512xf32>, vector<512x32xf32>, vector<8x32xf32> -> vector<8x32xf32>
    %118 = arith.addf %103, %117 : vector<8x32xf32>
    %c2_i32 = arith.constant 2 : i32
    %c512_i32_48 = arith.constant 512 : i32
    %119 = arith.muli %c2_i32, %c512_i32_48 : i32
    %120 = tpu.assume_multiple %119, 512 : i32
    %c0_49 = arith.constant 0 : index
    %121 = arith.index_cast %120 : i32 to index
    %122 = vector.load %arg6[%c0_49, %121] : memref<32x2048xf32, #tpu.memory_space<vmem>>, vector<32x512xf32>
    %cst_50 = arith.constant dense<0.000000e+00> : vector<8x512xf32>
    %123 = tpu.matmul %87, %122, %cst_50 {dimension_numbers = #tpu.dot_dimension_numbers<[1], [0], [0], [1], [0, 0, 1, 1], [], []>} : vector<8x32xf32>, vector<32x512xf32>, vector<8x512xf32> -> vector<8x512xf32>
    %c0_51 = arith.constant 0 : index
    %124 = arith.index_cast %120 : i32 to index
    %125 = vector.load %arg7[%c0_51, %124] : memref<1x2048xf32, #tpu.memory_space<vmem>>, vector<1x512xf32>
    %126 = vector.broadcast %125 : vector<1x512xf32> to vector<8x512xf32>
    %127 = arith.addf %123, %126 : vector<8x512xf32>
    %cst_52 = arith.constant 0.000000e+00 : f32
    %128 = vector.broadcast %cst_52 : f32 to vector<8x512xf32>
    %129 = arith.maximumf %127, %128 : vector<8x512xf32>
    %130 = arith.index_cast %120 : i32 to index
    %c0_53 = arith.constant 0 : index
    %131 = vector.load %arg8[%130, %c0_53] : memref<2048x32xf32, #tpu.memory_space<vmem>>, vector<512x32xf32>
    %cst_54 = arith.constant dense<0.000000e+00> : vector<8x32xf32>
    %132 = tpu.matmul %129, %131, %cst_54 {dimension_numbers = #tpu.dot_dimension_numbers<[1], [0], [0], [1], [0, 0, 1, 1], [], []>} : vector<8x512xf32>, vector<512x32xf32>, vector<8x32xf32> -> vector<8x32xf32>
    %133 = arith.addf %118, %132 : vector<8x32xf32>
    %c3_i32 = arith.constant 3 : i32
    %c512_i32_55 = arith.constant 512 : i32
    %134 = arith.muli %c3_i32, %c512_i32_55 : i32
    %135 = tpu.assume_multiple %134, 512 : i32
    %c0_56 = arith.constant 0 : index
    %136 = arith.index_cast %135 : i32 to index
    %137 = vector.load %arg6[%c0_56, %136] : memref<32x2048xf32, #tpu.memory_space<vmem>>, vector<32x512xf32>
    %cst_57 = arith.constant dense<0.000000e+00> : vector<8x512xf32>
    %138 = tpu.matmul %87, %137, %cst_57 {dimension_numbers = #tpu.dot_dimension_numbers<[1], [0], [0], [1], [0, 0, 1, 1], [], []>} : vector<8x32xf32>, vector<32x512xf32>, vector<8x512xf32> -> vector<8x512xf32>
    %c0_58 = arith.constant 0 : index
    %139 = arith.index_cast %135 : i32 to index
    %140 = vector.load %arg7[%c0_58, %139] : memref<1x2048xf32, #tpu.memory_space<vmem>>, vector<1x512xf32>
    %141 = vector.broadcast %140 : vector<1x512xf32> to vector<8x512xf32>
    %142 = arith.addf %138, %141 : vector<8x512xf32>
    %cst_59 = arith.constant 0.000000e+00 : f32
    %143 = vector.broadcast %cst_59 : f32 to vector<8x512xf32>
    %144 = arith.maximumf %142, %143 : vector<8x512xf32>
    %145 = arith.index_cast %135 : i32 to index
    %c0_60 = arith.constant 0 : index
    %146 = vector.load %arg8[%145, %c0_60] : memref<2048x32xf32, #tpu.memory_space<vmem>>, vector<512x32xf32>
    %cst_61 = arith.constant dense<0.000000e+00> : vector<8x32xf32>
    %147 = tpu.matmul %144, %146, %cst_61 {dimension_numbers = #tpu.dot_dimension_numbers<[1], [0], [0], [1], [0, 0, 1, 1], [], []>} : vector<8x512xf32>, vector<512x32xf32>, vector<8x32xf32> -> vector<8x32xf32>
    %148 = arith.addf %133, %147 : vector<8x32xf32>
    %c4_i32 = arith.constant 4 : i32
    %149 = arith.addf %87, %148 : vector<8x32xf32>
    %150 = vector.broadcast %9 : vector<1x32xf32> to vector<8x32xf32>
    %151 = arith.addf %149, %150 : vector<8x32xf32>
    %cst_62 = arith.constant dense<0.000000e+00> : vector<8xf32>
    %152 = vector.multi_reduction <add>, %151, %cst_62 [1] : vector<8x32xf32> to vector<8xf32>
    %153 = vector.shape_cast %152 : vector<8xf32> to vector<8x1xf32>
    %cst_63 = arith.constant 3.200000e+01 : f32
    %154 = vector.broadcast %cst_63 : f32 to vector<8x1xf32>
    %155 = arith.divf %153, %154 : vector<8x1xf32>
    %156 = vector.broadcast %155 : vector<8x1xf32> to vector<8x32xf32>
    %157 = arith.subf %151, %156 : vector<8x32xf32>
    %158 = arith.mulf %157, %157 : vector<8x32xf32>
    %cst_64 = arith.constant dense<0.000000e+00> : vector<8xf32>
    %159 = vector.multi_reduction <add>, %158, %cst_64 [1] : vector<8x32xf32> to vector<8xf32>
    %160 = vector.shape_cast %159 : vector<8xf32> to vector<8x1xf32>
    %cst_65 = arith.constant 3.200000e+01 : f32
    %161 = vector.broadcast %cst_65 : f32 to vector<8x1xf32>
    %162 = arith.divf %160, %161 : vector<8x1xf32>
    %163 = vector.broadcast %155 : vector<8x1xf32> to vector<8x32xf32>
    %164 = arith.subf %151, %163 : vector<8x32xf32>
    %cst_66 = arith.constant 9.99999974E-6 : f32
    %165 = vector.broadcast %cst_66 : f32 to vector<8x1xf32>
    %166 = arith.addf %162, %165 : vector<8x1xf32>
    %167 = math.rsqrt %166 : vector<8x1xf32>
    %168 = vector.broadcast %167 : vector<8x1xf32> to vector<8x32xf32>
    %169 = arith.mulf %164, %168 : vector<8x32xf32>
    %170 = vector.broadcast %10 : vector<1x32xf32> to vector<8x32xf32>
    %171 = arith.mulf %169, %170 : vector<8x32xf32>
    %172 = vector.broadcast %11 : vector<1x32xf32> to vector<8x32xf32>
    %173 = arith.addf %171, %172 : vector<8x32xf32>
    %c0_67 = arith.constant 0 : index
    %c0_68 = arith.constant 0 : index
    %174 = vector.load %arg9[%c0_67, %c0_68] : memref<32x128xf32, #tpu.memory_space<vmem>>, vector<32x128xf32>
    %cst_69 = arith.constant dense<0.000000e+00> : vector<8x128xf32>
    %175 = tpu.matmul %173, %174, %cst_69 {dimension_numbers = #tpu.dot_dimension_numbers<[1], [0], [0], [1], [0, 0, 1, 1], [], []>} : vector<8x32xf32>, vector<32x128xf32>, vector<8x128xf32> -> vector<8x128xf32>
    %c0_70 = arith.constant 0 : index
    %c0_71 = arith.constant 0 : index
    %176 = vector.load %arg10[%c0_70, %c0_71] : memref<1x128xf32, #tpu.memory_space<vmem>>, vector<1x128xf32>
    %177 = vector.broadcast %176 : vector<1x128xf32> to vector<8x128xf32>
    %178 = arith.addf %175, %177 : vector<8x128xf32>
    %cst_72 = arith.constant dense<0xFF800000> : vector<8xf32>
    %179 = vector.multi_reduction <maximumf>, %178, %cst_72 [1] : vector<8x128xf32> to vector<8xf32>
    %180 = vector.shape_cast %179 : vector<8xf32> to vector<8x1xf32>
    %181 = vector.broadcast %180 : vector<8x1xf32> to vector<8x128xf32>
    %182 = arith.subf %178, %181 : vector<8x128xf32>
    %183 = math.exp %182 : vector<8x128xf32>
    %cst_73 = arith.constant dense<0.000000e+00> : vector<8xf32>
    %184 = vector.multi_reduction <add>, %183, %cst_73 [1] : vector<8x128xf32> to vector<8xf32>
    %185 = vector.shape_cast %184 : vector<8xf32> to vector<8x1xf32>
    %186 = vector.broadcast %185 : vector<8x1xf32> to vector<8x128xf32>
    %187 = arith.divf %183, %186 : vector<8x128xf32>
    %c0_74 = arith.constant 0 : index
    %c0_75 = arith.constant 0 : index
    %188 = vector.load %arg12[%c0_74, %c0_75] : memref<8x128xf32, #tpu.memory_space<vmem>>, vector<8x128xf32>
    tpu.vector_store %arg12[%c0_74, %c0_75], %187 {strides = array<i32>} : memref<8x128xf32, #tpu.memory_space<vmem>>, vector<8x128xf32>,
    return
  }
  func.func @transform_0(%arg0: i32) -> (i32, i32, i32) {
    %c0_i32 = arith.constant 0 : i32
    %c0_i32_0 = arith.constant 0 : i32
    %c0_i32_1 = arith.constant 0 : i32
    return %arg0, %c0_i32, %c0_i32_0 : i32, i32, i32
  }
  func.func @transform_1(%arg0: i32) -> (i32, i32) {
    %c0_i32 = arith.constant 0 : i32
    %c0_i32_0 = arith.constant 0 : i32
    %c0_i32_1 = arith.constant 0 : i32
    return %c0_i32, %c0_i32_0 : i32, i32
  }
  func.func @transform_2(%arg0: i32) -> (i32, i32) {
    %c0_i32 = arith.constant 0 : i32
    %c0_i32_0 = arith.constant 0 : i32
    %c0_i32_1 = arith.constant 0 : i32
    return %c0_i32, %c0_i32_0 : i32, i32
  }
  func.func @transform_3(%arg0: i32) -> (i32, i32) {
    %c0_i32 = arith.constant 0 : i32
    %c0_i32_0 = arith.constant 0 : i32
    %c0_i32_1 = arith.constant 0 : i32
    return %c0_i32, %c0_i32_0 : i32, i32
  }
  func.func @transform_4(%arg0: i32) -> (i32, i32) {
    %c0_i32 = arith.constant 0 : i32
    %c0_i32_0 = arith.constant 0 : i32
    %c0_i32_1 = arith.constant 0 : i32
    return %c0_i32, %c0_i32_0 : i32, i32
  }
  func.func @transform_5(%arg0: i32) -> (i32, i32) {
    %c0_i32 = arith.constant 0 : i32
    %c0_i32_0 = arith.constant 0 : i32
    %c0_i32_1 = arith.constant 0 : i32
    return %c0_i32, %c0_i32_0 : i32, i32
  }
  func.func @transform_6(%arg0: i32) -> (i32, i32) {
    %c0_i32 = arith.constant 0 : i32
    %c0_i32_0 = arith.constant 0 : i32
    %c0_i32_1 = arith.constant 0 : i32
    return %c0_i32, %c0_i32_0 : i32, i32
  }
  func.func @transform_7(%arg0: i32) -> (i32, i32) {
    %c0_i32 = arith.constant 0 : i32
    %c0_i32_0 = arith.constant 0 : i32
    %c0_i32_1 = arith.constant 0 : i32
    return %c0_i32, %c0_i32_0 : i32, i32
  }
  func.func @transform_8(%arg0: i32) -> (i32, i32) {
    %c0_i32 = arith.constant 0 : i32
    %c0_i32_0 = arith.constant 0 : i32
    %c0_i32_1 = arith.constant 0 : i32
    return %c0_i32, %c0_i32_0 : i32, i32
  }
  func.func @transform_9(%arg0: i32) -> (i32, i32) {
    %c0_i32 = arith.constant 0 : i32
    %c0_i32_0 = arith.constant 0 : i32
    %c0_i32_1 = arith.constant 0 : i32
    return %c0_i32, %c0_i32_0 : i32, i32
  }
  func.func @transform_10(%arg0: i32) -> (i32, i32) {
    %c0_i32 = arith.constant 0 : i32
    %c0_i32_0 = arith.constant 0 : i32
    %c0_i32_1 = arith.constant 0 : i32
    return %c0_i32, %c0_i32_0 : i32, i32
  }
  func.func @transform_11(%arg0: i32) -> (i32, i32) {
    %c0_i32 = arith.constant 0 : i32
    %c0_i32_0 = arith.constant 0 : i32
    return %arg0, %c0_i32 : i32, i32
  }
}

</mosaic_0001>

<llo_original>
// kernel: tpu_custom_call.1
$region0: #{tpu_custom_call.1}
  #allocation0 [shape = 'u32[]', space=smem, size = 0x4, offset = 0x4, fixed_abs, tag = 'smem constant byte address 0x4 - core index']
  #allocation1 [shape = 'u32[144,128]{1,0:T(1,128)}', space=vmem, size = 0x12000, scoped, tag = 'internal scratch']
  %s0 = inlined_call_operand.vmem [shape: f32[16,8,32], index: 0, kind: input, shape index: {}]
  %s1 = inlined_call_operand.vmem [shape: f32[8,32], index: 1, kind: input, shape index: {}]
  %s2 = inlined_call_operand.vmem [shape: f32[32,32], index: 2, kind: input, shape index: {}]
  %s3 = inlined_call_operand.vmem [shape: f32[32,32], index: 3, kind: input, shape index: {}]
  %s4 = inlined_call_operand.vmem [shape: f32[32,32], index: 4, kind: input, shape index: {}]
  %s5 = inlined_call_operand.vmem [shape: f32[32,2048], index: 5, kind: input, shape index: {}]
  %s6 = inlined_call_operand.vmem [shape: f32[1,2048], index: 6, kind: input, shape index: {}]
  %s7 = inlined_call_operand.vmem [shape: f32[2048,32], index: 7, kind: input, shape index: {}]
  %s8 = inlined_call_operand.vmem [shape: f32[32,128], index: 8, kind: input, shape index: {}]
  %s9 = inlined_call_operand.vmem [shape: f32[1,128], index: 9, kind: input, shape index: {}]
  %s10 = inlined_call_operand.vmem [shape: f32[12,32], index: 10, kind: input, shape index: {}]
  %s11 = inlined_call_operand.hbm [shape: f32[16,128], index: 11, kind: output, shape index: {}]
  %s12 = sld [smem:[#allocation0]]
  $region77: #{tpu_custom_call.1} parent=0
    _
  %s14 = ssub.s32 1, %s12
  %s15 = scalar_select 0, %s14, %s12
  $region1: #{tpu_custom_call.1} parent=0
    #allocation2 [shape = 'u8[8192]{0}', space=vmem, size = 0x2000, scoped, tag = 'output window, operand 0']
    #allocation3 [shape = 's32[2]{0}', space=sflag, size = 0x8, scoped, tag = 'scoped memory for tpu_custom_call.1']
    %16 = vsyncpa [#allocation3], 0
    %s17 = scalar_lea.sflag [#allocation3], 1
    %18 = vsyncpa %s17, 0
    loop: start=0, step=1, limit=4
    $region2: #{tpu_custom_call.1} parent=1 // loop_pre_header
      _
    $region3: #{tpu_custom_call.1} parent=1 // loop_header
      %s20 = sphi 0, %s24
      %p21 = scmp.ge.s32.totalorder %s20, 4
      %s30 = sphi 0, %s32
      %s33 = sphi 0, %s30
      %s34 = sphi 0, %s33
      %s50 = sphi 0, %s34
      %s54 = sphi 0, %s54
      %s56 = sphi 0, %s54
      %s57 = sphi 0, %s56
      %s71 = sphi 0, %s57
      %s75 = sphi 0, %s75
      %s77 = sphi 0, %s75
      %s78 = sphi 0, %s77
      %s92 = sphi 0, %s78
      %s96 = sphi 0, %s96
      %s98 = sphi 0, %s96
      %s99 = sphi 0, %s98
      %s113 = sphi 0, %s99
      %s117 = sphi 0, %s117
      %s119 = sphi 0, %s117
      %s120 = sphi 0, %s119
      %s134 = sphi 0, %s120
      %s138 = sphi 0, %s138
      %s140 = sphi 0, %s138
      %s141 = sphi 0, %s140
      %s155 = sphi 0, %s141
      %s159 = sphi 0, %s159
      %s161 = sphi 0, %s159
      %s162 = sphi 0, %s161
      %s176 = sphi 0, %s162
      %s180 = sphi 0, %s180
      %s182 = sphi 0, %s180
      %s183 = sphi 0, %s182
      %s197 = sphi 0, %s183
      %s201 = sphi 0, %s201
      %s203 = sphi 0, %s201
      %s204 = sphi 0, %s203
      %s218 = sphi 0, %s204
      %s222 = sphi 0, %s222
      %s224 = sphi 0, %s222
      %s225 = sphi 0, %s224
      %s239 = sphi 0, %s225
      %s243 = sphi 0, %s243
      %s245 = sphi 0, %s243
      %s246 = sphi 0, %s245
      %s260 = sphi 0, %s246
      %s266 = sphi 0, %s268
      %s269 = sphi 0, %s266
      %s270 = sphi 0, %s269
      %s286 = sphi 0, %s270
    $region4: #{tpu_custom_call.1} parent=1 // loop_header_branch
      %23 = sbr.rel (%p21) target = $region8
    $region5: #{tpu_custom_call.1} parent=1 // loop_body
      %s25 = ssub.s32 %s20, 1
      %s26 = ssub.s32 %s20, 2
      %s27 = sadd.s32 %s20, 1
      %s28 = ssub.s32 %s20, %s27
      %p29 = scmp.eq.s32.totalorder %s28, 0
      %s31 = sadd.s32 %s30, 1
      %s32 = scalar_select %p29, %s30, %s31
      %p35 = pneg %p29
      %p36 = scmp.eq.s32.totalorder %s20, 1
      %p37 = por %p35, %p36
      %p38 = scmp.ne.s32.totalorder %s30, %s33
      %p39 = scmp.eq.s32.totalorder %s20, 0
      %p40 = por %p38, %p39
      %p41 = scmp.ne.s32.totalorder %s30, %s33
      %p42 = scmp.eq.s32.totalorder %s25, 1
      %p43 = por %p41, %p42
      %p44 = scmp.ne.s32.totalorder %s33, %s34
      %p45 = scmp.eq.s32.totalorder %s25, 0
      %p46 = por %p44, %p45
      %p47 = scmp.ne.s32.totalorder %s33, %s34
      %p48 = scmp.eq.s32.totalorder %s26, 1
      %p49 = por %p47, %p48
      %p51 = scmp.ne.s32.totalorder %s34, %s50
      %p52 = scmp.eq.s32.totalorder %s26, 0
      %p53 = por %p51, %p52
      %s55 = sadd.s32 %s54, 1
      %p58 = scmp.eq.s32.totalorder %s20, 1
      %p59 = scmp.ne.s32.totalorder %s54, %s56
      %p60 = scmp.eq.s32.totalorder %s20, 0
      %p61 = por %p59, %p60
      %p62 = scmp.ne.s32.totalorder %s54, %s56
      %p63 = scmp.eq.s32.totalorder %s25, 1
      %p64 = por %p62, %p63
      %p65 = scmp.ne.s32.totalorder %s56, %s57
      %p66 = scmp.eq.s32.totalorder %s25, 0
      %p67 = por %p65, %p66
      %p68 = scmp.ne.s32.totalorder %s56, %s57
      %p69 = scmp.eq.s32.totalorder %s26, 1
      %p70 = por %p68, %p69
      %p72 = scmp.ne.s32.totalorder %s57, %s71
      %p73 = scmp.eq.s32.totalorder %s26, 0
      %p74 = por %p72, %p73
      %s76 = sadd.s32 %s75, 1
      %p79 = scmp.eq.s32.totalorder %s20, 1
      %p80 = scmp.ne.s32.totalorder %s75, %s77
      %p81 = scmp.eq.s32.totalorder %s20, 0
      %p82 = por %p80, %p81
      %p83 = scmp.ne.s32.totalorder %s75, %s77
      %p84 = scmp.eq.s32.totalorder %s25, 1
      %p85 = por %p83, %p84
      %p86 = scmp.ne.s32.totalorder %s77, %s78
      %p87 = scmp.eq.s32.totalorder %s25, 0
      %p88 = por %p86, %p87
      %p89 = scmp.ne.s32.totalorder %s77, %s78
      %p90 = scmp.eq.s32.totalorder %s26, 1
      %p91 = por %p89, %p90
      %p93 = scmp.ne.s32.totalorder %s78, %s92
      %p94 = scmp.eq.s32.totalorder %s26, 0
      %p95 = por %p93, %p94
      %s97 = sadd.s32 %s96, 1
      %p100 = scmp.eq.s32.totalorder %s20, 1
      %p101 = scmp.ne.s32.totalorder %s96, %s98
      %p102 = scmp.eq.s32.totalorder %s20, 0
      %p103 = por %p101, %p102
      %p104 = scmp.ne.s32.totalorder %s96, %s98
      %p105 = scmp.eq.s32.totalorder %s25, 1
      %p106 = por %p104, %p105
      %p107 = scmp.ne.s32.totalorder %s98, %s99
      %p108 = scmp.eq.s32.totalorder %s25, 0
      %p109 = por %p107, %p108
      %p110 = scmp.ne.s32.totalorder %s98, %s99
      %p111 = scmp.eq.s32.totalorder %s26, 1
      %p112 = por %p110, %p111
      %p114 = scmp.ne.s32.totalorder %s99, %s113
      %p115 = scmp.eq.s32.totalorder %s26, 0
      %p116 = por %p114, %p115
      %s118 = sadd.s32 %s117, 1
      %p121 = scmp.eq.s32.totalorder %s20, 1
      %p122 = scmp.ne.s32.totalorder %s117, %s119
      %p123 = scmp.eq.s32.totalorder %s20, 0
      %p124 = por %p122, %p123
      %p125 = scmp.ne.s32.totalorder %s117, %s119
      %p126 = scmp.eq.s32.totalorder %s25, 1
      %p127 = por %p125, %p126
      %p128 = scmp.ne.s32.totalorder %s119, %s120
      %p129 = scmp.eq.s32.totalorder %s25, 0
      %p130 = por %p128, %p129
      %p131 = scmp.ne.s32.totalorder %s119, %s120
      %p132 = scmp.eq.s32.totalorder %s26, 1
      %p133 = por %p131, %p132
      %p135 = scmp.ne.s32.totalorder %s120, %s134
      %p136 = scmp.eq.s32.totalorder %s26, 0
      %p137 = por %p135, %p136
      %s139 = sadd.s32 %s138, 1
      %p142 = scmp.eq.s32.totalorder %s20, 1
      %p143 = scmp.ne.s32.totalorder %s138, %s140
      %p144 = scmp.eq.s32.totalorder %s20, 0
      %p145 = por %p143, %p144
      %p146 = scmp.ne.s32.totalorder %s138, %s140
      %p147 = scmp.eq.s32.totalorder %s25, 1
      %p148 = por %p146, %p147
      %p149 = scmp.ne.s32.totalorder %s140, %s141
      %p150 = scmp.eq.s32.totalorder %s25, 0
      %p151 = por %p149, %p150
      %p152 = scmp.ne.s32.totalorder %s140, %s141
      %p153 = scmp.eq.s32.totalorder %s26, 1
      %p154 = por %p152, %p153
      %p156 = scmp.ne.s32.totalorder %s141, %s155
      %p157 = scmp.eq.s32.totalorder %s26, 0
      %p158 = por %p156, %p157
      %s160 = sadd.s32 %s159, 1
      %p163 = scmp.eq.s32.totalorder %s20, 1
      %p164 = scmp.ne.s32.totalorder %s159, %s161
      %p165 = scmp.eq.s32.totalorder %s20, 0
      %p166 = por %p164, %p165
      %p167 = scmp.ne.s32.totalorder %s159, %s161
      %p168 = scmp.eq.s32.totalorder %s25, 1
      %p169 = por %p167, %p168
      %p170 = scmp.ne.s32.totalorder %s161, %s162
      %p171 = scmp.eq.s32.totalorder %s25, 0
      %p172 = por %p170, %p171
      %p173 = scmp.ne.s32.totalorder %s161, %s162
      %p174 = scmp.eq.s32.totalorder %s26, 1
      %p175 = por %p173, %p174
      %p177 = scmp.ne.s32.totalorder %s162, %s176
      %p178 = scmp.eq.s32.totalorder %s26, 0
      %p179 = por %p177, %p178
      %s181 = sadd.s32 %s180, 1
      %p184 = scmp.eq.s32.totalorder %s20, 1
      %p185 = scmp.ne.s32.totalorder %s180, %s182
      %p186 = scmp.eq.s32.totalorder %s20, 0
      %p187 = por %p185, %p186
      %p188 = scmp.ne.s32.totalorder %s180, %s182
      %p189 = scmp.eq.s32.totalorder %s25, 1
      %p190 = por %p188, %p189
      %p191 = scmp.ne.s32.totalorder %s182, %s183
      %p192 = scmp.eq.s32.totalorder %s25, 0
      %p193 = por %p191, %p192
      %p194 = scmp.ne.s32.totalorder %s182, %s183
      %p195 = scmp.eq.s32.totalorder %s26, 1
      %p196 = por %p194, %p195
      %p198 = scmp.ne.s32.totalorder %s183, %s197
      %p199 = scmp.eq.s32.totalorder %s26, 0
      %p200 = por %p198, %p199
      %s202 = sadd.s32 %s201, 1
      %p205 = scmp.eq.s32.totalorder %s20, 1
      %p206 = scmp.ne.s32.totalorder %s201, %s203
      %p207 = scmp.eq.s32.totalorder %s20, 0
      %p208 = por %p206, %p207
      %p209 = scmp.ne.s32.totalorder %s201, %s203
      %p210 = scmp.eq.s32.totalorder %s25, 1
      %p211 = por %p209, %p210
      %p212 = scmp.ne.s32.totalorder %s203, %s204
      %p213 = scmp.eq.s32.totalorder %s25, 0
      %p214 = por %p212, %p213
      %p215 = scmp.ne.s32.totalorder %s203, %s204
      %p216 = scmp.eq.s32.totalorder %s26, 1
      %p217 = por %p215, %p216
      %p219 = scmp.ne.s32.totalorder %s204, %s218
      %p220 = scmp.eq.s32.totalorder %s26, 0
      %p221 = por %p219, %p220
      %s223 = sadd.s32 %s222, 1
      %p226 = scmp.eq.s32.totalorder %s20, 1
      %p227 = scmp.ne.s32.totalorder %s222, %s224
      %p228 = scmp.eq.s32.totalorder %s20, 0
      %p229 = por %p227, %p228
      %p230 = scmp.ne.s32.totalorder %s222, %s224
      %p231 = scmp.eq.s32.totalorder %s25, 1
      %p232 = por %p230, %p231
      %p233 = scmp.ne.s32.totalorder %s224, %s225
      %p234 = scmp.eq.s32.totalorder %s25, 0
      %p235 = por %p233, %p234
      %p236 = scmp.ne.s32.totalorder %s224, %s225
      %p237 = scmp.eq.s32.totalorder %s26, 1
      %p238 = por %p236, %p237
      %p240 = scmp.ne.s32.totalorder %s225, %s239
      %p241 = scmp.eq.s32.totalorder %s26, 0
      %p242 = por %p240, %p241
      %s244 = sadd.s32 %s243, 1
      %p247 = scmp.eq.s32.totalorder %s20, 1
      %p248 = scmp.ne.s32.totalorder %s243, %s245
      %p249 = scmp.eq.s32.totalorder %s20, 0
      %p250 = por %p248, %p249
      %p251 = scmp.ne.s32.totalorder %s243, %s245
      %p252 = scmp.eq.s32.totalorder %s25, 1
      %p253 = por %p251, %p252
      %p254 = scmp.ne.s32.totalorder %s245, %s246
      %p255 = scmp.eq.s32.totalorder %s25, 0
      %p256 = por %p254, %p255
      %p257 = scmp.ne.s32.totalorder %s245, %s246
      %p258 = scmp.eq.s32.totalorder %s26, 1
      %p259 = por %p257, %p258
      %p261 = scmp.ne.s32.totalorder %s246, %s260
      %p262 = scmp.eq.s32.totalorder %s26, 0
      %p263 = por %p261, %p262
      %s264 = ssub.s32 %s20, %s27
      %p265 = scmp.eq.s32.totalorder %s264, 0
      %s267 = sadd.s32 %s266, 1
      %s268 = scalar_select %p265, %s266, %s267
      %p271 = pneg %p265
      %p272 = scmp.eq.s32.totalorder %s20, 1
      %p273 = por %p271, %p272
      %p274 = scmp.ne.s32.totalorder %s266, %s269
      %p275 = scmp.eq.s32.totalorder %s20, 0
      %p276 = por %p274, %p275
      %p277 = scmp.ne.s32.totalorder %s266, %s269
      %p278 = scmp.eq.s32.totalorder %s25, 1
      %p279 = por %p277, %p278
      %p280 = scmp.ne.s32.totalorder %s269, %s270
      %p281 = scmp.eq.s32.totalorder %s25, 0
      %p282 = por %p280, %p281
      %p283 = scmp.ne.s32.totalorder %s269, %s270
      %p284 = scmp.eq.s32.totalorder %s26, 1
      %p285 = por %p283, %p284
      %p287 = scmp.ne.s32.totalorder %s270, %s286
      %p288 = scmp.eq.s32.totalorder %s26, 0
      %p289 = por %p287, %p288
      %p290 = scmp.le.s32.totalorder 1, %s20
      %p291 = scmp.lt.s32.totalorder %s20, 3
      %p292 = pnand %p290, %p291
      %p293 = pneg %p292
      // Predicated region
      $region9: #{tpu_custom_call.1} parent=5 // pred_check
        _
      $region10: #{tpu_custom_call.1} parent=5 // pred_check_branch
        %295 = sbr.rel (%p292) target = $region12
      $region11: #{tpu_custom_call.1} parent=5 // pred_region
        %s296 = ssub.s32 %s20, 1
        // Predicated region
        $region13: #{tpu_custom_call.1} parent=11 // pred_check
          %p297 = pneg %p67
        $region14: #{tpu_custom_call.1} parent=11 // pred_check_branch
          %299 = sbr.rel (%p297) target = $region16
        $region15: #{tpu_custom_call.1} parent=11 // pred_region
          _
        $region16: #{tpu_custom_call.1} parent=11 // pred_fallthru
          _
        // Predicated region
        $region17: #{tpu_custom_call.1} parent=11 // pred_check
          %p300 = pneg %p88
        $region18: #{tpu_custom_call.1} parent=11 // pred_check_branch
          %302 = sbr.rel (%p300) target = $region20
        $region19: #{tpu_custom_call.1} parent=11 // pred_region
          _
        $region20: #{tpu_custom_call.1} parent=11 // pred_fallthru
          _
        // Predicated region
        $region21: #{tpu_custom_call.1} parent=11 // pred_check
          %p303 = pneg %p109
        $region22: #{tpu_custom_call.1} parent=11 // pred_check_branch
          %305 = sbr.rel (%p303) target = $region24
        $region23: #{tpu_custom_call.1} parent=11 // pred_region
          _
        $region24: #{tpu_custom_call.1} parent=11 // pred_fallthru
          _
        // Predicated region
        $region25: #{tpu_custom_call.1} parent=11 // pred_check
          %p306 = pneg %p130
        $region26: #{tpu_custom_call.1} parent=11 // pred_check_branch
          %308 = sbr.rel (%p306) target = $region28
        $region27: #{tpu_custom_call.1} parent=11 // pred_region
          _
        $region28: #{tpu_custom_call.1} parent=11 // pred_fallthru
          _
        // Predicated region
        $region29: #{tpu_custom_call.1} parent=11 // pred_check
          %p309 = pneg %p151
        $region30: #{tpu_custom_call.1} parent=11 // pred_check_branch
          %311 = sbr.rel (%p309) target = $region32
        $region31: #{tpu_custom_call.1} parent=11 // pred_region
          _
        $region32: #{tpu_custom_call.1} parent=11 // pred_fallthru
          _
        // Predicated region
        $region33: #{tpu_custom_call.1} parent=11 // pred_check
          %p312 = pneg %p172
        $region34: #{tpu_custom_call.1} parent=11 // pred_check_branch
          %314 = sbr.rel (%p312) target = $region36
        $region35: #{tpu_custom_call.1} parent=11 // pred_region
          _
        $region36: #{tpu_custom_call.1} parent=11 // pred_fallthru
          _
        // Predicated region
        $region37: #{tpu_custom_call.1} parent=11 // pred_check
          %p315 = pneg %p193
        $region38: #{tpu_custom_call.1} parent=11 // pred_check_branch
          %317 = sbr.rel (%p315) target = $region40
        $region39: #{tpu_custom_call.1} parent=11 // pred_region
          _
        $region40: #{tpu_custom_call.1} parent=11 // pred_fallthru
          _
        // Predicated region
        $region41: #{tpu_custom_call.1} parent=11 // pred_check
          %p318 = pneg %p214
        $region42: #{tpu_custom_call.1} parent=11 // pred_check_branch
          %320 = sbr.rel (%p318) target = $region44
        $region43: #{tpu_custom_call.1} parent=11 // pred_region
          _
        $region44: #{tpu_custom_call.1} parent=11 // pred_fallthru
          _
        // Predicated region
        $region45: #{tpu_custom_call.1} parent=11 // pred_check
          %p321 = pneg %p235
        $region46: #{tpu_custom_call.1} parent=11 // pred_check_branch
          %323 = sbr.rel (%p321) target = $region48
        $region47: #{tpu_custom_call.1} parent=11 // pred_region
          _
        $region48: #{tpu_custom_call.1} parent=11 // pred_fallthru
          _
        // Predicated region
        $region49: #{tpu_custom_call.1} parent=11 // pred_check
          %p324 = pneg %p256
        $region50: #{tpu_custom_call.1} parent=11 // pred_check_branch
          %326 = sbr.rel (%p324) target = $region52
        $region51: #{tpu_custom_call.1} parent=11 // pred_region
          _
        $region52: #{tpu_custom_call.1} parent=11 // pred_fallthru
          _
      $region12: #{tpu_custom_call.1} parent=5 // pred_fallthru
        _
      %p327 = scmp.lt.s32.totalorder %s20, 2
      // Predicated region
      $region53: #{tpu_custom_call.1} parent=5 // pred_check
        %p328 = pneg %p327
      $region54: #{tpu_custom_call.1} parent=5 // pred_check_branch
        %330 = sbr.rel (%p328) target = $region56
      $region55: #{tpu_custom_call.1} parent=5 // pred_region
        // Predicated region
        $region57: #{tpu_custom_call.1} parent=55 // pred_check
          %p331 = pneg %p40
        $region58: #{tpu_custom_call.1} parent=55 // pred_check_branch
          %333 = sbr.rel (%p331) target = $region60
        $region59: #{tpu_custom_call.1} parent=55 // pred_region
          %s334 = smul.u32 8, %s20
          %p335 = scmp.lt.s32.totalorder %s334, 15
          %s336 = scalar_select %p335, %s334, 15
          %s337 = smul.addr %s336, 8
          %s338 = scalar_lea.vmem %s0, %s337
          %s339 = smul.u32 8, %s20
        $region60: #{tpu_custom_call.1} parent=55 // pred_fallthru
          _
      $region56: #{tpu_custom_call.1} parent=5 // pred_fallthru
        _
      %p340 = scmp.le.s32.totalorder 1, %s20
      %p341 = scmp.lt.s32.totalorder %s20, 3
      %p342 = pnand %p340, %p341
      %p343 = pneg %p342
      // Predicated region
      $region61: #{tpu_custom_call.1} parent=5 // pred_check
        _
      $region62: #{tpu_custom_call.1} parent=5 // pred_check_branch
        %345 = sbr.rel (%p342) target = $region64
      $region63: #{tpu_custom_call.1} parent=5 // pred_region
        %s346 = ssub.s32 %s20, 1
        %s347 = smul.u32 8, %s25
        %p348 = scmp.lt.s32.totalorder %s347, 15
        %s349 = scalar_select %p348, %s347, 15
        %s350 = smul.addr %s349, 8
        %s351 = scalar_lea.vmem %s0, %s350
        %p352 = pneg %p46
        %p353 = pneg %p43
        %p354 = pneg %p67
        %p355 = pneg %p64
        %p356 = pneg %p88
        %p357 = pneg %p85
        %p358 = pneg %p109
        %p359 = pneg %p106
        %p360 = pneg %p130
        %p361 = pneg %p127
        %p362 = pneg %p151
        %p363 = pneg %p148
        %p364 = pneg %p172
        %p365 = pneg %p169
        %p366 = pneg %p193
        %p367 = pneg %p190
        %p368 = pneg %p214
        %p369 = pneg %p211
        %p370 = pneg %p235
        %p371 = pneg %p232
        %p372 = pneg %p256
        %p373 = pneg %p253
        %p374 = pneg %p282
        %p375 = pneg %p279
        %s376 = sand.u32 %s269, 1
        %s377 = scalar_lea.sflag [#allocation3], %s376
        %s378 = sand.u32 %s269, 1
        %s379 = smul.addr %s378, 8
        %s380 = scalar_lea.vmem [#allocation2], %s379
        %s381 = smul.u32 8, %s25
        %p382 = scmp.lt.s32.totalorder %s381, 15
        %s383 = scalar_select %p382, %s381, 15
        %s384 = smul.addr %s383, 8
        %s385 = scalar_lea.vmem %s0, %s384
        %s386 = smul.u32 8, %s25
        %v387 = vld [vmem:[%s10] sm:$0x1]
        %v388 = vld [vmem:[%s10 + $0x1] sm:$0x1]
        %v389 = vld [vmem:[%s10 + $0x2] sm:$0x1]
        %v390 = vld [vmem:[%s10 + $0x3] sm:$0x1]
        %v391 = vld [vmem:[%s10 + $0x4] sm:$0x1]
        %v392 = vld [vmem:[%s10 + $0x5] sm:$0x1]
        %v393 = vld [vmem:[%s10 + $0x6] sm:$0x1]
        %v394 = vld [vmem:[%s10 + $0x7] sm:$0x1]
        %v395 = vld [vmem:[%s10 + $0x8] sm:$0x1]
        %v396 = vld [vmem:[%s10 + $0x9] sm:$0x1]
        %v397 = vld [vmem:[%s10 + $0xa] sm:$0x1]
        %v398 = vld [vmem:[%s10 + $0xb] sm:$0x1]
        %v399 = vld [vmem:[%s385] sm:$0xff]
        %v400 = vld [vmem:[%s385 + $0x8] sm:$0xff]
        %v401 = vld [vmem:[%s385 + $0x10] sm:$0xff]
        %v402 = vld [vmem:[%s385 + $0x18] sm:$0xff]
        %v403 = vld [vmem:[%s385 + $0x20] sm:$0xff]
        %v404 = vld [vmem:[%s385 + $0x28] sm:$0xff]
        %v405 = vld [vmem:[%s385 + $0x30] sm:$0xff]
        %v406 = vld [vmem:[%s385 + $0x38] sm:$0xff]
        %v407 = vld [vmem:[%s1] sm:$0xff]
        %v408 = vadd.f32 %v399, %v407
        %v409 = vadd.f32 %v400, %v407
        %v410 = vadd.f32 %v401, %v407
        %v411 = vadd.f32 %v402, %v407
        %v412 = vadd.f32 %v403, %v407
        %v413 = vadd.f32 %v404, %v407
        %v414 = vadd.f32 %v405, %v407
        %v415 = vadd.f32 %v406, %v407
        %v416 = vld [vmem:[%s2] sm:$0xff]
        %v417 = vld [vmem:[%s2 + $0x8] sm:$0xff]
        %v418 = vld [vmem:[%s2 + $0x10] sm:$0xff]
        %v419 = vld [vmem:[%s2 + $0x18] sm:$0xff]
        %v420 = vlaneseq
        %v421 = vshrl.u32 %v420, 7
        %v422 = vsub.s32 0, %v421
        %v423 = vrot.slane %v391, %v422
        %vm424 = vcmask 261120
        %v426 = vsel %vm424, %v408, 0
        %v429 = vsel %vm424, %v409, 0
        %v432 = vsel %vm424, %v410, 0
        %v435 = vsel %vm424, %v411, 0
        %v438 = vsel %vm424, %v412, 0
        %v441 = vsel %vm424, %v413, 0
        %v444 = vsel %vm424, %v414, 0
        %v447 = vsel %vm424, %v415, 0
        %449 = vmatprep.subr.mxu0 0.0
        %450 = vmatpush1.msra.mxu0 %v416
        %451 = vmatprep.subr.mxu0 0.0
        %452 = vmatpush1.msra.mxu0 %v417
        %453 = vmatprep.subr.mxu0 0.0
        %454 = vmatpush1.msra.mxu0 %v418
        %455 = vmatprep.subr.mxu0 0.0
        %456 = vmatpush1.msra.mxu0 %v419
        %457 = vmatprep.subr.mxu0 0.0
        %458 = vmatpush1.msra.mxu0 0.0
        %459 = vmatprep.subr.mxu0 0.0
        %460 = vmatpush1.msra.mxu0 0.0
        %461 = vmatprep.subr.mxu0 0.0
        %462 = vmatpush1.msra.mxu0 0.0
        %463 = vmatprep.subr.mxu0 0.0
        %464 = vmatpush1.msra.mxu0 0.0
        %465 = vmatprep.subr.mxu0 0.0
        %466 = vmatpush1.msra.mxu0 0.0
        %467 = vmatprep.subr.mxu0 0.0
        %468 = vmatpush1.msra.mxu0 0.0
        %469 = vmatprep.subr.mxu0 0.0
        %470 = vmatpush1.msra.mxu0 0.0
        %471 = vmatprep.subr.mxu0 0.0
        %472 = vmatpush1.msra.mxu0 0.0
        %473 = vmatprep.subr.mxu0 0.0
        %474 = vmatpush1.msra.mxu0 0.0
        %475 = vmatprep.subr.mxu0 0.0
        %476 = vmatpush1.msra.mxu0 0.0
        %477 = vmatprep.subr.mxu0 0.0
        %478 = vmatpush1.msra.mxu0 0.0
        %479 = vmatprep.subr.mxu0 0.0
        %480 = vmatpush1.msra.mxu0 0.0
        %481 = vmatprep.subr.mxu0 0.0
        %482 = vmatpush1.msra.mxu0 0.0
        %483 = vmatprep.subr.mxu0 0.0
        %484 = vmatpush1.msra.mxu0 0.0
        %485 = vmatprep.subr.mxu0 0.0
        %486 = vmatpush1.msra.mxu0 0.0
        %487 = vmatprep.subr.mxu0 0.0
        %488 = vmatpush1.msra.mxu0 0.0
        %489 = vmatprep.subr.mxu0 0.0
        %490 = vmatpush1.msra.mxu0 0.0
        %491 = vmatprep.subr.mxu0 0.0
        %492 = vmatpush1.msra.mxu0 0.0
        %493 = vmatprep.subr.mxu0 0.0
        %494 = vmatpush1.msra.mxu0 0.0
        %495 = vmatprep.subr.mxu0 0.0
        %496 = vmatpush1.msra.mxu0 0.0
        %497 = vmatprep.subr.mxu0 0.0
        %498 = vmatpush1.msra.mxu0 0.0
        %499 = vmatprep.subr.mxu0 0.0
        %500 = vmatpush1.msra.mxu0 0.0
        %501 = vmatprep.subr.mxu0 0.0
        %502 = vmatpush1.msra.mxu0 0.0
        %503 = vmatprep.subr.mxu0 0.0
        %504 = vmatpush1.msra.mxu0 0.0
        %505 = vmatprep.subr.mxu0 0.0
        %506 = vmatpush1.msra.mxu0 0.0
        %507 = vmatprep.subr.mxu0 0.0
        %508 = vmatpush1.msra.mxu0 0.0
        %509 = vmatprep.subr.mxu0 0.0
        %510 = vmatpush1.msra.mxu0 0.0
        %511 = vmatprep.subr.mxu0 0.0
        %512 = vmatpush1.msra.mxu0 0.0
        %513 = vmatprep.mubr.f32.mxu0 0.0
        %514 = vmatmul.mubr.f32.gmra.mrb[0].mxu0 %v426
        %v515 = vpop.f32.mrb[0].mxu0
        %v516 = vadd.f32 %v423, %v515
        %v517 = vpop.f32.mrb[0].mxu0
        %518 = vmatprep.mubr.f32.mxu0 0.0
        %519 = vmatmul.mubr.f32.gmra.mrb[0].mxu0 %v429
        %v520 = vpop.f32.mrb[0].mxu0
        %v521 = vadd.f32 %v423, %v520
        %v522 = vpop.f32.mrb[0].mxu0
        %523 = vmatprep.mubr.f32.mxu0 0.0
        %524 = vmatmul.mubr.f32.gmra.mrb[0].mxu0 %v432
        %v525 = vpop.f32.mrb[0].mxu0
        %v526 = vadd.f32 %v423, %v525
        %v527 = vpop.f32.mrb[0].mxu0
        %528 = vmatprep.mubr.f32.mxu0 0.0
        %529 = vmatmul.mubr.f32.gmra.mrb[0].mxu0 %v435
        %v530 = vpop.f32.mrb[0].mxu0
        %v531 = vadd.f32 %v423, %v530
        %v532 = vpop.f32.mrb[0].mxu0
        %533 = vmatprep.mubr.f32.mxu0 0.0
        %534 = vmatmul.mubr.f32.gmra.mrb[0].mxu0 %v438
        %v535 = vpop.f32.mrb[0].mxu0
        %v536 = vadd.f32 %v423, %v535
        %v537 = vpop.f32.mrb[0].mxu0
        %538 = vmatprep.mubr.f32.mxu0 0.0
        %539 = vmatmul.mubr.f32.gmra.mrb[0].mxu0 %v441
        %v540 = vpop.f32.mrb[0].mxu0
        %v541 = vadd.f32 %v423, %v540
        %v542 = vpop.f32.mrb[0].mxu0
        %543 = vmatprep.mubr.f32.mxu0 0.0
        %544 = vmatmul.mubr.f32.gmra.mrb[0].mxu0 %v444
        %v545 = vpop.f32.mrb[0].mxu0
        %v546 = vadd.f32 %v423, %v545
        %v547 = vpop.f32.mrb[0].mxu0
        %548 = vmatprep.mubr.f32.mxu0 0.0
        %549 = vmatmul.mubr.f32.gmra.mrb[0].mxu0 %v447
        %v550 = vpop.f32.mrb[0].mxu0
        %v551 = vadd.f32 %v423, %v550
        %v552 = vpop.f32.mrb[0].mxu0
        %553 = vdwg.mxu0
        %v554 = vld [vmem:[%s3] sm:$0xff]
        %v555 = vld [vmem:[%s3 + $0x8] sm:$0xff]
        %v556 = vld [vmem:[%s3 + $0x10] sm:$0xff]
        %v557 = vld [vmem:[%s3 + $0x18] sm:$0xff]
        %v558 = vlaneseq
        %v559 = vshrl.u32 %v558, 7
        %v560 = vsub.s32 0, %v559
        %v561 = vrot.slane %v392, %v560
        %562 = vmatprep.subr.mxu0 0.0
        %563 = vmatpush1.msra.mxu0 %v554
        %564 = vmatprep.subr.mxu0 0.0
        %565 = vmatpush1.msra.mxu0 %v555
        %566 = vmatprep.subr.mxu0 0.0
        %567 = vmatpush1.msra.mxu0 %v556
        %568 = vmatprep.subr.mxu0 0.0
        %569 = vmatpush1.msra.mxu0 %v557
        %570 = vmatprep.subr.mxu0 0.0
        %571 = vmatpush1.msra.mxu0 0.0
        %572 = vmatprep.subr.mxu0 0.0
        %573 = vmatpush1.msra.mxu0 0.0
        %574 = vmatprep.subr.mxu0 0.0
        %575 = vmatpush1.msra.mxu0 0.0
        %576 = vmatprep.subr.mxu0 0.0
        %577 = vmatpush1.msra.mxu0 0.0
        %578 = vmatprep.subr.mxu0 0.0
        %579 = vmatpush1.msra.mxu0 0.0
        %580 = vmatprep.subr.mxu0 0.0
        %581 = vmatpush1.msra.mxu0 0.0
        %582 = vmatprep.subr.mxu0 0.0
        %583 = vmatpush1.msra.mxu0 0.0
        %584 = vmatprep.subr.mxu0 0.0
        %585 = vmatpush1.msra.mxu0 0.0
        %586 = vmatprep.subr.mxu0 0.0
        %587 = vmatpush1.msra.mxu0 0.0
        %588 = vmatprep.subr.mxu0 0.0
        %589 = vmatpush1.msra.mxu0 0.0
        %590 = vmatprep.subr.mxu0 0.0
        %591 = vmatpush1.msra.mxu0 0.0
        %592 = vmatprep.subr.mxu0 0.0
        %593 = vmatpush1.msra.mxu0 0.0
        %594 = vmatprep.subr.mxu0 0.0
        %595 = vmatpush1.msra.mxu0 0.0
        %596 = vmatprep.subr.mxu0 0.0
        %597 = vmatpush1.msra.mxu0 0.0
        %598 = vmatprep.subr.mxu0 0.0
        %599 = vmatpush1.msra.mxu0 0.0
        %600 = vmatprep.subr.mxu0 0.0
        %601 = vmatpush1.msra.mxu0 0.0
        %602 = vmatprep.subr.mxu0 0.0
        %603 = vmatpush1.msra.mxu0 0.0
        %604 = vmatprep.subr.mxu0 0.0
        %605 = vmatpush1.msra.mxu0 0.0
        %606 = vmatprep.subr.mxu0 0.0
        %607 = vmatpush1.msra.mxu0 0.0
        %608 = vmatprep.subr.mxu0 0.0
        %609 = vmatpush1.msra.mxu0 0.0
        %610 = vmatprep.subr.mxu0 0.0
        %611 = vmatpush1.msra.mxu0 0.0
        %612 = vmatprep.subr.mxu0 0.0
        %613 = vmatpush1.msra.mxu0 0.0
        %614 = vmatprep.subr.mxu0 0.0
        %615 = vmatpush1.msra.mxu0 0.0
        %616 = vmatprep.subr.mxu0 0.0
        %617 = vmatpush1.msra.mxu0 0.0
        %618 = vmatprep.subr.mxu0 0.0
        %619 = vmatpush1.msra.mxu0 0.0
        %620 = vmatprep.subr.mxu0 0.0
        %621 = vmatpush1.msra.mxu0 0.0
        %622 = vmatprep.subr.mxu0 0.0
        %623 = vmatpush1.msra.mxu0 0.0
        %624 = vmatprep.subr.mxu0 0.0
        %625 = vmatpush1.msra.mxu0 0.0
        %626 = vmatprep.mubr.f32.mxu0 0.0
        %627 = vmatmul.mubr.f32.gmra.mrb[0].mxu0 %v426
        %v628 = vpop.f32.mrb[0].mxu0
        %v629 = vadd.f32 %v561, %v628
        %v630 = vpop.f32.mrb[0].mxu0
        %631 = vmatprep.mubr.f32.mxu0 0.0
        %632 = vmatmul.mubr.f32.gmra.mrb[0].mxu0 %v429
        %v633 = vpop.f32.mrb[0].mxu0
        %v634 = vadd.f32 %v561, %v633
        %v635 = vpop.f32.mrb[0].mxu0
        %636 = vmatprep.mubr.f32.mxu0 0.0
        %637 = vmatmul.mubr.f32.gmra.mrb[0].mxu0 %v432
        %v638 = vpop.f32.mrb[0].mxu0
        %v639 = vadd.f32 %v561, %v638
        %v640 = vpop.f32.mrb[0].mxu0
        %641 = vmatprep.mubr.f32.mxu0 0.0
        %642 = vmatmul.mubr.f32.gmra.mrb[0].mxu0 %v435
        %v643 = vpop.f32.mrb[0].mxu0
        %v644 = vadd.f32 %v561, %v643
        %v645 = vpop.f32.mrb[0].mxu0
        %646 = vmatprep.mubr.f32.mxu0 0.0
        %647 = vmatmul.mubr.f32.gmra.mrb[0].mxu0 %v438
        %v648 = vpop.f32.mrb[0].mxu0
        %v649 = vadd.f32 %v561, %v648
        %v650 = vpop.f32.mrb[0].mxu0
        %651 = vmatprep.mubr.f32.mxu0 0.0
        %652 = vmatmul.mubr.f32.gmra.mrb[0].mxu0 %v441
        %v653 = vpop.f32.mrb[0].mxu0
        %v654 = vadd.f32 %v561, %v653
        %v655 = vpop.f32.mrb[0].mxu0
        %656 = vmatprep.mubr.f32.mxu0 0.0
        %657 = vmatmul.mubr.f32.gmra.mrb[0].mxu0 %v444
        %v658 = vpop.f32.mrb[0].mxu0
        %v659 = vadd.f32 %v561, %v658
        %v660 = vpop.f32.mrb[0].mxu0
        %661 = vmatprep.mubr.f32.mxu0 0.0
        %662 = vmatmul.mubr.f32.gmra.mrb[0].mxu0 %v447
        %v663 = vpop.f32.mrb[0].mxu0
        %v664 = vadd.f32 %v561, %v663
        %v665 = vpop.f32.mrb[0].mxu0
        %666 = vdwg.mxu0
        %v667 = vlaneseq
        %v668 = vshrl.u32 %v667, 7
        %v669 = vsub.s32 0, %v668
        %v670 = vrot.slane %v387, %v669
        %v671 = vmul.f32 %v516, %v670
        %v672 = vmul.f32 %v521, %v670
        %v673 = vmul.f32 %v526, %v670
        %v674 = vmul.f32 %v531, %v670
        %v675 = vmul.f32 %v536, %v670
        %v676 = vmul.f32 %v541, %v670
        %v677 = vmul.f32 %v546, %v670
        %v678 = vmul.f32 %v551, %v670
        %v679 = vsel %vm424, %v671, 0.0
        %680 = vadd.xlane.f32.xlu0 %v679
        %v681 = vpop.xlane.xlu0 %680
        %v682 = vsel %vm424, %v672, 0.0
        %683 = vadd.xlane.f32.xlu0 %v682
        %v684 = vpop.xlane.xlu0 %683
        %v685 = vsel %vm424, %v673, 0.0
        %686 = vadd.xlane.f32.xlu0 %v685
        %v687 = vpop.xlane.xlu0 %686
        %v688 = vsel %vm424, %v674, 0.0
        %689 = vadd.xlane.f32.xlu0 %v688
        %v690 = vpop.xlane.xlu0 %689
        %v691 = vsel %vm424, %v675, 0.0
        %692 = vadd.xlane.f32.xlu0 %v691
        %v693 = vpop.xlane.xlu0 %692
        %v694 = vsel %vm424, %v676, 0.0
        %695 = vadd.xlane.f32.xlu0 %v694
        %v696 = vpop.xlane.xlu0 %695
        %v697 = vsel %vm424, %v677, 0.0
        %698 = vadd.xlane.f32.xlu0 %v697
        %v699 = vpop.xlane.xlu0 %698
        %v700 = vsel %vm424, %v678, 0.0
        %701 = vadd.xlane.f32.xlu0 %v700
        %v702 = vpop.xlane.xlu0 %701
        %v703 = vrot.slane %v681, 4
        %v704 = vmax.f32 %v681, %v703
        %v705 = vrot.slane %v704, 2
        %v706 = vmax.f32 %v704, %v705
        %v707 = vrot.slane %v706, 1
        %v708 = vmax.f32 %v706, %v707
        %v709 = vrot.slane %v684, 4
        %v710 = vmax.f32 %v684, %v709
        %v711 = vrot.slane %v710, 2
        %v712 = vmax.f32 %v710, %v711
        %v713 = vrot.slane %v712, 1
        %v714 = vmax.f32 %v712, %v713
        %v715 = vrot.slane %v687, 4
        %v716 = vmax.f32 %v687, %v715
        %v717 = vrot.slane %v716, 2
        %v718 = vmax.f32 %v716, %v717
        %v719 = vrot.slane %v718, 1
        %v720 = vmax.f32 %v718, %v719
        %v721 = vrot.slane %v690, 4
        %v722 = vmax.f32 %v690, %v721
        %v723 = vrot.slane %v722, 2
        %v724 = vmax.f32 %v722, %v723
        %v725 = vrot.slane %v724, 1
        %v726 = vmax.f32 %v724, %v725
        %v727 = vrot.slane %v693, 4
        %v728 = vmax.f32 %v693, %v727
        %v729 = vrot.slane %v728, 2
        %v730 = vmax.f32 %v728, %v729
        %v731 = vrot.slane %v730, 1
        %v732 = vmax.f32 %v730, %v731
        %v733 = vrot.slane %v696, 4
        %v734 = vmax.f32 %v696, %v733
        %v735 = vrot.slane %v734, 2
        %v736 = vmax.f32 %v734, %v735
        %v737 = vrot.slane %v736, 1
        %v738 = vmax.f32 %v736, %v737
        %v739 = vrot.slane %v699, 4
        %v740 = vmax.f32 %v699, %v739
        %v741 = vrot.slane %v740, 2
        %v742 = vmax.f32 %v740, %v741
        %v743 = vrot.slane %v742, 1
        %v744 = vmax.f32 %v742, %v743
        %v745 = vrot.slane %v702, 4
        %v746 = vmax.f32 %v702, %v745
        %v747 = vrot.slane %v746, 2
        %v748 = vmax.f32 %v746, %v747
        %v749 = vrot.slane %v748, 1
        %v750 = vmax.f32 %v748, %v749
        %v751 = vmax.f32 %v708, %v390
        %v752 = vmax.f32 %v714, %v390
        %v753 = vmax.f32 %v720, %v390
        %v754 = vmax.f32 %v726, %v390
        %v755 = vmax.f32 %v732, %v390
        %v756 = vmax.f32 %v738, %v390
        %v757 = vmax.f32 %v744, %v390
        %v758 = vmax.f32 %v750, %v390
        %v759 = vlaneseq
        %v760 = vshrl.u32 %v759, 7
        %v761 = vsub.s32 0, %v760
        %v762 = vrot.slane %v751, %v761
        %v763 = vlaneseq
        %v764 = vshrl.u32 %v763, 7
        %v765 = vsub.s32 0, %v764
        %v766 = vrot.slane %v752, %v765
        %v767 = vlaneseq
        %v768 = vshrl.u32 %v767, 7
        %v769 = vsub.s32 0, %v768
        %v770 = vrot.slane %v753, %v769
        %v771 = vlaneseq
        %v772 = vshrl.u32 %v771, 7
        %v773 = vsub.s32 0, %v772
        %v774 = vrot.slane %v754, %v773
        %v775 = vlaneseq
        %v776 = vshrl.u32 %v775, 7
        %v777 = vsub.s32 0, %v776
        %v778 = vrot.slane %v755, %v777
        %v779 = vlaneseq
        %v780 = vshrl.u32 %v779, 7
        %v781 = vsub.s32 0, %v780
        %v782 = vrot.slane %v756, %v781
        %v783 = vlaneseq
        %v784 = vshrl.u32 %v783, 7
        %v785 = vsub.s32 0, %v784
        %v786 = vrot.slane %v757, %v785
        %v787 = vlaneseq
        %v788 = vshrl.u32 %v787, 7
        %v789 = vsub.s32 0, %v788
        %v790 = vrot.slane %v758, %v789
        %v791 = vsub.f32 %v681, %v762
        %v792 = vsub.f32 %v684, %v766
        %v793 = vsub.f32 %v687, %v770
        %v794 = vsub.f32 %v690, %v774
        %v795 = vsub.f32 %v693, %v778
        %v796 = vsub.f32 %v696, %v782
        %v797 = vsub.f32 %v699, %v786
        %v798 = vsub.f32 %v702, %v790
        %v799 = vmul.f32 %v791, 1.442695
        %v800 = vpow.pop %v799
        %v801 = vmul.f32 %v792, 1.442695
        %v802 = vpow.pop %v801
        %v803 = vmul.f32 %v793, 1.442695
        %v804 = vpow.pop %v803
        %v805 = vmul.f32 %v794, 1.442695
        %v806 = vpow.pop %v805
        %v807 = vmul.f32 %v795, 1.442695
        %v808 = vpow.pop %v807
        %v809 = vmul.f32 %v796, 1.442695
        %v810 = vpow.pop %v809
        %v811 = vmul.f32 %v797, 1.442695
        %v812 = vpow.pop %v811
        %v813 = vmul.f32 %v798, 1.442695
        %v814 = vpow.pop %v813
        %v815 = vsub.f32 %v390, %v751
        %v816 = vsub.f32 %v390, %v752
        %v817 = vsub.f32 %v390, %v753
        %v818 = vsub.f32 %v390, %v754
        %v819 = vsub.f32 %v390, %v755
        %v820 = vsub.f32 %v390, %v756
        %v821 = vsub.f32 %v390, %v757
        %v822 = vsub.f32 %v390, %v758
        %v823 = vmul.f32 %v815, 1.442695
        %v824 = vpow.pop %v823
        %v825 = vmul.f32 %v816, 1.442695
        %v826 = vpow.pop %v825
        %v827 = vmul.f32 %v817, 1.442695
        %v828 = vpow.pop %v827
        %v829 = vmul.f32 %v818, 1.442695
        %v830 = vpow.pop %v829
        %v831 = vmul.f32 %v819, 1.442695
        %v832 = vpow.pop %v831
        %v833 = vmul.f32 %v820, 1.442695
        %v834 = vpow.pop %v833
        %v835 = vmul.f32 %v821, 1.442695
        %v836 = vpow.pop %v835
        %v837 = vmul.f32 %v822, 1.442695
        %v838 = vpow.pop %v837
        %vm839 = vcmask 7168
        %v840 = vsel %vm839, %v800, 0.0
        %v841 = vrot.slane %v840, 4
        %v842 = vadd.f32 %v840, %v841
        %v843 = vrot.slane %v842, 2
        %v844 = vadd.f32 %v842, %v843
        %v845 = vrot.slane %v844, 1
        %v846 = vadd.f32 %v844, %v845
        %v847 = vsel %vm839, %v802, 0.0
        %v848 = vrot.slane %v847, 4
        %v849 = vadd.f32 %v847, %v848
        %v850 = vrot.slane %v849, 2
        %v851 = vadd.f32 %v849, %v850
        %v852 = vrot.slane %v851, 1
        %v853 = vadd.f32 %v851, %v852
        %v854 = vsel %vm839, %v804, 0.0
        %v855 = vrot.slane %v854, 4
        %v856 = vadd.f32 %v854, %v855
        %v857 = vrot.slane %v856, 2
        %v858 = vadd.f32 %v856, %v857
        %v859 = vrot.slane %v858, 1
        %v860 = vadd.f32 %v858, %v859
        %v861 = vsel %vm839, %v806, 0.0
        %v862 = vrot.slane %v861, 4
        %v863 = vadd.f32 %v861, %v862
        %v864 = vrot.slane %v863, 2
        %v865 = vadd.f32 %v863, %v864
        %v866 = vrot.slane %v865, 1
        %v867 = vadd.f32 %v865, %v866
        %v868 = vsel %vm839, %v808, 0.0
        %v869 = vrot.slane %v868, 4
        %v870 = vadd.f32 %v868, %v869
        %v871 = vrot.slane %v870, 2
        %v872 = vadd.f32 %v870, %v871
        %v873 = vrot.slane %v872, 1
        %v874 = vadd.f32 %v872, %v873
        %v875 = vsel %vm839, %v810, 0.0
        %v876 = vrot.slane %v875, 4
        %v877 = vadd.f32 %v875, %v876
        %v878 = vrot.slane %v877, 2
        %v879 = vadd.f32 %v877, %v878
        %v880 = vrot.slane %v879, 1
        %v881 = vadd.f32 %v879, %v880
        %v882 = vsel %vm839, %v812, 0.0
        %v883 = vrot.slane %v882, 4
        %v884 = vadd.f32 %v882, %v883
        %v885 = vrot.slane %v884, 2
        %v886 = vadd.f32 %v884, %v885
        %v887 = vrot.slane %v886, 1
        %v888 = vadd.f32 %v886, %v887
        %v889 = vsel %vm839, %v814, 0.0
        %v890 = vrot.slane %v889, 4
        %v891 = vadd.f32 %v889, %v890
        %v892 = vrot.slane %v891, 2
        %v893 = vadd.f32 %v891, %v892
        %v894 = vrot.slane %v893, 1
        %v895 = vadd.f32 %v893, %v894
        %v896 = vadd.f32 %v846, %v824
        %v897 = vadd.f32 %v853, %v826
        %v898 = vadd.f32 %v860, %v828
        %v899 = vadd.f32 %v867, %v830
        %v900 = vadd.f32 %v874, %v832
        %v901 = vadd.f32 %v881, %v834
        %v902 = vadd.f32 %v888, %v836
        %v903 = vadd.f32 %v895, %v838
        %905 = vset.pattern.permute.xlu0 0
        %906 = vperm.xlu0 %905, %v800
        %v907 = vpop.permute.xlu0 %906
        %910 = vset.pattern.permute.xlu0 0
        %911 = vperm.xlu0 %910, %v802
        %v912 = vpop.permute.xlu0 %911
        %915 = vset.pattern.permute.xlu0 0
        %916 = vperm.xlu0 %915, %v804
        %v917 = vpop.permute.xlu0 %916
        %920 = vset.pattern.permute.xlu0 0
        %921 = vperm.xlu0 %920, %v806
        %v922 = vpop.permute.xlu0 %921
        %925 = vset.pattern.permute.xlu0 0
        %926 = vperm.xlu0 %925, %v808
        %v927 = vpop.permute.xlu0 %926
        %930 = vset.pattern.permute.xlu0 0
        %931 = vperm.xlu0 %930, %v810
        %v932 = vpop.permute.xlu0 %931
        %935 = vset.pattern.permute.xlu0 0
        %936 = vperm.xlu0 %935, %v812
        %v937 = vpop.permute.xlu0 %936
        %940 = vset.pattern.permute.xlu0 0
        %941 = vperm.xlu0 %940, %v814
        %v942 = vpop.permute.xlu0 %941
        %v944 = vmul.f32 %v907, %v629
        %v945 = vmul.f32 %v912, %v634
        %v946 = vmul.f32 %v917, %v639
        %v947 = vmul.f32 %v922, %v644
        %v948 = vmul.f32 %v927, %v649
        %v949 = vmul.f32 %v932, %v654
        %v950 = vmul.f32 %v937, %v659
        %v951 = vmul.f32 %v942, %v664
        %v952 = vsel %vm424, %v944, 0.0
        %v953 = vrot.slane %v952, 4
        %v954 = vadd.f32 %v952, %v953
        %v955 = vrot.slane %v954, 2
        %v956 = vadd.f32 %v954, %v955
        %v957 = vrot.slane %v956, 1
        %v958 = vadd.f32 %v956, %v957
        %v959 = vsel %vm424, %v945, 0.0
        %v960 = vrot.slane %v959, 4
        %v961 = vadd.f32 %v959, %v960
        %v962 = vrot.slane %v961, 2
        %v963 = vadd.f32 %v961, %v962
        %v964 = vrot.slane %v963, 1
        %v965 = vadd.f32 %v963, %v964
        %v966 = vsel %vm424, %v946, 0.0
        %v967 = vrot.slane %v966, 4
        %v968 = vadd.f32 %v966, %v967
        %v969 = vrot.slane %v968, 2
        %v970 = vadd.f32 %v968, %v969
        %v971 = vrot.slane %v970, 1
        %v972 = vadd.f32 %v970, %v971
        %v973 = vsel %vm424, %v947, 0.0
        %v974 = vrot.slane %v973, 4
        %v975 = vadd.f32 %v973, %v974
        %v976 = vrot.slane %v975, 2
        %v977 = vadd.f32 %v975, %v976
        %v978 = vrot.slane %v977, 1
        %v979 = vadd.f32 %v977, %v978
        %v980 = vsel %vm424, %v948, 0.0
        %v981 = vrot.slane %v980, 4
        %v982 = vadd.f32 %v980, %v981
        %v983 = vrot.slane %v982, 2
        %v984 = vadd.f32 %v982, %v983
        %v985 = vrot.slane %v984, 1
        %v986 = vadd.f32 %v984, %v985
        %v987 = vsel %vm424, %v949, 0.0
        %v988 = vrot.slane %v987, 4
        %v989 = vadd.f32 %v987, %v988
        %v990 = vrot.slane %v989, 2
        %v991 = vadd.f32 %v989, %v990
        %v992 = vrot.slane %v991, 1
        %v993 = vadd.f32 %v991, %v992
        %v994 = vsel %vm424, %v950, 0.0
        %v995 = vrot.slane %v994, 4
        %v996 = vadd.f32 %v994, %v995
        %v997 = vrot.slane %v996, 2
        %v998 = vadd.f32 %v996, %v997
        %v999 = vrot.slane %v998, 1
        %v1000 = vadd.f32 %v998, %v999
        %v1001 = vsel %vm424, %v951, 0.0
        %v1002 = vrot.slane %v1001, 4
        %v1003 = vadd.f32 %v1001, %v1002
        %v1004 = vrot.slane %v1003, 2
        %v1005 = vadd.f32 %v1003, %v1004
        %v1006 = vrot.slane %v1005, 1
        %v1007 = vadd.f32 %v1005, %v1006
        %1009 = vset.pattern.permute.xlu0 0
        %1010 = vperm.xlu0 %1009, %v824
        %v1011 = vpop.permute.xlu0 %1010
        %1014 = vset.pattern.permute.xlu0 0
        %1015 = vperm.xlu0 %1014, %v826
        %v1016 = vpop.permute.xlu0 %1015
        %1019 = vset.pattern.permute.xlu0 0
        %1020 = vperm.xlu0 %1019, %v828
        %v1021 = vpop.permute.xlu0 %1020
        %1024 = vset.pattern.permute.xlu0 0
        %1025 = vperm.xlu0 %1024, %v830
        %v1026 = vpop.permute.xlu0 %1025
        %1029 = vset.pattern.permute.xlu0 0
        %1030 = vperm.xlu0 %1029, %v832
        %v1031 = vpop.permute.xlu0 %1030
        %1034 = vset.pattern.permute.xlu0 0
        %1035 = vperm.xlu0 %1034, %v834
        %v1036 = vpop.permute.xlu0 %1035
        %1039 = vset.pattern.permute.xlu0 0
        %1040 = vperm.xlu0 %1039, %v836
        %v1041 = vpop.permute.xlu0 %1040
        %1044 = vset.pattern.permute.xlu0 0
        %1045 = vperm.xlu0 %1044, %v838
        %v1046 = vpop.permute.xlu0 %1045
        %v1048 = vmul.f32 %v1011, %v388
        %v1049 = vmul.f32 %v1016, %v388
        %v1050 = vmul.f32 %v1021, %v388
        %v1051 = vmul.f32 %v1026, %v388
        %v1052 = vmul.f32 %v1031, %v388
        %v1053 = vmul.f32 %v1036, %v388
        %v1054 = vmul.f32 %v1041, %v388
        %v1055 = vmul.f32 %v1046, %v388
        %v1056 = vadd.f32 %v958, %v1048
        %v1057 = vadd.f32 %v965, %v1049
        %v1058 = vadd.f32 %v972, %v1050
        %v1059 = vadd.f32 %v979, %v1051
        %v1060 = vadd.f32 %v986, %v1052
        %v1061 = vadd.f32 %v993, %v1053
        %v1062 = vadd.f32 %v1000, %v1054
        %v1063 = vadd.f32 %v1007, %v1055
        %1065 = vset.pattern.permute.xlu0 0
        %1066 = vperm.xlu0 %1065, %v896
        %v1067 = vpop.permute.xlu0 %1066
        %1070 = vset.pattern.permute.xlu0 0
        %1071 = vperm.xlu0 %1070, %v897
        %v1072 = vpop.permute.xlu0 %1071
        %1075 = vset.pattern.permute.xlu0 0
        %1076 = vperm.xlu0 %1075, %v898
        %v1077 = vpop.permute.xlu0 %1076
        %1080 = vset.pattern.permute.xlu0 0
        %1081 = vperm.xlu0 %1080, %v899
        %v1082 = vpop.permute.xlu0 %1081
        %1085 = vset.pattern.permute.xlu0 0
        %1086 = vperm.xlu0 %1085, %v900
        %v1087 = vpop.permute.xlu0 %1086
        %1090 = vset.pattern.permute.xlu0 0
        %1091 = vperm.xlu0 %1090, %v901
        %v1092 = vpop.permute.xlu0 %1091
        %1095 = vset.pattern.permute.xlu0 0
        %1096 = vperm.xlu0 %1095, %v902
        %v1097 = vpop.permute.xlu0 %1096
        %1100 = vset.pattern.permute.xlu0 0
        %1101 = vperm.xlu0 %1100, %v903
        %v1102 = vpop.permute.xlu0 %1101
        %v1104 = vrcp.pop %v1067
        %v1105 = vmul.f32 %v1056, %v1104
        %v1106 = vrcp.pop %v1072
        %v1107 = vmul.f32 %v1057, %v1106
        %v1108 = vrcp.pop %v1077
        %v1109 = vmul.f32 %v1058, %v1108
        %v1110 = vrcp.pop %v1082
        %v1111 = vmul.f32 %v1059, %v1110
        %v1112 = vrcp.pop %v1087
        %v1113 = vmul.f32 %v1060, %v1112
        %v1114 = vrcp.pop %v1092
        %v1115 = vmul.f32 %v1061, %v1114
        %v1116 = vrcp.pop %v1097
        %v1117 = vmul.f32 %v1062, %v1116
        %v1118 = vrcp.pop %v1102
        %v1119 = vmul.f32 %v1063, %v1118
        %v1120 = vld [vmem:[%s4] sm:$0xff]
        %v1121 = vld [vmem:[%s4 + $0x8] sm:$0xff]
        %v1122 = vld [vmem:[%s4 + $0x10] sm:$0xff]
        %v1123 = vld [vmem:[%s4 + $0x18] sm:$0xff]
        %v1124 = vlaneseq
        %v1125 = vshrl.u32 %v1124, 7
        %v1126 = vsub.s32 0, %v1125
        %v1127 = vrot.slane %v393, %v1126
        %v1136 = vrot.slane %v1107, 7
        %vm1137 = vcmask 1041409
        %v1138 = vsel %vm1137, %v1136, %v1105
        %v1139 = vrot.slane %v1109, 6
        %vm1140 = vcmask 1042434
        %v1141 = vsel %vm1140, %v1139, %v1138
        %v1142 = vrot.slane %v1111, 5
        %vm1143 = vcmask 1043459
        %v1144 = vsel %vm1143, %v1142, %v1141
        %v1145 = vrot.slane %v1113, 4
        %vm1146 = vcmask 1044484
        %v1147 = vsel %vm1146, %v1145, %v1144
        %v1148 = vrot.slane %v1115, 3
        %vm1149 = vcmask 1045509
        %v1150 = vsel %vm1149, %v1148, %v1147
        %v1151 = vrot.slane %v1117, 2
        %vm1152 = vcmask 1046534
        %v1153 = vsel %vm1152, %v1151, %v1150
        %v1154 = vrot.slane %v1119, 1
        %vm1155 = vcmask 1047559
        %v1156 = vsel %vm1155, %v1154, %v1153
        %v1157 = vsel %vm424, %v1156, 0
        %1159 = vmatprep.subr.mxu0 0.0
        %1160 = vmatpush1.msra.mxu0 %v1120
        %1161 = vmatprep.subr.mxu0 0.0
        %1162 = vmatpush1.msra.mxu0 %v1121
        %1163 = vmatprep.subr.mxu0 0.0
        %1164 = vmatpush1.msra.mxu0 %v1122
        %1165 = vmatprep.subr.mxu0 0.0
        %1166 = vmatpush1.msra.mxu0 %v1123
        %1167 = vmatprep.subr.mxu0 0.0
        %1168 = vmatpush1.msra.mxu0 0.0
        %1169 = vmatprep.subr.mxu0 0.0
        %1170 = vmatpush1.msra.mxu0 0.0
        %1171 = vmatprep.subr.mxu0 0.0
        %1172 = vmatpush1.msra.mxu0 0.0
        %1173 = vmatprep.subr.mxu0 0.0
        %1174 = vmatpush1.msra.mxu0 0.0
        %1175 = vmatprep.subr.mxu0 0.0
        %1176 = vmatpush1.msra.mxu0 0.0
        %1177 = vmatprep.subr.mxu0 0.0
        %1178 = vmatpush1.msra.mxu0 0.0
        %1179 = vmatprep.subr.mxu0 0.0
        %1180 = vmatpush1.msra.mxu0 0.0
        %1181 = vmatprep.subr.mxu0 0.0
        %1182 = vmatpush1.msra.mxu0 0.0
        %1183 = vmatprep.subr.mxu0 0.0
        %1184 = vmatpush1.msra.mxu0 0.0
        %1185 = vmatprep.subr.mxu0 0.0
        %1186 = vmatpush1.msra.mxu0 0.0
        %1187 = vmatprep.subr.mxu0 0.0
        %1188 = vmatpush1.msra.mxu0 0.0
        %1189 = vmatprep.subr.mxu0 0.0
        %1190 = vmatpush1.msra.mxu0 0.0
        %1191 = vmatprep.subr.mxu0 0.0
        %1192 = vmatpush1.msra.mxu0 0.0
        %1193 = vmatprep.subr.mxu0 0.0
        %1194 = vmatpush1.msra.mxu0 0.0
        %1195 = vmatprep.subr.mxu0 0.0
        %1196 = vmatpush1.msra.mxu0 0.0
        %1197 = vmatprep.subr.mxu0 0.0
        %1198 = vmatpush1.msra.mxu0 0.0
        %1199 = vmatprep.subr.mxu0 0.0
        %1200 = vmatpush1.msra.mxu0 0.0
        %1201 = vmatprep.subr.mxu0 0.0
        %1202 = vmatpush1.msra.mxu0 0.0
        %1203 = vmatprep.subr.mxu0 0.0
        %1204 = vmatpush1.msra.mxu0 0.0
        %1205 = vmatprep.subr.mxu0 0.0
        %1206 = vmatpush1.msra.mxu0 0.0
        %1207 = vmatprep.subr.mxu0 0.0
        %1208 = vmatpush1.msra.mxu0 0.0
        %1209 = vmatprep.subr.mxu0 0.0
        %1210 = vmatpush1.msra.mxu0 0.0
        %1211 = vmatprep.subr.mxu0 0.0
        %1212 = vmatpush1.msra.mxu0 0.0
        %1213 = vmatprep.subr.mxu0 0.0
        %1214 = vmatpush1.msra.mxu0 0.0
        %1215 = vmatprep.subr.mxu0 0.0
        %1216 = vmatpush1.msra.mxu0 0.0
        %1217 = vmatprep.subr.mxu0 0.0
        %1218 = vmatpush1.msra.mxu0 0.0
        %1219 = vmatprep.subr.mxu0 0.0
        %1220 = vmatpush1.msra.mxu0 0.0
        %1221 = vmatprep.subr.mxu0 0.0
        %1222 = vmatpush1.msra.mxu0 0.0
        %1223 = vmatprep.mubr.f32.mxu0 0.0
        %1224 = vmatmul.mubr.f32.gmra.mrb[0].mxu0 %v1157
        %v1225 = vpop.f32.mrb[0].mxu0
        %v1226 = vadd.f32 %v1127, %v1225
        %v1227 = vpop.f32.mrb[0].mxu0
        %1228 = vdwg.mxu0
        %v1229 = vlaneseq
        %v1230 = vshrl.u32 %v1229, 7
        %v1231 = vsub.s32 0, %v1230
        %v1232 = vrot.slane %v389, %v1231
        %v1233 = vadd.f32 %v1232, %v1226
        %v1234 = vsel %vm424, %v1233, 0.0
        %1235 = vadd.xlane.f32.xlu0 %v1234
        %v1236 = vpop.xlane.xlu0 %1235
        %v1237 = vrcp.pop 32.0
        %v1238 = vmul.f32 %v1236, %v1237
        %v1239 = vsub.f32 %v1233, %v1238
        %v1240 = vmul.f32 %v1239, %v1239
        %v1241 = vsel %vm424, %v1240, 0.0
        %1242 = vadd.xlane.f32.xlu0 %v1241
        %v1243 = vpop.xlane.xlu0 %1242
        %v1244 = vmul.f32 %v1243, %v1237
        %v1245 = vadd.f32 %v1244, 1e-05
        %v1246 = vrsqrt.pop %v1245
        %v1247 = vmul.f32 %v1239, %v1246
        %v1248 = vlaneseq
        %v1249 = vshrl.u32 %v1248, 7
        %v1250 = vsub.s32 0, %v1249
        %v1251 = vrot.slane %v394, %v1250
        %v1252 = vmul.f32 %v1247, %v1251
        %v1253 = vlaneseq
        %v1254 = vshrl.u32 %v1253, 7
        %v1255 = vsub.s32 0, %v1254
        %v1256 = vrot.slane %v395, %v1255
        %v1257 = vadd.f32 %v1252, %v1256
        %v1258 = vld [vmem:[%s5] sm:$0xff]
        %v1259 = vld [vmem:[%s5 + $0x8] sm:$0xff]
        %v1260 = vld [vmem:[%s5 + $0x10] sm:$0xff]
        %v1261 = vld [vmem:[%s5 + $0x18] sm:$0xff]
        %v1262 = vld [vmem:[%s5 + $0x80] sm:$0xff]
        %v1263 = vld [vmem:[%s5 + $0x88] sm:$0xff]
        %v1264 = vld [vmem:[%s5 + $0x90] sm:$0xff]
        %v1265 = vld [vmem:[%s5 + $0x98] sm:$0xff]
        %v1266 = vld [vmem:[%s5 + $0x100] sm:$0xff]
        %v1267 = vld [vmem:[%s5 + $0x108] sm:$0xff]
        %v1268 = vld [vmem:[%s5 + $0x110] sm:$0xff]
        %v1269 = vld [vmem:[%s5 + $0x118] sm:$0xff]
        %v1270 = vld [vmem:[%s5 + $0x180] sm:$0xff]
        %v1271 = vld [vmem:[%s5 + $0x188] sm:$0xff]
        %v1272 = vld [vmem:[%s5 + $0x190] sm:$0xff]
        %v1273 = vld [vmem:[%s5 + $0x198] sm:$0xff]
        %v1274 = vld [vmem:[%s6] sm:$0xf]
        %v1276 = vlaneseq
        %v1277 = vshrl.u32 %v1276, 7
        %v1278 = vsub.s32 0, %v1277
        %v1279 = vrot.slane %v1274, %v1278
        %v1280 = vlaneseq
        %v1281 = vshrl.u32 %v1280, 7
        %v1282 = vsub.s32 1, %v1281
        %v1283 = vrot.slane %v1274, %v1282
        %v1284 = vlaneseq
        %v1285 = vshrl.u32 %v1284, 7
        %v1286 = vsub.s32 2, %v1285
        %v1287 = vrot.slane %v1274, %v1286
        %v1288 = vlaneseq
        %v1289 = vshrl.u32 %v1288, 7
        %v1290 = vsub.s32 3, %v1289
        %v1291 = vrot.slane %v1274, %v1290
        %v1297 = vsel %vm424, %v1257, 0
        %1299 = vmatprep.subr.mxu0 %v1259
        %1300 = vmatpush1.msra.mxu0 %v1258
        %1301 = vmatprep.subr.mxu0 %v1263
        %1302 = vmatpush1.msra.mxu0 %v1262
        %1303 = vmatprep.subr.mxu0 %v1267
        %1304 = vmatpush1.msra.mxu0 %v1266
        %1305 = vmatprep.subr.mxu0 %v1271
        %1306 = vmatpush1.msra.mxu0 %v1270
        %1307 = vmatprep.subr.mxu0 0.0
        %1308 = vmatpush1.msra.mxu0 0.0
        %1309 = vmatprep.subr.mxu0 0.0
        %1310 = vmatpush1.msra.mxu0 0.0
        %1311 = vmatprep.subr.mxu0 0.0
        %1312 = vmatpush1.msra.mxu0 0.0
        %1313 = vmatprep.subr.mxu0 0.0
        %1314 = vmatpush1.msra.mxu0 0.0
        %1315 = vmatprep.subr.mxu0 0.0
        %1316 = vmatpush1.msra.mxu0 0.0
        %1317 = vmatprep.subr.mxu0 0.0
        %1318 = vmatpush1.msra.mxu0 0.0
        %1319 = vmatprep.subr.mxu0 0.0
        %1320 = vmatpush1.msra.mxu0 0.0
        %1321 = vmatprep.subr.mxu0 0.0
        %1322 = vmatpush1.msra.mxu0 0.0
        %1323 = vmatprep.subr.mxu0 0.0
        %1324 = vmatpush1.msra.mxu0 0.0
        %1325 = vmatprep.subr.mxu0 0.0
        %1326 = vmatpush1.msra.mxu0 0.0
        %1327 = vmatprep.subr.mxu0 0.0
        %1328 = vmatpush1.msra.mxu0 0.0
        %1329 = vmatprep.subr.mxu0 0.0
        %1330 = vmatpush1.msra.mxu0 0.0
        %1331 = vmatprep.subr.mxu0 0.0
        %1332 = vmatpush1.msra.mxu0 0.0
        %1333 = vmatprep.subr.mxu0 0.0
        %1334 = vmatpush1.msra.mxu0 0.0
        %1335 = vmatprep.subr.mxu0 0.0
        %1336 = vmatpush1.msra.mxu0 0.0
        %1337 = vmatprep.subr.mxu0 0.0
        %1338 = vmatpush1.msra.mxu0 0.0
        %1339 = vmatprep.subr.mxu0 0.0
        %1340 = vmatpush1.msra.mxu0 0.0
        %1341 = vmatprep.subr.mxu0 0.0
        %1342 = vmatpush1.msra.mxu0 0.0
        %1343 = vmatprep.subr.mxu0 0.0
        %1344 = vmatpush1.msra.mxu0 0.0
        %1345 = vmatprep.subr.mxu0 0.0
        %1346 = vmatpush1.msra.mxu0 0.0
        %1347 = vmatprep.subr.mxu0 0.0
        %1348 = vmatpush1.msra.mxu0 0.0
        %1349 = vmatprep.subr.mxu0 0.0
        %1350 = vmatpush1.msra.mxu0 0.0
        %1351 = vmatprep.subr.mxu0 0.0
        %1352 = vmatpush1.msra.mxu0 0.0
        %1353 = vmatprep.subr.mxu0 0.0
        %1354 = vmatpush1.msra.mxu0 0.0
        %1355 = vmatprep.subr.mxu0 0.0
        %1356 = vmatpush1.msra.mxu0 0.0
        %1357 = vmatprep.subr.mxu0 0.0
        %1358 = vmatpush1.msra.mxu0 0.0
        %1359 = vmatprep.subr.mxu0 0.0
        %1360 = vmatpush1.msra.mxu0 0.0
        %1361 = vmatprep.subr.mxu0 0.0
        %1362 = vmatpush1.msra.mxu0 0.0
        %1363 = vmatprep.mubr.f32.mxu0 0.0
        %1364 = vmatmul.mubr.f32.gmra.mrb[0].mxu0 %v1297
        %v1365 = vpop.f32.mrb[0].mxu0
        %v1366 = vadd.f32 %v1279, %v1365
        %v1367 = vpop.f32.mrb[0].mxu0
        %v1368 = vadd.f32 %v1283, %v1367
        %1369 = vdwg.mxu0
        %1370 = vmatprep.subr.mxu0 %v1261
        %1371 = vmatpush1.msra.mxu0 %v1260
        %1372 = vmatprep.subr.mxu0 %v1265
        %1373 = vmatpush1.msra.mxu0 %v1264
        %1374 = vmatprep.subr.mxu0 %v1269
        %1375 = vmatpush1.msra.mxu0 %v1268
        %1376 = vmatprep.subr.mxu0 %v1273
        %1377 = vmatpush1.msra.mxu0 %v1272
        %1378 = vmatprep.subr.mxu0 0.0
        %1379 = vmatpush1.msra.mxu0 0.0
        %1380 = vmatprep.subr.mxu0 0.0
        %1381 = vmatpush1.msra.mxu0 0.0
        %1382 = vmatprep.subr.mxu0 0.0
        %1383 = vmatpush1.msra.mxu0 0.0
        %1384 = vmatprep.subr.mxu0 0.0
        %1385 = vmatpush1.msra.mxu0 0.0
        %1386 = vmatprep.subr.mxu0 0.0
        %1387 = vmatpush1.msra.mxu0 0.0
        %1388 = vmatprep.subr.mxu0 0.0
        %1389 = vmatpush1.msra.mxu0 0.0
        %1390 = vmatprep.subr.mxu0 0.0
        %1391 = vmatpush1.msra.mxu0 0.0
        %1392 = vmatprep.subr.mxu0 0.0
        %1393 = vmatpush1.msra.mxu0 0.0
        %1394 = vmatprep.subr.mxu0 0.0
        %1395 = vmatpush1.msra.mxu0 0.0
        %1396 = vmatprep.subr.mxu0 0.0
        %1397 = vmatpush1.msra.mxu0 0.0
        %1398 = vmatprep.subr.mxu0 0.0
        %1399 = vmatpush1.msra.mxu0 0.0
        %1400 = vmatprep.subr.mxu0 0.0
        %1401 = vmatpush1.msra.mxu0 0.0
        %1402 = vmatprep.subr.mxu0 0.0
        %1403 = vmatpush1.msra.mxu0 0.0
        %1404 = vmatprep.subr.mxu0 0.0
        %1405 = vmatpush1.msra.mxu0 0.0
        %1406 = vmatprep.subr.mxu0 0.0
        %1407 = vmatpush1.msra.mxu0 0.0
        %1408 = vmatprep.subr.mxu0 0.0
        %1409 = vmatpush1.msra.mxu0 0.0
        %1410 = vmatprep.subr.mxu0 0.0
        %1411 = vmatpush1.msra.mxu0 0.0
        %1412 = vmatprep.subr.mxu0 0.0
        %1413 = vmatpush1.msra.mxu0 0.0
        %1414 = vmatprep.subr.mxu0 0.0
        %1415 = vmatpush1.msra.mxu0 0.0
        %1416 = vmatprep.subr.mxu0 0.0
        %1417 = vmatpush1.msra.mxu0 0.0
        %1418 = vmatprep.subr.mxu0 0.0
        %1419 = vmatpush1.msra.mxu0 0.0
        %1420 = vmatprep.subr.mxu0 0.0
        %1421 = vmatpush1.msra.mxu0 0.0
        %1422 = vmatprep.subr.mxu0 0.0
        %1423 = vmatpush1.msra.mxu0 0.0
        %1424 = vmatprep.subr.mxu0 0.0
        %1425 = vmatpush1.msra.mxu0 0.0
        %1426 = vmatprep.subr.mxu0 0.0
        %1427 = vmatpush1.msra.mxu0 0.0
        %1428 = vmatprep.subr.mxu0 0.0
        %1429 = vmatpush1.msra.mxu0 0.0
        %1430 = vmatprep.subr.mxu0 0.0
        %1431 = vmatpush1.msra.mxu0 0.0
        %1432 = vmatprep.subr.mxu0 0.0
        %1433 = vmatpush1.msra.mxu0 0.0
        %1434 = vmatprep.mubr.f32.mxu0 0.0
        %1435 = vmatmul.mubr.f32.gmra.mrb[0].mxu0 %v1297
        %v1436 = vpop.f32.mrb[0].mxu0
        %v1437 = vadd.f32 %v1287, %v1436
        %v1438 = vpop.f32.mrb[0].mxu0
        %v1439 = vadd.f32 %v1291, %v1438
        %1440 = vdwg.mxu0
        %v1441 = vmax.f32 %v1366, 0.0
        %v1442 = vmax.f32 %v1368, 0.0
        %v1443 = vmax.f32 %v1437, 0.0
        %v1444 = vmax.f32 %v1439, 0.0
        %v1445 = vld [vmem:[%s7] sm:$0xff]
        %v1446 = vld [vmem:[%s7 + $0x8] sm:$0xff]
        %v1447 = vld [vmem:[%s7 + $0x10] sm:$0xff]
        %v1448 = vld [vmem:[%s7 + $0x18] sm:$0xff]
        %v1449 = vld [vmem:[%s7 + $0x20] sm:$0xff]
        %v1450 = vld [vmem:[%s7 + $0x28] sm:$0xff]
        %v1451 = vld [vmem:[%s7 + $0x30] sm:$0xff]
        %v1452 = vld [vmem:[%s7 + $0x38] sm:$0xff]
        %v1453 = vld [vmem:[%s7 + $0x40] sm:$0xff]
        %v1454 = vld [vmem:[%s7 + $0x48] sm:$0xff]
        %v1455 = vld [vmem:[%s7 + $0x50] sm:$0xff]
        %v1456 = vld [vmem:[%s7 + $0x58] sm:$0xff]
        %v1457 = vld [vmem:[%s7 + $0x60] sm:$0xff]
        %v1458 = vld [vmem:[%s7 + $0x68] sm:$0xff]
        %v1459 = vld [vmem:[%s7 + $0x70] sm:$0xff]
        %v1460 = vld [vmem:[%s7 + $0x78] sm:$0xff]
        %v1461 = vld [vmem:[%s7 + $0x80] sm:$0xff]
        %v1462 = vld [vmem:[%s7 + $0x88] sm:$0xff]
        %v1463 = vld [vmem:[%s7 + $0x90] sm:$0xff]
        %v1464 = vld [vmem:[%s7 + $0x98] sm:$0xff]
        %v1465 = vld [vmem:[%s7 + $0xa0] sm:$0xff]
        %v1466 = vld [vmem:[%s7 + $0xa8] sm:$0xff]
        %v1467 = vld [vmem:[%s7 + $0xb0] sm:$0xff]
        %v1468 = vld [vmem:[%s7 + $0xb8] sm:$0xff]
        %v1469 = vld [vmem:[%s7 + $0xc0] sm:$0xff]
        %v1470 = vld [vmem:[%s7 + $0xc8] sm:$0xff]
        %v1471 = vld [vmem:[%s7 + $0xd0] sm:$0xff]
        %v1472 = vld [vmem:[%s7 + $0xd8] sm:$0xff]
        %v1473 = vld [vmem:[%s7 + $0xe0] sm:$0xff]
        %v1474 = vld [vmem:[%s7 + $0xe8] sm:$0xff]
        %v1475 = vld [vmem:[%s7 + $0xf0] sm:$0xff]
        %v1476 = vld [vmem:[%s7 + $0xf8] sm:$0xff]
        %v1477 = vld [vmem:[%s7 + $0x100] sm:$0xff]
        %v1478 = vld [vmem:[%s7 + $0x108] sm:$0xff]
        %v1479 = vld [vmem:[%s7 + $0x110] sm:$0xff]
        %v1480 = vld [vmem:[%s7 + $0x118] sm:$0xff]
        %v1481 = vld [vmem:[%s7 + $0x120] sm:$0xff]
        %v1482 = vld [vmem:[%s7 + $0x128] sm:$0xff]
        %v1483 = vld [vmem:[%s7 + $0x130] sm:$0xff]
        %v1484 = vld [vmem:[%s7 + $0x138] sm:$0xff]
        %v1485 = vld [vmem:[%s7 + $0x140] sm:$0xff]
        %v1486 = vld [vmem:[%s7 + $0x148] sm:$0xff]
        %v1487 = vld [vmem:[%s7 + $0x150] sm:$0xff]
        %v1488 = vld [vmem:[%s7 + $0x158] sm:$0xff]
        %v1489 = vld [vmem:[%s7 + $0x160] sm:$0xff]
        %v1490 = vld [vmem:[%s7 + $0x168] sm:$0xff]
        %v1491 = vld [vmem:[%s7 + $0x170] sm:$0xff]
        %v1492 = vld [vmem:[%s7 + $0x178] sm:$0xff]
        %v1493 = vld [vmem:[%s7 + $0x180] sm:$0xff]
        %v1494 = vld [vmem:[%s7 + $0x188] sm:$0xff]
        %v1495 = vld [vmem:[%s7 + $0x190] sm:$0xff]
        %v1496 = vld [vmem:[%s7 + $0x198] sm:$0xff]
        %v1497 = vld [vmem:[%s7 + $0x1a0] sm:$0xff]
        %v1498 = vld [vmem:[%s7 + $0x1a8] sm:$0xff]
        %v1499 = vld [vmem:[%s7 + $0x1b0] sm:$0xff]
        %v1500 = vld [vmem:[%s7 + $0x1b8] sm:$0xff]
        %v1501 = vld [vmem:[%s7 + $0x1c0] sm:$0xff]
        %v1502 = vld [vmem:[%s7 + $0x1c8] sm:$0xff]
        %v1503 = vld [vmem:[%s7 + $0x1d0] sm:$0xff]
        %v1504 = vld [vmem:[%s7 + $0x1d8] sm:$0xff]
        %v1505 = vld [vmem:[%s7 + $0x1e0] sm:$0xff]
        %v1506 = vld [vmem:[%s7 + $0x1e8] sm:$0xff]
        %v1507 = vld [vmem:[%s7 + $0x1f0] sm:$0xff]
        %v1508 = vld [vmem:[%s7 + $0x1f8] sm:$0xff]
        %s1509 = scalar_lea.vmem %s5, 32
        %v1510 = vld [vmem:[%s1509] sm:$0xff]
        %v1511 = vld [vmem:[%s1509 + $0x8] sm:$0xff]
        %v1512 = vld [vmem:[%s1509 + $0x10] sm:$0xff]
        %v1513 = vld [vmem:[%s1509 + $0x18] sm:$0xff]
        %v1514 = vld [vmem:[%s1509 + $0x80] sm:$0xff]
        %v1515 = vld [vmem:[%s1509 + $0x88] sm:$0xff]
        %v1516 = vld [vmem:[%s1509 + $0x90] sm:$0xff]
        %v1517 = vld [vmem:[%s1509 + $0x98] sm:$0xff]
        %v1518 = vld [vmem:[%s1509 + $0x100] sm:$0xff]
        %v1519 = vld [vmem:[%s1509 + $0x108] sm:$0xff]
        %v1520 = vld [vmem:[%s1509 + $0x110] sm:$0xff]
        %v1521 = vld [vmem:[%s1509 + $0x118] sm:$0xff]
        %v1522 = vld [vmem:[%s1509 + $0x180] sm:$0xff]
        %v1523 = vld [vmem:[%s1509 + $0x188] sm:$0xff]
        %v1524 = vld [vmem:[%s1509 + $0x190] sm:$0xff]
        %v1525 = vld [vmem:[%s1509 + $0x198] sm:$0xff]
        %s1526 = scalar_lea.vmem %s6, 4
        %v1527 = vld [vmem:[%s1526] sm:$0xf]
        %v1529 = vlaneseq
        %v1530 = vshrl.u32 %v1529, 7
        %v1531 = vsub.s32 0, %v1530
        %v1532 = vrot.slane %v1527, %v1531
        %v1533 = vlaneseq
        %v1534 = vshrl.u32 %v1533, 7
        %v1535 = vsub.s32 1, %v1534
        %v1536 = vrot.slane %v1527, %v1535
        %v1537 = vlaneseq
        %v1538 = vshrl.u32 %v1537, 7
        %v1539 = vsub.s32 2, %v1538
        %v1540 = vrot.slane %v1527, %v1539
        %v1541 = vlaneseq
        %v1542 = vshrl.u32 %v1541, 7
        %v1543 = vsub.s32 3, %v1542
        %v1544 = vrot.slane %v1527, %v1543
        %1549 = vmatprep.subr.mxu0 %v1511
        %1550 = vmatpush1.msra.mxu0 %v1510
        %1551 = vmatprep.subr.mxu0 %v1515
        %1552 = vmatpush1.msra.mxu0 %v1514
        %1553 = vmatprep.subr.mxu0 %v1519
        %1554 = vmatpush1.msra.mxu0 %v1518
        %1555 = vmatprep.subr.mxu0 %v1523
        %1556 = vmatpush1.msra.mxu0 %v1522
        %1557 = vmatprep.subr.mxu0 0.0
        %1558 = vmatpush1.msra.mxu0 0.0
        %1559 = vmatprep.subr.mxu0 0.0
        %1560 = vmatpush1.msra.mxu0 0.0
        %1561 = vmatprep.subr.mxu0 0.0
        %1562 = vmatpush1.msra.mxu0 0.0
        %1563 = vmatprep.subr.mxu0 0.0
        %1564 = vmatpush1.msra.mxu0 0.0
        %1565 = vmatprep.subr.mxu0 0.0
        %1566 = vmatpush1.msra.mxu0 0.0
        %1567 = vmatprep.subr.mxu0 0.0
        %1568 = vmatpush1.msra.mxu0 0.0
        %1569 = vmatprep.subr.mxu0 0.0
        %1570 = vmatpush1.msra.mxu0 0.0
        %1571 = vmatprep.subr.mxu0 0.0
        %1572 = vmatpush1.msra.mxu0 0.0
        %1573 = vmatprep.subr.mxu0 0.0
        %1574 = vmatpush1.msra.mxu0 0.0
        %1575 = vmatprep.subr.mxu0 0.0
        %1576 = vmatpush1.msra.mxu0 0.0
        %1577 = vmatprep.subr.mxu0 0.0
        %1578 = vmatpush1.msra.mxu0 0.0
        %1579 = vmatprep.subr.mxu0 0.0
        %1580 = vmatpush1.msra.mxu0 0.0
        %1581 = vmatprep.subr.mxu0 0.0
        %1582 = vmatpush1.msra.mxu0 0.0
        %1583 = vmatprep.subr.mxu0 0.0
        %1584 = vmatpush1.msra.mxu0 0.0
        %1585 = vmatprep.subr.mxu0 0.0
        %1586 = vmatpush1.msra.mxu0 0.0
        %1587 = vmatprep.subr.mxu0 0.0
        %1588 = vmatpush1.msra.mxu0 0.0
        %1589 = vmatprep.subr.mxu0 0.0
        %1590 = vmatpush1.msra.mxu0 0.0
        %1591 = vmatprep.subr.mxu0 0.0
        %1592 = vmatpush1.msra.mxu0 0.0
        %1593 = vmatprep.subr.mxu0 0.0
        %1594 = vmatpush1.msra.mxu0 0.0
        %1595 = vmatprep.subr.mxu0 0.0
        %1596 = vmatpush1.msra.mxu0 0.0
        %1597 = vmatprep.subr.mxu0 0.0
        %1598 = vmatpush1.msra.mxu0 0.0
        %1599 = vmatprep.subr.mxu0 0.0
        %1600 = vmatpush1.msra.mxu0 0.0
        %1601 = vmatprep.subr.mxu0 0.0
        %1602 = vmatpush1.msra.mxu0 0.0
        %1603 = vmatprep.subr.mxu0 0.0
        %1604 = vmatpush1.msra.mxu0 0.0
        %1605 = vmatprep.subr.mxu0 0.0
        %1606 = vmatpush1.msra.mxu0 0.0
        %1607 = vmatprep.subr.mxu0 0.0
        %1608 = vmatpush1.msra.mxu0 0.0
        %1609 = vmatprep.subr.mxu0 0.0
        %1610 = vmatpush1.msra.mxu0 0.0
        %1611 = vmatprep.subr.mxu0 0.0
        %1612 = vmatpush1.msra.mxu0 0.0
        %1613 = vmatprep.mubr.f32.mxu0 0.0
        %1614 = vmatmul.mubr.f32.gmra.mrb[0].mxu0 %v1297
        %v1615 = vpop.f32.mrb[0].mxu0
        %v1616 = vadd.f32 %v1532, %v1615
        %v1617 = vpop.f32.mrb[0].mxu0
        %v1618 = vadd.f32 %v1536, %v1617
        %1619 = vdwg.mxu0
        %1620 = vmatprep.subr.mxu0 %v1513
        %1621 = vmatpush1.msra.mxu0 %v1512
        %1622 = vmatprep.subr.mxu0 %v1517
        %1623 = vmatpush1.msra.mxu0 %v1516
        %1624 = vmatprep.subr.mxu0 %v1521
        %1625 = vmatpush1.msra.mxu0 %v1520
        %1626 = vmatprep.subr.mxu0 %v1525
        %1627 = vmatpush1.msra.mxu0 %v1524
        %1628 = vmatprep.subr.mxu0 0.0
        %1629 = vmatpush1.msra.mxu0 0.0
        %1630 = vmatprep.subr.mxu0 0.0
        %1631 = vmatpush1.msra.mxu0 0.0
        %1632 = vmatprep.subr.mxu0 0.0
        %1633 = vmatpush1.msra.mxu0 0.0
        %1634 = vmatprep.subr.mxu0 0.0
        %1635 = vmatpush1.msra.mxu0 0.0
        %1636 = vmatprep.subr.mxu0 0.0
        %1637 = vmatpush1.msra.mxu0 0.0
        %1638 = vmatprep.subr.mxu0 0.0
        %1639 = vmatpush1.msra.mxu0 0.0
        %1640 = vmatprep.subr.mxu0 0.0
        %1641 = vmatpush1.msra.mxu0 0.0
        %1642 = vmatprep.subr.mxu0 0.0
        %1643 = vmatpush1.msra.mxu0 0.0
        %1644 = vmatprep.subr.mxu0 0.0
        %1645 = vmatpush1.msra.mxu0 0.0
        %1646 = vmatprep.subr.mxu0 0.0
        %1647 = vmatpush1.msra.mxu0 0.0
        %1648 = vmatprep.subr.mxu0 0.0
        %1649 = vmatpush1.msra.mxu0 0.0
        %1650 = vmatprep.subr.mxu0 0.0
        %1651 = vmatpush1.msra.mxu0 0.0
        %1652 = vmatprep.subr.mxu0 0.0
        %1653 = vmatpush1.msra.mxu0 0.0
        %1654 = vmatprep.subr.mxu0 0.0
        %1655 = vmatpush1.msra.mxu0 0.0
        %1656 = vmatprep.subr.mxu0 0.0
        %1657 = vmatpush1.msra.mxu0 0.0
        %1658 = vmatprep.subr.mxu0 0.0
        %1659 = vmatpush1.msra.mxu0 0.0
        %1660 = vmatprep.subr.mxu0 0.0
        %1661 = vmatpush1.msra.mxu0 0.0
        %1662 = vmatprep.subr.mxu0 0.0
        %1663 = vmatpush1.msra.mxu0 0.0
        %1664 = vmatprep.subr.mxu0 0.0
        %1665 = vmatpush1.msra.mxu0 0.0
        %1666 = vmatprep.subr.mxu0 0.0
        %1667 = vmatpush1.msra.mxu0 0.0
        %1668 = vmatprep.subr.mxu0 0.0
        %1669 = vmatpush1.msra.mxu0 0.0
        %1670 = vmatprep.subr.mxu0 0.0
        %1671 = vmatpush1.msra.mxu0 0.0
        %1672 = vmatprep.subr.mxu0 0.0
        %1673 = vmatpush1.msra.mxu0 0.0
        %1674 = vmatprep.subr.mxu0 0.0
        %1675 = vmatpush1.msra.mxu0 0.0
        %1676 = vmatprep.subr.mxu0 0.0
        %1677 = vmatpush1.msra.mxu0 0.0
        %1678 = vmatprep.subr.mxu0 0.0
        %1679 = vmatpush1.msra.mxu0 0.0
        %1680 = vmatprep.subr.mxu0 0.0
        %1681 = vmatpush1.msra.mxu0 0.0
        %1682 = vmatprep.subr.mxu0 0.0
        %1683 = vmatpush1.msra.mxu0 0.0
        %1684 = vmatprep.mubr.f32.mxu0 0.0
        %1685 = vmatmul.mubr.f32.gmra.mrb[0].mxu0 %v1297
        %v1686 = vpop.f32.mrb[0].mxu0
        %v1687 = vadd.f32 %v1540, %v1686
        %v1688 = vpop.f32.mrb[0].mxu0
        %v1689 = vadd.f32 %v1544, %v1688
        %1690 = vdwg.mxu0
        %v1691 = vmax.f32 %v1616, 0.0
        %v1692 = vmax.f32 %v1618, 0.0
        %v1693 = vmax.f32 %v1687, 0.0
        %v1694 = vmax.f32 %v1689, 0.0
        %s1695 = scalar_lea.vmem %s7, 512
        %v1696 = vld [vmem:[%s1695] sm:$0xff]
        %v1697 = vld [vmem:[%s1695 + $0x8] sm:$0xff]
        %v1698 = vld [vmem:[%s1695 + $0x10] sm:$0xff]
        %v1699 = vld [vmem:[%s1695 + $0x18] sm:$0xff]
        %v1700 = vld [vmem:[%s1695 + $0x20] sm:$0xff]
        %v1701 = vld [vmem:[%s1695 + $0x28] sm:$0xff]
        %v1702 = vld [vmem:[%s1695 + $0x30] sm:$0xff]
        %v1703 = vld [vmem:[%s1695 + $0x38] sm:$0xff]
        %v1704 = vld [vmem:[%s1695 + $0x40] sm:$0xff]
        %v1705 = vld [vmem:[%s1695 + $0x48] sm:$0xff]
        %v1706 = vld [vmem:[%s1695 + $0x50] sm:$0xff]
        %v1707 = vld [vmem:[%s1695 + $0x58] sm:$0xff]
        %v1708 = vld [vmem:[%s1695 + $0x60] sm:$0xff]
        %v1709 = vld [vmem:[%s1695 + $0x68] sm:$0xff]
        %v1710 = vld [vmem:[%s1695 + $0x70] sm:$0xff]
        %v1711 = vld [vmem:[%s1695 + $0x78] sm:$0xff]
        %v1712 = vld [vmem:[%s1695 + $0x80] sm:$0xff]
        %v1713 = vld [vmem:[%s1695 + $0x88] sm:$0xff]
        %v1714 = vld [vmem:[%s1695 + $0x90] sm:$0xff]
        %v1715 = vld [vmem:[%s1695 + $0x98] sm:$0xff]
        %v1716 = vld [vmem:[%s1695 + $0xa0] sm:$0xff]
        %v1717 = vld [vmem:[%s1695 + $0xa8] sm:$0xff]
        %v1718 = vld [vmem:[%s1695 + $0xb0] sm:$0xff]
        %v1719 = vld [vmem:[%s1695 + $0xb8] sm:$0xff]
        %v1720 = vld [vmem:[%s1695 + $0xc0] sm:$0xff]
        %v1721 = vld [vmem:[%s1695 + $0xc8] sm:$0xff]
        %v1722 = vld [vmem:[%s1695 + $0xd0] sm:$0xff]
        %v1723 = vld [vmem:[%s1695 + $0xd8] sm:$0xff]
        %v1724 = vld [vmem:[%s1695 + $0xe0] sm:$0xff]
        %v1725 = vld [vmem:[%s1695 + $0xe8] sm:$0xff]
        %v1726 = vld [vmem:[%s1695 + $0xf0] sm:$0xff]
        %v1727 = vld [vmem:[%s1695 + $0xf8] sm:$0xff]
        %v1728 = vld [vmem:[%s1695 + $0x100] sm:$0xff]
        %v1729 = vld [vmem:[%s1695 + $0x108] sm:$0xff]
        %v1730 = vld [vmem:[%s1695 + $0x110] sm:$0xff]
        %v1731 = vld [vmem:[%s1695 + $0x118] sm:$0xff]
        %v1732 = vld [vmem:[%s1695 + $0x120] sm:$0xff]
        %v1733 = vld [vmem:[%s1695 + $0x128] sm:$0xff]
        %v1734 = vld [vmem:[%s1695 + $0x130] sm:$0xff]
        %v1735 = vld [vmem:[%s1695 + $0x138] sm:$0xff]
        %v1736 = vld [vmem:[%s1695 + $0x140] sm:$0xff]
        %v1737 = vld [vmem:[%s1695 + $0x148] sm:$0xff]
        %v1738 = vld [vmem:[%s1695 + $0x150] sm:$0xff]
        %v1739 = vld [vmem:[%s1695 + $0x158] sm:$0xff]
        %v1740 = vld [vmem:[%s1695 + $0x160] sm:$0xff]
        %v1741 = vld [vmem:[%s1695 + $0x168] sm:$0xff]
        %v1742 = vld [vmem:[%s1695 + $0x170] sm:$0xff]
        %v1743 = vld [vmem:[%s1695 + $0x178] sm:$0xff]
        %v1744 = vld [vmem:[%s1695 + $0x180] sm:$0xff]
        %v1745 = vld [vmem:[%s1695 + $0x188] sm:$0xff]
        %v1746 = vld [vmem:[%s1695 + $0x190] sm:$0xff]
        %v1747 = vld [vmem:[%s1695 + $0x198] sm:$0xff]
        %v1748 = vld [vmem:[%s1695 + $0x1a0] sm:$0xff]
        %v1749 = vld [vmem:[%s1695 + $0x1a8] sm:$0xff]
        %v1750 = vld [vmem:[%s1695 + $0x1b0] sm:$0xff]
        %v1751 = vld [vmem:[%s1695 + $0x1b8] sm:$0xff]
        %v1752 = vld [vmem:[%s1695 + $0x1c0] sm:$0xff]
        %v1753 = vld [vmem:[%s1695 + $0x1c8] sm:$0xff]
        %v1754 = vld [vmem:[%s1695 + $0x1d0] sm:$0xff]
        %v1755 = vld [vmem:[%s1695 + $0x1d8] sm:$0xff]
        %v1756 = vld [vmem:[%s1695 + $0x1e0] sm:$0xff]
        %v1757 = vld [vmem:[%s1695 + $0x1e8] sm:$0xff]
        %v1758 = vld [vmem:[%s1695 + $0x1f0] sm:$0xff]
        %v1759 = vld [vmem:[%s1695 + $0x1f8] sm:$0xff]
        %1760 = vmatprep.subr.mxu0 0.0
        %1761 = vmatpush1.msra.mxu0 %v1696
        %1762 = vmatprep.subr.mxu0 0.0
        %1763 = vmatpush1.msra.mxu0 %v1697
        %1764 = vmatprep.subr.mxu0 0.0
        %1765 = vmatpush1.msra.mxu0 %v1698
        %1766 = vmatprep.subr.mxu0 0.0
        %1767 = vmatpush1.msra.mxu0 %v1699
        %1768 = vmatprep.subr.mxu0 0.0
        %1769 = vmatpush1.msra.mxu0 %v1700
        %1770 = vmatprep.subr.mxu0 0.0
        %1771 = vmatpush1.msra.mxu0 %v1701
        %1772 = vmatprep.subr.mxu0 0.0
        %1773 = vmatpush1.msra.mxu0 %v1702
        %1774 = vmatprep.subr.mxu0 0.0
        %1775 = vmatpush1.msra.mxu0 %v1703
        %1776 = vmatprep.subr.mxu0 0.0
        %1777 = vmatpush1.msra.mxu0 %v1704
        %1778 = vmatprep.subr.mxu0 0.0
        %1779 = vmatpush1.msra.mxu0 %v1705
        %1780 = vmatprep.subr.mxu0 0.0
        %1781 = vmatpush1.msra.mxu0 %v1706
        %1782 = vmatprep.subr.mxu0 0.0
        %1783 = vmatpush1.msra.mxu0 %v1707
        %1784 = vmatprep.subr.mxu0 0.0
        %1785 = vmatpush1.msra.mxu0 %v1708
        %1786 = vmatprep.subr.mxu0 0.0
        %1787 = vmatpush1.msra.mxu0 %v1709
        %1788 = vmatprep.subr.mxu0 0.0
        %1789 = vmatpush1.msra.mxu0 %v1710
        %1790 = vmatprep.subr.mxu0 0.0
        %1791 = vmatpush1.msra.mxu0 %v1711
        %1792 = vmatprep.subr.mxu0 0.0
        %1793 = vmatpush1.msra.mxu0 %v1712
        %1794 = vmatprep.subr.mxu0 0.0
        %1795 = vmatpush1.msra.mxu0 %v1713
        %1796 = vmatprep.subr.mxu0 0.0
        %1797 = vmatpush1.msra.mxu0 %v1714
        %1798 = vmatprep.subr.mxu0 0.0
        %1799 = vmatpush1.msra.mxu0 %v1715
        %1800 = vmatprep.subr.mxu0 0.0
        %1801 = vmatpush1.msra.mxu0 %v1716
        %1802 = vmatprep.subr.mxu0 0.0
        %1803 = vmatpush1.msra.mxu0 %v1717
        %1804 = vmatprep.subr.mxu0 0.0
        %1805 = vmatpush1.msra.mxu0 %v1718
        %1806 = vmatprep.subr.mxu0 0.0
        %1807 = vmatpush1.msra.mxu0 %v1719
        %1808 = vmatprep.subr.mxu0 0.0
        %1809 = vmatpush1.msra.mxu0 %v1720
        %1810 = vmatprep.subr.mxu0 0.0
        %1811 = vmatpush1.msra.mxu0 %v1721
        %1812 = vmatprep.subr.mxu0 0.0
        %1813 = vmatpush1.msra.mxu0 %v1722
        %1814 = vmatprep.subr.mxu0 0.0
        %1815 = vmatpush1.msra.mxu0 %v1723
        %1816 = vmatprep.subr.mxu0 0.0
        %1817 = vmatpush1.msra.mxu0 %v1724
        %1818 = vmatprep.subr.mxu0 0.0
        %1819 = vmatpush1.msra.mxu0 %v1725
        %1820 = vmatprep.subr.mxu0 0.0
        %1821 = vmatpush1.msra.mxu0 %v1726
        %1822 = vmatprep.subr.mxu0 0.0
        %1823 = vmatpush1.msra.mxu0 %v1727
        %1824 = vmatprep.mubr.f32.mxu0 %v1692
        %1825 = vmatmul.mubr.f32.gmra.mrb[0].mxu0 %v1691
        %v1826 = vpop.f32.mrb[0].mxu0
        %v1827 = vadd.f32 0.0, %v1826
        %v1828 = vpop.f32.mrb[0].mxu0
        %1829 = vdwg.mxu0
        %1830 = vmatprep.subr.mxu0 0.0
        %1831 = vmatpush1.msra.mxu0 %v1728
        %1832 = vmatprep.subr.mxu0 0.0
        %1833 = vmatpush1.msra.mxu0 %v1729
        %1834 = vmatprep.subr.mxu0 0.0
        %1835 = vmatpush1.msra.mxu0 %v1730
        %1836 = vmatprep.subr.mxu0 0.0
        %1837 = vmatpush1.msra.mxu0 %v1731
        %1838 = vmatprep.subr.mxu0 0.0
        %1839 = vmatpush1.msra.mxu0 %v1732
        %1840 = vmatprep.subr.mxu0 0.0
        %1841 = vmatpush1.msra.mxu0 %v1733
        %1842 = vmatprep.subr.mxu0 0.0
        %1843 = vmatpush1.msra.mxu0 %v1734
        %1844 = vmatprep.subr.mxu0 0.0
        %1845 = vmatpush1.msra.mxu0 %v1735
        %1846 = vmatprep.subr.mxu0 0.0
        %1847 = vmatpush1.msra.mxu0 %v1736
        %1848 = vmatprep.subr.mxu0 0.0
        %1849 = vmatpush1.msra.mxu0 %v1737
        %1850 = vmatprep.subr.mxu0 0.0
        %1851 = vmatpush1.msra.mxu0 %v1738
        %1852 = vmatprep.subr.mxu0 0.0
        %1853 = vmatpush1.msra.mxu0 %v1739
        %1854 = vmatprep.subr.mxu0 0.0
        %1855 = vmatpush1.msra.mxu0 %v1740
        %1856 = vmatprep.subr.mxu0 0.0
        %1857 = vmatpush1.msra.mxu0 %v1741
        %1858 = vmatprep.subr.mxu0 0.0
        %1859 = vmatpush1.msra.mxu0 %v1742
        %1860 = vmatprep.subr.mxu0 0.0
        %1861 = vmatpush1.msra.mxu0 %v1743
        %1862 = vmatprep.subr.mxu0 0.0
        %1863 = vmatpush1.msra.mxu0 %v1744
        %1864 = vmatprep.subr.mxu0 0.0
        %1865 = vmatpush1.msra.mxu0 %v1745
        %1866 = vmatprep.subr.mxu0 0.0
        %1867 = vmatpush1.msra.mxu0 %v1746
        %1868 = vmatprep.subr.mxu0 0.0
        %1869 = vmatpush1.msra.mxu0 %v1747
        %1870 = vmatprep.subr.mxu0 0.0
        %1871 = vmatpush1.msra.mxu0 %v1748
        %1872 = vmatprep.subr.mxu0 0.0
        %1873 = vmatpush1.msra.mxu0 %v1749
        %1874 = vmatprep.subr.mxu0 0.0
        %1875 = vmatpush1.msra.mxu0 %v1750
        %1876 = vmatprep.subr.mxu0 0.0
        %1877 = vmatpush1.msra.mxu0 %v1751
        %1878 = vmatprep.subr.mxu0 0.0
        %1879 = vmatpush1.msra.mxu0 %v1752
        %1880 = vmatprep.subr.mxu0 0.0
        %1881 = vmatpush1.msra.mxu0 %v1753
        %1882 = vmatprep.subr.mxu0 0.0
        %1883 = vmatpush1.msra.mxu0 %v1754
        %1884 = vmatprep.subr.mxu0 0.0
        %1885 = vmatpush1.msra.mxu0 %v1755
        %1886 = vmatprep.subr.mxu0 0.0
        %1887 = vmatpush1.msra.mxu0 %v1756
        %1888 = vmatprep.subr.mxu0 0.0
        %1889 = vmatpush1.msra.mxu0 %v1757
        %1890 = vmatprep.subr.mxu0 0.0
        %1891 = vmatpush1.msra.mxu0 %v1758
        %1892 = vmatprep.subr.mxu0 0.0
        %1893 = vmatpush1.msra.mxu0 %v1759
        %1894 = vmatprep.mubr.f32.mxu0 %v1694
        %1895 = vmatmul.mubr.f32.gmra.mrb[0].mxu0 %v1693
        %v1896 = vpop.f32.mrb[0].mxu0
        %v1897 = vadd.f32 %v1827, %v1896
        %v1898 = vpop.f32.mrb[0].mxu0
        %1899 = vdwg.mxu0
        %1900 = vmatprep.subr.mxu0 0.0
        %1901 = vmatpush1.msra.mxu0 %v1445
        %1902 = vmatprep.subr.mxu0 0.0
        %1903 = vmatpush1.msra.mxu0 %v1446
        %1904 = vmatprep.subr.mxu0 0.0
        %1905 = vmatpush1.msra.mxu0 %v1447
        %1906 = vmatprep.subr.mxu0 0.0
        %1907 = vmatpush1.msra.mxu0 %v1448
        %1908 = vmatprep.subr.mxu0 0.0
        %1909 = vmatpush1.msra.mxu0 %v1449
        %1910 = vmatprep.subr.mxu0 0.0
        %1911 = vmatpush1.msra.mxu0 %v1450
        %1912 = vmatprep.subr.mxu0 0.0
        %1913 = vmatpush1.msra.mxu0 %v1451
        %1914 = vmatprep.subr.mxu0 0.0
        %1915 = vmatpush1.msra.mxu0 %v1452
        %1916 = vmatprep.subr.mxu0 0.0
        %1917 = vmatpush1.msra.mxu0 %v1453
        %1918 = vmatprep.subr.mxu0 0.0
        %1919 = vmatpush1.msra.mxu0 %v1454
        %1920 = vmatprep.subr.mxu0 0.0
        %1921 = vmatpush1.msra.mxu0 %v1455
        %1922 = vmatprep.subr.mxu0 0.0
        %1923 = vmatpush1.msra.mxu0 %v1456
        %1924 = vmatprep.subr.mxu0 0.0
        %1925 = vmatpush1.msra.mxu0 %v1457
        %1926 = vmatprep.subr.mxu0 0.0
        %1927 = vmatpush1.msra.mxu0 %v1458
        %1928 = vmatprep.subr.mxu0 0.0
        %1929 = vmatpush1.msra.mxu0 %v1459
        %1930 = vmatprep.subr.mxu0 0.0
        %1931 = vmatpush1.msra.mxu0 %v1460
        %1932 = vmatprep.subr.mxu0 0.0
        %1933 = vmatpush1.msra.mxu0 %v1461
        %1934 = vmatprep.subr.mxu0 0.0
        %1935 = vmatpush1.msra.mxu0 %v1462
        %1936 = vmatprep.subr.mxu0 0.0
        %1937 = vmatpush1.msra.mxu0 %v1463
        %1938 = vmatprep.subr.mxu0 0.0
        %1939 = vmatpush1.msra.mxu0 %v1464
        %1940 = vmatprep.subr.mxu0 0.0
        %1941 = vmatpush1.msra.mxu0 %v1465
        %1942 = vmatprep.subr.mxu0 0.0
        %1943 = vmatpush1.msra.mxu0 %v1466
        %1944 = vmatprep.subr.mxu0 0.0
        %1945 = vmatpush1.msra.mxu0 %v1467
        %1946 = vmatprep.subr.mxu0 0.0
        %1947 = vmatpush1.msra.mxu0 %v1468
        %1948 = vmatprep.subr.mxu0 0.0
        %1949 = vmatpush1.msra.mxu0 %v1469
        %1950 = vmatprep.subr.mxu0 0.0
        %1951 = vmatpush1.msra.mxu0 %v1470
        %1952 = vmatprep.subr.mxu0 0.0
        %1953 = vmatpush1.msra.mxu0 %v1471
        %1954 = vmatprep.subr.mxu0 0.0
        %1955 = vmatpush1.msra.mxu0 %v1472
        %1956 = vmatprep.subr.mxu0 0.0
        %1957 = vmatpush1.msra.mxu0 %v1473
        %1958 = vmatprep.subr.mxu0 0.0
        %1959 = vmatpush1.msra.mxu0 %v1474
        %1960 = vmatprep.subr.mxu0 0.0
        %1961 = vmatpush1.msra.mxu0 %v1475
        %1962 = vmatprep.subr.mxu0 0.0
        %1963 = vmatpush1.msra.mxu0 %v1476
        %1964 = vmatprep.mubr.f32.mxu0 %v1442
        %1965 = vmatmul.mubr.f32.gmra.mrb[0].mxu0 %v1441
        %v1966 = vpop.f32.mrb[0].mxu0
        %v1967 = vadd.f32 %v1897, %v1966
        %v1968 = vpop.f32.mrb[0].mxu0
        %1969 = vdwg.mxu0
        %1970 = vmatprep.subr.mxu0 0.0
        %1971 = vmatpush1.msra.mxu0 %v1477
        %1972 = vmatprep.subr.mxu0 0.0
        %1973 = vmatpush1.msra.mxu0 %v1478
        %1974 = vmatprep.subr.mxu0 0.0
        %1975 = vmatpush1.msra.mxu0 %v1479
        %1976 = vmatprep.subr.mxu0 0.0
        %1977 = vmatpush1.msra.mxu0 %v1480
        %1978 = vmatprep.subr.mxu0 0.0
        %1979 = vmatpush1.msra.mxu0 %v1481
        %1980 = vmatprep.subr.mxu0 0.0
        %1981 = vmatpush1.msra.mxu0 %v1482
        %1982 = vmatprep.subr.mxu0 0.0
        %1983 = vmatpush1.msra.mxu0 %v1483
        %1984 = vmatprep.subr.mxu0 0.0
        %1985 = vmatpush1.msra.mxu0 %v1484
        %1986 = vmatprep.subr.mxu0 0.0
        %1987 = vmatpush1.msra.mxu0 %v1485
        %1988 = vmatprep.subr.mxu0 0.0
        %1989 = vmatpush1.msra.mxu0 %v1486
        %1990 = vmatprep.subr.mxu0 0.0
        %1991 = vmatpush1.msra.mxu0 %v1487
        %1992 = vmatprep.subr.mxu0 0.0
        %1993 = vmatpush1.msra.mxu0 %v1488
        %1994 = vmatprep.subr.mxu0 0.0
        %1995 = vmatpush1.msra.mxu0 %v1489
        %1996 = vmatprep.subr.mxu0 0.0
        %1997 = vmatpush1.msra.mxu0 %v1490
        %1998 = vmatprep.subr.mxu0 0.0
        %1999 = vmatpush1.msra.mxu0 %v1491
        %2000 = vmatprep.subr.mxu0 0.0
        %2001 = vmatpush1.msra.mxu0 %v1492
        %2002 = vmatprep.subr.mxu0 0.0
        %2003 = vmatpush1.msra.mxu0 %v1493
        %2004 = vmatprep.subr.mxu0 0.0
        %2005 = vmatpush1.msra.mxu0 %v1494
        %2006 = vmatprep.subr.mxu0 0.0
        %2007 = vmatpush1.msra.mxu0 %v1495
        %2008 = vmatprep.subr.mxu0 0.0
        %2009 = vmatpush1.msra.mxu0 %v1496
        %2010 = vmatprep.subr.mxu0 0.0
        %2011 = vmatpush1.msra.mxu0 %v1497
        %2012 = vmatprep.subr.mxu0 0.0
        %2013 = vmatpush1.msra.mxu0 %v1498
        %2014 = vmatprep.subr.mxu0 0.0
        %2015 = vmatpush1.msra.mxu0 %v1499
        %2016 = vmatprep.subr.mxu0 0.0
        %2017 = vmatpush1.msra.mxu0 %v1500
        %2018 = vmatprep.subr.mxu0 0.0
        %2019 = vmatpush1.msra.mxu0 %v1501
        %2020 = vmatprep.subr.mxu0 0.0
        %2021 = vmatpush1.msra.mxu0 %v1502
        %2022 = vmatprep.subr.mxu0 0.0
        %2023 = vmatpush1.msra.mxu0 %v1503
        %2024 = vmatprep.subr.mxu0 0.0
        %2025 = vmatpush1.msra.mxu0 %v1504
        %2026 = vmatprep.subr.mxu0 0.0
        %2027 = vmatpush1.msra.mxu0 %v1505
        %2028 = vmatprep.subr.mxu0 0.0
        %2029 = vmatpush1.msra.mxu0 %v1506
        %2030 = vmatprep.subr.mxu0 0.0
        %2031 = vmatpush1.msra.mxu0 %v1507
        %2032 = vmatprep.subr.mxu0 0.0
        %2033 = vmatpush1.msra.mxu0 %v1508
        %2034 = vmatprep.mubr.f32.mxu0 %v1444
        %2035 = vmatmul.mubr.f32.gmra.mrb[0].mxu0 %v1443
        %v2036 = vpop.f32.mrb[0].mxu0
        %v2037 = vadd.f32 %v1967, %v2036
        %v2038 = vpop.f32.mrb[0].mxu0
        %2039 = vdwg.mxu0
        %s2040 = scalar_lea.vmem %s5, 64
        %v2041 = vld [vmem:[%s2040] sm:$0xff]
        %v2042 = vld [vmem:[%s2040 + $0x8] sm:$0xff]
        %v2043 = vld [vmem:[%s2040 + $0x10] sm:$0xff]
        %v2044 = vld [vmem:[%s2040 + $0x18] sm:$0xff]
        %v2045 = vld [vmem:[%s2040 + $0x80] sm:$0xff]
        %v2046 = vld [vmem:[%s2040 + $0x88] sm:$0xff]
        %v2047 = vld [vmem:[%s2040 + $0x90] sm:$0xff]
        %v2048 = vld [vmem:[%s2040 + $0x98] sm:$0xff]
        %v2049 = vld [vmem:[%s2040 + $0x100] sm:$0xff]
        %v2050 = vld [vmem:[%s2040 + $0x108] sm:$0xff]
        %v2051 = vld [vmem:[%s2040 + $0x110] sm:$0xff]
        %v2052 = vld [vmem:[%s2040 + $0x118] sm:$0xff]
        %v2053 = vld [vmem:[%s2040 + $0x180] sm:$0xff]
        %v2054 = vld [vmem:[%s2040 + $0x188] sm:$0xff]
        %v2055 = vld [vmem:[%s2040 + $0x190] sm:$0xff]
        %v2056 = vld [vmem:[%s2040 + $0x198] sm:$0xff]
        %s2057 = scalar_lea.vmem %s6, 8
        %v2058 = vld [vmem:[%s2057] sm:$0xf]
        %v2060 = vlaneseq
        %v2061 = vshrl.u32 %v2060, 7
        %v2062 = vsub.s32 0, %v2061
        %v2063 = vrot.slane %v2058, %v2062
        %v2064 = vlaneseq
        %v2065 = vshrl.u32 %v2064, 7
        %v2066 = vsub.s32 1, %v2065
        %v2067 = vrot.slane %v2058, %v2066
        %v2068 = vlaneseq
        %v2069 = vshrl.u32 %v2068, 7
        %v2070 = vsub.s32 2, %v2069
        %v2071 = vrot.slane %v2058, %v2070
        %v2072 = vlaneseq
        %v2073 = vshrl.u32 %v2072, 7
        %v2074 = vsub.s32 3, %v2073
        %v2075 = vrot.slane %v2058, %v2074
        %2080 = vmatprep.subr.mxu0 %v2042
        %2081 = vmatpush1.msra.mxu0 %v2041
        %2082 = vmatprep.subr.mxu0 %v2046
        %2083 = vmatpush1.msra.mxu0 %v2045
        %2084 = vmatprep.subr.mxu0 %v2050
        %2085 = vmatpush1.msra.mxu0 %v2049
        %2086 = vmatprep.subr.mxu0 %v2054
        %2087 = vmatpush1.msra.mxu0 %v2053
        %2088 = vmatprep.subr.mxu0 0.0
        %2089 = vmatpush1.msra.mxu0 0.0
        %2090 = vmatprep.subr.mxu0 0.0
        %2091 = vmatpush1.msra.mxu0 0.0
        %2092 = vmatprep.subr.mxu0 0.0
        %2093 = vmatpush1.msra.mxu0 0.0
        %2094 = vmatprep.subr.mxu0 0.0
        %2095 = vmatpush1.msra.mxu0 0.0
        %2096 = vmatprep.subr.mxu0 0.0
        %2097 = vmatpush1.msra.mxu0 0.0
        %2098 = vmatprep.subr.mxu0 0.0
        %2099 = vmatpush1.msra.mxu0 0.0
        %2100 = vmatprep.subr.mxu0 0.0
        %2101 = vmatpush1.msra.mxu0 0.0
        %2102 = vmatprep.subr.mxu0 0.0
        %2103 = vmatpush1.msra.mxu0 0.0
        %2104 = vmatprep.subr.mxu0 0.0
        %2105 = vmatpush1.msra.mxu0 0.0
        %2106 = vmatprep.subr.mxu0 0.0
        %2107 = vmatpush1.msra.mxu0 0.0
        %2108 = vmatprep.subr.mxu0 0.0
        %2109 = vmatpush1.msra.mxu0 0.0
        %2110 = vmatprep.subr.mxu0 0.0
        %2111 = vmatpush1.msra.mxu0 0.0
        %2112 = vmatprep.subr.mxu0 0.0
        %2113 = vmatpush1.msra.mxu0 0.0
        %2114 = vmatprep.subr.mxu0 0.0
        %2115 = vmatpush1.msra.mxu0 0.0
        %2116 = vmatprep.subr.mxu0 0.0
        %2117 = vmatpush1.msra.mxu0 0.0
        %2118 = vmatprep.subr.mxu0 0.0
        %2119 = vmatpush1.msra.mxu0 0.0
        %2120 = vmatprep.subr.mxu0 0.0
        %2121 = vmatpush1.msra.mxu0 0.0
        %2122 = vmatprep.subr.mxu0 0.0
        %2123 = vmatpush1.msra.mxu0 0.0
        %2124 = vmatprep.subr.mxu0 0.0
        %2125 = vmatpush1.msra.mxu0 0.0
        %2126 = vmatprep.subr.mxu0 0.0
        %2127 = vmatpush1.msra.mxu0 0.0
        %2128 = vmatprep.subr.mxu0 0.0
        %2129 = vmatpush1.msra.mxu0 0.0
        %2130 = vmatprep.subr.mxu0 0.0
        %2131 = vmatpush1.msra.mxu0 0.0
        %2132 = vmatprep.subr.mxu0 0.0
        %2133 = vmatpush1.msra.mxu0 0.0
        %2134 = vmatprep.subr.mxu0 0.0
        %2135 = vmatpush1.msra.mxu0 0.0
        %2136 = vmatprep.subr.mxu0 0.0
        %2137 = vmatpush1.msra.mxu0 0.0
        %2138 = vmatprep.subr.mxu0 0.0
        %2139 = vmatpush1.msra.mxu0 0.0
        %2140 = vmatprep.subr.mxu0 0.0
        %2141 = vmatpush1.msra.mxu0 0.0
        %2142 = vmatprep.subr.mxu0 0.0
        %2143 = vmatpush1.msra.mxu0 0.0
        %2144 = vmatprep.mubr.f32.mxu0 0.0
        %2145 = vmatmul.mubr.f32.gmra.mrb[0].mxu0 %v1297
        %v2146 = vpop.f32.mrb[0].mxu0
        %v2147 = vadd.f32 %v2063, %v2146
        %v2148 = vpop.f32.mrb[0].mxu0
        %v2149 = vadd.f32 %v2067, %v2148
        %2150 = vdwg.mxu0
        %2151 = vmatprep.subr.mxu0 %v2044
        %2152 = vmatpush1.msra.mxu0 %v2043
        %2153 = vmatprep.subr.mxu0 %v2048
        %2154 = vmatpush1.msra.mxu0 %v2047
        %2155 = vmatprep.subr.mxu0 %v2052
        %2156 = vmatpush1.msra.mxu0 %v2051
        %2157 = vmatprep.subr.mxu0 %v2056
        %2158 = vmatpush1.msra.mxu0 %v2055
        %2159 = vmatprep.subr.mxu0 0.0
        %2160 = vmatpush1.msra.mxu0 0.0
        %2161 = vmatprep.subr.mxu0 0.0
        %2162 = vmatpush1.msra.mxu0 0.0
        %2163 = vmatprep.subr.mxu0 0.0
        %2164 = vmatpush1.msra.mxu0 0.0
        %2165 = vmatprep.subr.mxu0 0.0
        %2166 = vmatpush1.msra.mxu0 0.0
        %2167 = vmatprep.subr.mxu0 0.0
        %2168 = vmatpush1.msra.mxu0 0.0
        %2169 = vmatprep.subr.mxu0 0.0
        %2170 = vmatpush1.msra.mxu0 0.0
        %2171 = vmatprep.subr.mxu0 0.0
        %2172 = vmatpush1.msra.mxu0 0.0
        %2173 = vmatprep.subr.mxu0 0.0
        %2174 = vmatpush1.msra.mxu0 0.0
        %2175 = vmatprep.subr.mxu0 0.0
        %2176 = vmatpush1.msra.mxu0 0.0
        %2177 = vmatprep.subr.mxu0 0.0
        %2178 = vmatpush1.msra.mxu0 0.0
        %2179 = vmatprep.subr.mxu0 0.0
        %2180 = vmatpush1.msra.mxu0 0.0
        %2181 = vmatprep.subr.mxu0 0.0
        %2182 = vmatpush1.msra.mxu0 0.0
        %2183 = vmatprep.subr.mxu0 0.0
        %2184 = vmatpush1.msra.mxu0 0.0
        %2185 = vmatprep.subr.mxu0 0.0
        %2186 = vmatpush1.msra.mxu0 0.0
        %2187 = vmatprep.subr.mxu0 0.0
        %2188 = vmatpush1.msra.mxu0 0.0
        %2189 = vmatprep.subr.mxu0 0.0
        %2190 = vmatpush1.msra.mxu0 0.0
        %2191 = vmatprep.subr.mxu0 0.0
        %2192 = vmatpush1.msra.mxu0 0.0
        %2193 = vmatprep.subr.mxu0 0.0
        %2194 = vmatpush1.msra.mxu0 0.0
        %2195 = vmatprep.subr.mxu0 0.0
        %2196 = vmatpush1.msra.mxu0 0.0
        %2197 = vmatprep.subr.mxu0 0.0
        %2198 = vmatpush1.msra.mxu0 0.0
        %2199 = vmatprep.subr.mxu0 0.0
        %2200 = vmatpush1.msra.mxu0 0.0
        %2201 = vmatprep.subr.mxu0 0.0
        %2202 = vmatpush1.msra.mxu0 0.0
        %2203 = vmatprep.subr.mxu0 0.0
        %2204 = vmatpush1.msra.mxu0 0.0
        %2205 = vmatprep.subr.mxu0 0.0
        %2206 = vmatpush1.msra.mxu0 0.0
        %2207 = vmatprep.subr.mxu0 0.0
        %2208 = vmatpush1.msra.mxu0 0.0
        %2209 = vmatprep.subr.mxu0 0.0
        %2210 = vmatpush1.msra.mxu0 0.0
        %2211 = vmatprep.subr.mxu0 0.0
        %2212 = vmatpush1.msra.mxu0 0.0
        %2213 = vmatprep.subr.mxu0 0.0
        %2214 = vmatpush1.msra.mxu0 0.0
        %2215 = vmatprep.mubr.f32.mxu0 0.0
        %2216 = vmatmul.mubr.f32.gmra.mrb[0].mxu0 %v1297
        %v2217 = vpop.f32.mrb[0].mxu0
        %v2218 = vadd.f32 %v2071, %v2217
        %v2219 = vpop.f32.mrb[0].mxu0
        %v2220 = vadd.f32 %v2075, %v2219
        %2221 = vdwg.mxu0
        %v2222 = vmax.f32 %v2147, 0.0
        %v2223 = vmax.f32 %v2149, 0.0
        %v2224 = vmax.f32 %v2218, 0.0
        %v2225 = vmax.f32 %v2220, 0.0
        %s2226 = scalar_lea.vmem %s7, 1024
        %v2227 = vld [vmem:[%s2226] sm:$0xff]
        %v2228 = vld [vmem:[%s2226 + $0x8] sm:$0xff]
        %v2229 = vld [vmem:[%s2226 + $0x10] sm:$0xff]
        %v2230 = vld [vmem:[%s2226 + $0x18] sm:$0xff]
        %v2231 = vld [vmem:[%s2226 + $0x20] sm:$0xff]
        %v2232 = vld [vmem:[%s2226 + $0x28] sm:$0xff]
        %v2233 = vld [vmem:[%s2226 + $0x30] sm:$0xff]
        %v2234 = vld [vmem:[%s2226 + $0x38] sm:$0xff]
        %v2235 = vld [vmem:[%s2226 + $0x40] sm:$0xff]
        %v2236 = vld [vmem:[%s2226 + $0x48] sm:$0xff]
        %v2237 = vld [vmem:[%s2226 + $0x50] sm:$0xff]
        %v2238 = vld [vmem:[%s2226 + $0x58] sm:$0xff]
        %v2239 = vld [vmem:[%s2226 + $0x60] sm:$0xff]
        %v2240 = vld [vmem:[%s2226 + $0x68] sm:$0xff]
        %v2241 = vld [vmem:[%s2226 + $0x70] sm:$0xff]
        %v2242 = vld [vmem:[%s2226 + $0x78] sm:$0xff]
        %v2243 = vld [vmem:[%s2226 + $0x80] sm:$0xff]
        %v2244 = vld [vmem:[%s2226 + $0x88] sm:$0xff]
        %v2245 = vld [vmem:[%s2226 + $0x90] sm:$0xff]
        %v2246 = vld [vmem:[%s2226 + $0x98] sm:$0xff]
        %v2247 = vld [vmem:[%s2226 + $0xa0] sm:$0xff]
        %v2248 = vld [vmem:[%s2226 + $0xa8] sm:$0xff]
        %v2249 = vld [vmem:[%s2226 + $0xb0] sm:$0xff]
        %v2250 = vld [vmem:[%s2226 + $0xb8] sm:$0xff]
        %v2251 = vld [vmem:[%s2226 + $0xc0] sm:$0xff]
        %v2252 = vld [vmem:[%s2226 + $0xc8] sm:$0xff]
        %v2253 = vld [vmem:[%s2226 + $0xd0] sm:$0xff]
        %v2254 = vld [vmem:[%s2226 + $0xd8] sm:$0xff]
        %v2255 = vld [vmem:[%s2226 + $0xe0] sm:$0xff]
        %v2256 = vld [vmem:[%s2226 + $0xe8] sm:$0xff]
        %v2257 = vld [vmem:[%s2226 + $0xf0] sm:$0xff]
        %v2258 = vld [vmem:[%s2226 + $0xf8] sm:$0xff]
        %v2259 = vld [vmem:[%s2226 + $0x100] sm:$0xff]
        %v2260 = vld [vmem:[%s2226 + $0x108] sm:$0xff]
        %v2261 = vld [vmem:[%s2226 + $0x110] sm:$0xff]
        %v2262 = vld [vmem:[%s2226 + $0x118] sm:$0xff]
        %v2263 = vld [vmem:[%s2226 + $0x120] sm:$0xff]
        %v2264 = vld [vmem:[%s2226 + $0x128] sm:$0xff]
        %v2265 = vld [vmem:[%s2226 + $0x130] sm:$0xff]
        %v2266 = vld [vmem:[%s2226 + $0x138] sm:$0xff]
        %v2267 = vld [vmem:[%s2226 + $0x140] sm:$0xff]
        %v2268 = vld [vmem:[%s2226 + $0x148] sm:$0xff]
        %v2269 = vld [vmem:[%s2226 + $0x150] sm:$0xff]
        %v2270 = vld [vmem:[%s2226 + $0x158] sm:$0xff]
        %v2271 = vld [vmem:[%s2226 + $0x160] sm:$0xff]
        %v2272 = vld [vmem:[%s2226 + $0x168] sm:$0xff]
        %v2273 = vld [vmem:[%s2226 + $0x170] sm:$0xff]
        %v2274 = vld [vmem:[%s2226 + $0x178] sm:$0xff]
        %v2275 = vld [vmem:[%s2226 + $0x180] sm:$0xff]
        %v2276 = vld [vmem:[%s2226 + $0x188] sm:$0xff]
        %v2277 = vld [vmem:[%s2226 + $0x190] sm:$0xff]
        %v2278 = vld [vmem:[%s2226 + $0x198] sm:$0xff]
        %v2279 = vld [vmem:[%s2226 + $0x1a0] sm:$0xff]
        %v2280 = vld [vmem:[%s2226 + $0x1a8] sm:$0xff]
        %v2281 = vld [vmem:[%s2226 + $0x1b0] sm:$0xff]
        %v2282 = vld [vmem:[%s2226 + $0x1b8] sm:$0xff]
        %v2283 = vld [vmem:[%s2226 + $0x1c0] sm:$0xff]
        %v2284 = vld [vmem:[%s2226 + $0x1c8] sm:$0xff]
        %v2285 = vld [vmem:[%s2226 + $0x1d0] sm:$0xff]
        %v2286 = vld [vmem:[%s2226 + $0x1d8] sm:$0xff]
        %v2287 = vld [vmem:[%s2226 + $0x1e0] sm:$0xff]
        %v2288 = vld [vmem:[%s2226 + $0x1e8] sm:$0xff]
        %v2289 = vld [vmem:[%s2226 + $0x1f0] sm:$0xff]
        %v2290 = vld [vmem:[%s2226 + $0x1f8] sm:$0xff]
        %2291 = vmatprep.subr.mxu0 0.0
        %2292 = vmatpush1.msra.mxu0 %v2227
        %2293 = vmatprep.subr.mxu0 0.0
        %2294 = vmatpush1.msra.mxu0 %v2228
        %2295 = vmatprep.subr.mxu0 0.0
        %2296 = vmatpush1.msra.mxu0 %v2229
        %2297 = vmatprep.subr.mxu0 0.0
        %2298 = vmatpush1.msra.mxu0 %v2230
        %2299 = vmatprep.subr.mxu0 0.0
        %2300 = vmatpush1.msra.mxu0 %v2231
        %2301 = vmatprep.subr.mxu0 0.0
        %2302 = vmatpush1.msra.mxu0 %v2232
        %2303 = vmatprep.subr.mxu0 0.0
        %2304 = vmatpush1.msra.mxu0 %v2233
        %2305 = vmatprep.subr.mxu0 0.0
        %2306 = vmatpush1.msra.mxu0 %v2234
        %2307 = vmatprep.subr.mxu0 0.0
        %2308 = vmatpush1.msra.mxu0 %v2235
        %2309 = vmatprep.subr.mxu0 0.0
        %2310 = vmatpush1.msra.mxu0 %v2236
        %2311 = vmatprep.subr.mxu0 0.0
        %2312 = vmatpush1.msra.mxu0 %v2237
        %2313 = vmatprep.subr.mxu0 0.0
        %2314 = vmatpush1.msra.mxu0 %v2238
        %2315 = vmatprep.subr.mxu0 0.0
        %2316 = vmatpush1.msra.mxu0 %v2239
        %2317 = vmatprep.subr.mxu0 0.0
        %2318 = vmatpush1.msra.mxu0 %v2240
        %2319 = vmatprep.subr.mxu0 0.0
        %2320 = vmatpush1.msra.mxu0 %v2241
        %2321 = vmatprep.subr.mxu0 0.0
        %2322 = vmatpush1.msra.mxu0 %v2242
        %2323 = vmatprep.subr.mxu0 0.0
        %2324 = vmatpush1.msra.mxu0 %v2243
        %2325 = vmatprep.subr.mxu0 0.0
        %2326 = vmatpush1.msra.mxu0 %v2244
        %2327 = vmatprep.subr.mxu0 0.0
        %2328 = vmatpush1.msra.mxu0 %v2245
        %2329 = vmatprep.subr.mxu0 0.0
        %2330 = vmatpush1.msra.mxu0 %v2246
        %2331 = vmatprep.subr.mxu0 0.0
        %2332 = vmatpush1.msra.mxu0 %v2247
        %2333 = vmatprep.subr.mxu0 0.0
        %2334 = vmatpush1.msra.mxu0 %v2248
        %2335 = vmatprep.subr.mxu0 0.0
        %2336 = vmatpush1.msra.mxu0 %v2249
        %2337 = vmatprep.subr.mxu0 0.0
        %2338 = vmatpush1.msra.mxu0 %v2250
        %2339 = vmatprep.subr.mxu0 0.0
        %2340 = vmatpush1.msra.mxu0 %v2251
        %2341 = vmatprep.subr.mxu0 0.0
        %2342 = vmatpush1.msra.mxu0 %v2252
        %2343 = vmatprep.subr.mxu0 0.0
        %2344 = vmatpush1.msra.mxu0 %v2253
        %2345 = vmatprep.subr.mxu0 0.0
        %2346 = vmatpush1.msra.mxu0 %v2254
        %2347 = vmatprep.subr.mxu0 0.0
        %2348 = vmatpush1.msra.mxu0 %v2255
        %2349 = vmatprep.subr.mxu0 0.0
        %2350 = vmatpush1.msra.mxu0 %v2256
        %2351 = vmatprep.subr.mxu0 0.0
        %2352 = vmatpush1.msra.mxu0 %v2257
        %2353 = vmatprep.subr.mxu0 0.0
        %2354 = vmatpush1.msra.mxu0 %v2258
        %2355 = vmatprep.mubr.f32.mxu0 %v2223
        %2356 = vmatmul.mubr.f32.gmra.mrb[0].mxu0 %v2222
        %v2357 = vpop.f32.mrb[0].mxu0
        %v2358 = vadd.f32 0.0, %v2357
        %v2359 = vpop.f32.mrb[0].mxu0
        %2360 = vdwg.mxu0
        %2361 = vmatprep.subr.mxu0 0.0
        %2362 = vmatpush1.msra.mxu0 %v2259
        %2363 = vmatprep.subr.mxu0 0.0
        %2364 = vmatpush1.msra.mxu0 %v2260
        %2365 = vmatprep.subr.mxu0 0.0
        %2366 = vmatpush1.msra.mxu0 %v2261
        %2367 = vmatprep.subr.mxu0 0.0
        %2368 = vmatpush1.msra.mxu0 %v2262
        %2369 = vmatprep.subr.mxu0 0.0
        %2370 = vmatpush1.msra.mxu0 %v2263
        %2371 = vmatprep.subr.mxu0 0.0
        %2372 = vmatpush1.msra.mxu0 %v2264
        %2373 = vmatprep.subr.mxu0 0.0
        %2374 = vmatpush1.msra.mxu0 %v2265
        %2375 = vmatprep.subr.mxu0 0.0
        %2376 = vmatpush1.msra.mxu0 %v2266
        %2377 = vmatprep.subr.mxu0 0.0
        %2378 = vmatpush1.msra.mxu0 %v2267
        %2379 = vmatprep.subr.mxu0 0.0
        %2380 = vmatpush1.msra.mxu0 %v2268
        %2381 = vmatprep.subr.mxu0 0.0
        %2382 = vmatpush1.msra.mxu0 %v2269
        %2383 = vmatprep.subr.mxu0 0.0
        %2384 = vmatpush1.msra.mxu0 %v2270
        %2385 = vmatprep.subr.mxu0 0.0
        %2386 = vmatpush1.msra.mxu0 %v2271
        %2387 = vmatprep.subr.mxu0 0.0
        %2388 = vmatpush1.msra.mxu0 %v2272
        %2389 = vmatprep.subr.mxu0 0.0
        %2390 = vmatpush1.msra.mxu0 %v2273
        %2391 = vmatprep.subr.mxu0 0.0
        %2392 = vmatpush1.msra.mxu0 %v2274
        %2393 = vmatprep.subr.mxu0 0.0
        %2394 = vmatpush1.msra.mxu0 %v2275
        %2395 = vmatprep.subr.mxu0 0.0
        %2396 = vmatpush1.msra.mxu0 %v2276
        %2397 = vmatprep.subr.mxu0 0.0
        %2398 = vmatpush1.msra.mxu0 %v2277
        %2399 = vmatprep.subr.mxu0 0.0
        %2400 = vmatpush1.msra.mxu0 %v2278
        %2401 = vmatprep.subr.mxu0 0.0
        %2402 = vmatpush1.msra.mxu0 %v2279
        %2403 = vmatprep.subr.mxu0 0.0
        %2404 = vmatpush1.msra.mxu0 %v2280
        %2405 = vmatprep.subr.mxu0 0.0
        %2406 = vmatpush1.msra.mxu0 %v2281
        %2407 = vmatprep.subr.mxu0 0.0
        %2408 = vmatpush1.msra.mxu0 %v2282
        %2409 = vmatprep.subr.mxu0 0.0
        %2410 = vmatpush1.msra.mxu0 %v2283
        %2411 = vmatprep.subr.mxu0 0.0
        %2412 = vmatpush1.msra.mxu0 %v2284
        %2413 = vmatprep.subr.mxu0 0.0
        %2414 = vmatpush1.msra.mxu0 %v2285
        %2415 = vmatprep.subr.mxu0 0.0
        %2416 = vmatpush1.msra.mxu0 %v2286
        %2417 = vmatprep.subr.mxu0 0.0
        %2418 = vmatpush1.msra.mxu0 %v2287
        %2419 = vmatprep.subr.mxu0 0.0
        %2420 = vmatpush1.msra.mxu0 %v2288
        %2421 = vmatprep.subr.mxu0 0.0
        %2422 = vmatpush1.msra.mxu0 %v2289
        %2423 = vmatprep.subr.mxu0 0.0
        %2424 = vmatpush1.msra.mxu0 %v2290
        %2425 = vmatprep.mubr.f32.mxu0 %v2225
        %2426 = vmatmul.mubr.f32.gmra.mrb[0].mxu0 %v2224
        %v2427 = vpop.f32.mrb[0].mxu0
        %v2428 = vadd.f32 %v2358, %v2427
        %v2429 = vpop.f32.mrb[0].mxu0
        %2430 = vdwg.mxu0
        %v2431 = vadd.f32 %v2037, %v2428
        %s2432 = scalar_lea.vmem %s5, 96
        %v2433 = vld [vmem:[%s2432] sm:$0xff]
        %v2434 = vld [vmem:[%s2432 + $0x8] sm:$0xff]
        %v2435 = vld [vmem:[%s2432 + $0x10] sm:$0xff]
        %v2436 = vld [vmem:[%s2432 + $0x18] sm:$0xff]
        %v2437 = vld [vmem:[%s2432 + $0x80] sm:$0xff]
        %v2438 = vld [vmem:[%s2432 + $0x88] sm:$0xff]
        %v2439 = vld [vmem:[%s2432 + $0x90] sm:$0xff]
        %v2440 = vld [vmem:[%s2432 + $0x98] sm:$0xff]
        %v2441 = vld [vmem:[%s2432 + $0x100] sm:$0xff]
        %v2442 = vld [vmem:[%s2432 + $0x108] sm:$0xff]
        %v2443 = vld [vmem:[%s2432 + $0x110] sm:$0xff]
        %v2444 = vld [vmem:[%s2432 + $0x118] sm:$0xff]
        %v2445 = vld [vmem:[%s2432 + $0x180] sm:$0xff]
        %v2446 = vld [vmem:[%s2432 + $0x188] sm:$0xff]
        %v2447 = vld [vmem:[%s2432 + $0x190] sm:$0xff]
        %v2448 = vld [vmem:[%s2432 + $0x198] sm:$0xff]
        %s2449 = scalar_lea.vmem %s6, 12
        %v2450 = vld [vmem:[%s2449] sm:$0xf]
        %v2452 = vlaneseq
        %v2453 = vshrl.u32 %v2452, 7
        %v2454 = vsub.s32 0, %v2453
        %v2455 = vrot.slane %v2450, %v2454
        %v2456 = vlaneseq
        %v2457 = vshrl.u32 %v2456, 7
        %v2458 = vsub.s32 1, %v2457
        %v2459 = vrot.slane %v2450, %v2458
        %v2460 = vlaneseq
        %v2461 = vshrl.u32 %v2460, 7
        %v2462 = vsub.s32 2, %v2461
        %v2463 = vrot.slane %v2450, %v2462
        %v2464 = vlaneseq
        %v2465 = vshrl.u32 %v2464, 7
        %v2466 = vsub.s32 3, %v2465
        %v2467 = vrot.slane %v2450, %v2466
        %2472 = vmatprep.subr.mxu0 %v2434
        %2473 = vmatpush1.msra.mxu0 %v2433
        %2474 = vmatprep.subr.mxu0 %v2438
        %2475 = vmatpush1.msra.mxu0 %v2437
        %2476 = vmatprep.subr.mxu0 %v2442
        %2477 = vmatpush1.msra.mxu0 %v2441
        %2478 = vmatprep.subr.mxu0 %v2446
        %2479 = vmatpush1.msra.mxu0 %v2445
        %2480 = vmatprep.subr.mxu0 0.0
        %2481 = vmatpush1.msra.mxu0 0.0
        %2482 = vmatprep.subr.mxu0 0.0
        %2483 = vmatpush1.msra.mxu0 0.0
        %2484 = vmatprep.subr.mxu0 0.0
        %2485 = vmatpush1.msra.mxu0 0.0
        %2486 = vmatprep.subr.mxu0 0.0
        %2487 = vmatpush1.msra.mxu0 0.0
        %2488 = vmatprep.subr.mxu0 0.0
        %2489 = vmatpush1.msra.mxu0 0.0
        %2490 = vmatprep.subr.mxu0 0.0
        %2491 = vmatpush1.msra.mxu0 0.0
        %2492 = vmatprep.subr.mxu0 0.0
        %2493 = vmatpush1.msra.mxu0 0.0
        %2494 = vmatprep.subr.mxu0 0.0
        %2495 = vmatpush1.msra.mxu0 0.0
        %2496 = vmatprep.subr.mxu0 0.0
        %2497 = vmatpush1.msra.mxu0 0.0
        %2498 = vmatprep.subr.mxu0 0.0
        %2499 = vmatpush1.msra.mxu0 0.0
        %2500 = vmatprep.subr.mxu0 0.0
        %2501 = vmatpush1.msra.mxu0 0.0
        %2502 = vmatprep.subr.mxu0 0.0
        %2503 = vmatpush1.msra.mxu0 0.0
        %2504 = vmatprep.subr.mxu0 0.0
        %2505 = vmatpush1.msra.mxu0 0.0
        %2506 = vmatprep.subr.mxu0 0.0
        %2507 = vmatpush1.msra.mxu0 0.0
        %2508 = vmatprep.subr.mxu0 0.0
        %2509 = vmatpush1.msra.mxu0 0.0
        %2510 = vmatprep.subr.mxu0 0.0
        %2511 = vmatpush1.msra.mxu0 0.0
        %2512 = vmatprep.subr.mxu0 0.0
        %2513 = vmatpush1.msra.mxu0 0.0
        %2514 = vmatprep.subr.mxu0 0.0
        %2515 = vmatpush1.msra.mxu0 0.0
        %2516 = vmatprep.subr.mxu0 0.0
        %2517 = vmatpush1.msra.mxu0 0.0
        %2518 = vmatprep.subr.mxu0 0.0
        %2519 = vmatpush1.msra.mxu0 0.0
        %2520 = vmatprep.subr.mxu0 0.0
        %2521 = vmatpush1.msra.mxu0 0.0
        %2522 = vmatprep.subr.mxu0 0.0
        %2523 = vmatpush1.msra.mxu0 0.0
        %2524 = vmatprep.subr.mxu0 0.0
        %2525 = vmatpush1.msra.mxu0 0.0
        %2526 = vmatprep.subr.mxu0 0.0
        %2527 = vmatpush1.msra.mxu0 0.0
        %2528 = vmatprep.subr.mxu0 0.0
        %2529 = vmatpush1.msra.mxu0 0.0
        %2530 = vmatprep.subr.mxu0 0.0
        %2531 = vmatpush1.msra.mxu0 0.0
        %2532 = vmatprep.subr.mxu0 0.0
        %2533 = vmatpush1.msra.mxu0 0.0
        %2534 = vmatprep.subr.mxu0 0.0
        %2535 = vmatpush1.msra.mxu0 0.0
        %2536 = vmatprep.mubr.f32.mxu0 0.0
        %2537 = vmatmul.mubr.f32.gmra.mrb[0].mxu0 %v1297
        %v2538 = vpop.f32.mrb[0].mxu0
        %v2539 = vadd.f32 %v2455, %v2538
        %v2540 = vpop.f32.mrb[0].mxu0
        %v2541 = vadd.f32 %v2459, %v2540
        %2542 = vdwg.mxu0
        %2543 = vmatprep.subr.mxu0 %v2436
        %2544 = vmatpush1.msra.mxu0 %v2435
        %2545 = vmatprep.subr.mxu0 %v2440
        %2546 = vmatpush1.msra.mxu0 %v2439
        %2547 = vmatprep.subr.mxu0 %v2444
        %2548 = vmatpush1.msra.mxu0 %v2443
        %2549 = vmatprep.subr.mxu0 %v2448
        %2550 = vmatpush1.msra.mxu0 %v2447
        %2551 = vmatprep.subr.mxu0 0.0
        %2552 = vmatpush1.msra.mxu0 0.0
        %2553 = vmatprep.subr.mxu0 0.0
        %2554 = vmatpush1.msra.mxu0 0.0
        %2555 = vmatprep.subr.mxu0 0.0
        %2556 = vmatpush1.msra.mxu0 0.0
        %2557 = vmatprep.subr.mxu0 0.0
        %2558 = vmatpush1.msra.mxu0 0.0
        %2559 = vmatprep.subr.mxu0 0.0
        %2560 = vmatpush1.msra.mxu0 0.0
        %2561 = vmatprep.subr.mxu0 0.0
        %2562 = vmatpush1.msra.mxu0 0.0
        %2563 = vmatprep.subr.mxu0 0.0
        %2564 = vmatpush1.msra.mxu0 0.0
        %2565 = vmatprep.subr.mxu0 0.0
        %2566 = vmatpush1.msra.mxu0 0.0
        %2567 = vmatprep.subr.mxu0 0.0
        %2568 = vmatpush1.msra.mxu0 0.0
        %2569 = vmatprep.subr.mxu0 0.0
        %2570 = vmatpush1.msra.mxu0 0.0
        %2571 = vmatprep.subr.mxu0 0.0
        %2572 = vmatpush1.msra.mxu0 0.0
        %2573 = vmatprep.subr.mxu0 0.0
        %2574 = vmatpush1.msra.mxu0 0.0
        %2575 = vmatprep.subr.mxu0 0.0
        %2576 = vmatpush1.msra.mxu0 0.0
        %2577 = vmatprep.subr.mxu0 0.0
        %2578 = vmatpush1.msra.mxu0 0.0
        %2579 = vmatprep.subr.mxu0 0.0
        %2580 = vmatpush1.msra.mxu0 0.0
        %2581 = vmatprep.subr.mxu0 0.0
        %2582 = vmatpush1.msra.mxu0 0.0
        %2583 = vmatprep.subr.mxu0 0.0
        %2584 = vmatpush1.msra.mxu0 0.0
        %2585 = vmatprep.subr.mxu0 0.0
        %2586 = vmatpush1.msra.mxu0 0.0
        %2587 = vmatprep.subr.mxu0 0.0
        %2588 = vmatpush1.msra.mxu0 0.0
        %2589 = vmatprep.subr.mxu0 0.0
        %2590 = vmatpush1.msra.mxu0 0.0
        %2591 = vmatprep.subr.mxu0 0.0
        %2592 = vmatpush1.msra.mxu0 0.0
        %2593 = vmatprep.subr.mxu0 0.0
        %2594 = vmatpush1.msra.mxu0 0.0
        %2595 = vmatprep.subr.mxu0 0.0
        %2596 = vmatpush1.msra.mxu0 0.0
        %2597 = vmatprep.subr.mxu0 0.0
        %2598 = vmatpush1.msra.mxu0 0.0
        %2599 = vmatprep.subr.mxu0 0.0
        %2600 = vmatpush1.msra.mxu0 0.0
        %2601 = vmatprep.subr.mxu0 0.0
        %2602 = vmatpush1.msra.mxu0 0.0
        %2603 = vmatprep.subr.mxu0 0.0
        %2604 = vmatpush1.msra.mxu0 0.0
        %2605 = vmatprep.subr.mxu0 0.0
        %2606 = vmatpush1.msra.mxu0 0.0
        %2607 = vmatprep.mubr.f32.mxu0 0.0
        %2608 = vmatmul.mubr.f32.gmra.mrb[0].mxu0 %v1297
        %v2609 = vpop.f32.mrb[0].mxu0
        %v2610 = vadd.f32 %v2463, %v2609
        %v2611 = vpop.f32.mrb[0].mxu0
        %v2612 = vadd.f32 %v2467, %v2611
        %2613 = vdwg.mxu0
        %v2614 = vmax.f32 %v2539, 0.0
        %v2615 = vmax.f32 %v2541, 0.0
        %v2616 = vmax.f32 %v2610, 0.0
        %v2617 = vmax.f32 %v2612, 0.0
        %s2618 = scalar_lea.vmem %s7, 1536
        %v2619 = vld [vmem:[%s2618] sm:$0xff]
        %v2620 = vld [vmem:[%s2618 + $0x8] sm:$0xff]
        %v2621 = vld [vmem:[%s2618 + $0x10] sm:$0xff]
        %v2622 = vld [vmem:[%s2618 + $0x18] sm:$0xff]
        %v2623 = vld [vmem:[%s2618 + $0x20] sm:$0xff]
        %v2624 = vld [vmem:[%s2618 + $0x28] sm:$0xff]
        %v2625 = vld [vmem:[%s2618 + $0x30] sm:$0xff]
        %v2626 = vld [vmem:[%s2618 + $0x38] sm:$0xff]
        %v2627 = vld [vmem:[%s2618 + $0x40] sm:$0xff]
        %v2628 = vld [vmem:[%s2618 + $0x48] sm:$0xff]
        %v2629 = vld [vmem:[%s2618 + $0x50] sm:$0xff]
        %v2630 = vld [vmem:[%s2618 + $0x58] sm:$0xff]
        %v2631 = vld [vmem:[%s2618 + $0x60] sm:$0xff]
        %v2632 = vld [vmem:[%s2618 + $0x68] sm:$0xff]
        %v2633 = vld [vmem:[%s2618 + $0x70] sm:$0xff]
        %v2634 = vld [vmem:[%s2618 + $0x78] sm:$0xff]
        %v2635 = vld [vmem:[%s2618 + $0x80] sm:$0xff]
        %v2636 = vld [vmem:[%s2618 + $0x88] sm:$0xff]
        %v2637 = vld [vmem:[%s2618 + $0x90] sm:$0xff]
        %v2638 = vld [vmem:[%s2618 + $0x98] sm:$0xff]
        %v2639 = vld [vmem:[%s2618 + $0xa0] sm:$0xff]
        %v2640 = vld [vmem:[%s2618 + $0xa8] sm:$0xff]
        %v2641 = vld [vmem:[%s2618 + $0xb0] sm:$0xff]
        %v2642 = vld [vmem:[%s2618 + $0xb8] sm:$0xff]
        %v2643 = vld [vmem:[%s2618 + $0xc0] sm:$0xff]
        %v2644 = vld [vmem:[%s2618 + $0xc8] sm:$0xff]
        %v2645 = vld [vmem:[%s2618 + $0xd0] sm:$0xff]
        %v2646 = vld [vmem:[%s2618 + $0xd8] sm:$0xff]
        %v2647 = vld [vmem:[%s2618 + $0xe0] sm:$0xff]
        %v2648 = vld [vmem:[%s2618 + $0xe8] sm:$0xff]
        %v2649 = vld [vmem:[%s2618 + $0xf0] sm:$0xff]
        %v2650 = vld [vmem:[%s2618 + $0xf8] sm:$0xff]
        %v2651 = vld [vmem:[%s2618 + $0x100] sm:$0xff]
        %v2652 = vld [vmem:[%s2618 + $0x108] sm:$0xff]
        %v2653 = vld [vmem:[%s2618 + $0x110] sm:$0xff]
        %v2654 = vld [vmem:[%s2618 + $0x118] sm:$0xff]
        %v2655 = vld [vmem:[%s2618 + $0x120] sm:$0xff]
        %v2656 = vld [vmem:[%s2618 + $0x128] sm:$0xff]
        %v2657 = vld [vmem:[%s2618 + $0x130] sm:$0xff]
        %v2658 = vld [vmem:[%s2618 + $0x138] sm:$0xff]
        %v2659 = vld [vmem:[%s2618 + $0x140] sm:$0xff]
        %v2660 = vld [vmem:[%s2618 + $0x148] sm:$0xff]
        %v2661 = vld [vmem:[%s2618 + $0x150] sm:$0xff]
        %v2662 = vld [vmem:[%s2618 + $0x158] sm:$0xff]
        %v2663 = vld [vmem:[%s2618 + $0x160] sm:$0xff]
        %v2664 = vld [vmem:[%s2618 + $0x168] sm:$0xff]
        %v2665 = vld [vmem:[%s2618 + $0x170] sm:$0xff]
        %v2666 = vld [vmem:[%s2618 + $0x178] sm:$0xff]
        %v2667 = vld [vmem:[%s2618 + $0x180] sm:$0xff]
        %v2668 = vld [vmem:[%s2618 + $0x188] sm:$0xff]
        %v2669 = vld [vmem:[%s2618 + $0x190] sm:$0xff]
        %v2670 = vld [vmem:[%s2618 + $0x198] sm:$0xff]
        %v2671 = vld [vmem:[%s2618 + $0x1a0] sm:$0xff]
        %v2672 = vld [vmem:[%s2618 + $0x1a8] sm:$0xff]
        %v2673 = vld [vmem:[%s2618 + $0x1b0] sm:$0xff]
        %v2674 = vld [vmem:[%s2618 + $0x1b8] sm:$0xff]
        %v2675 = vld [vmem:[%s2618 + $0x1c0] sm:$0xff]
        %v2676 = vld [vmem:[%s2618 + $0x1c8] sm:$0xff]
        %v2677 = vld [vmem:[%s2618 + $0x1d0] sm:$0xff]
        %v2678 = vld [vmem:[%s2618 + $0x1d8] sm:$0xff]
        %v2679 = vld [vmem:[%s2618 + $0x1e0] sm:$0xff]
        %v2680 = vld [vmem:[%s2618 + $0x1e8] sm:$0xff]
        %v2681 = vld [vmem:[%s2618 + $0x1f0] sm:$0xff]
        %v2682 = vld [vmem:[%s2618 + $0x1f8] sm:$0xff]
        %2683 = vmatprep.subr.mxu0 0.0
        %2684 = vmatpush1.msra.mxu0 %v2619
        %2685 = vmatprep.subr.mxu0 0.0
        %2686 = vmatpush1.msra.mxu0 %v2620
        %2687 = vmatprep.subr.mxu0 0.0
        %2688 = vmatpush1.msra.mxu0 %v2621
        %2689 = vmatprep.subr.mxu0 0.0
        %2690 = vmatpush1.msra.mxu0 %v2622
        %2691 = vmatprep.subr.mxu0 0.0
        %2692 = vmatpush1.msra.mxu0 %v2623
        %2693 = vmatprep.subr.mxu0 0.0
        %2694 = vmatpush1.msra.mxu0 %v2624
        %2695 = vmatprep.subr.mxu0 0.0
        %2696 = vmatpush1.msra.mxu0 %v2625
        %2697 = vmatprep.subr.mxu0 0.0
        %2698 = vmatpush1.msra.mxu0 %v2626
        %2699 = vmatprep.subr.mxu0 0.0
        %2700 = vmatpush1.msra.mxu0 %v2627
        %2701 = vmatprep.subr.mxu0 0.0
        %2702 = vmatpush1.msra.mxu0 %v2628
        %2703 = vmatprep.subr.mxu0 0.0
        %2704 = vmatpush1.msra.mxu0 %v2629
        %2705 = vmatprep.subr.mxu0 0.0
        %2706 = vmatpush1.msra.mxu0 %v2630
        %2707 = vmatprep.subr.mxu0 0.0
        %2708 = vmatpush1.msra.mxu0 %v2631
        %2709 = vmatprep.subr.mxu0 0.0
        %2710 = vmatpush1.msra.mxu0 %v2632
        %2711 = vmatprep.subr.mxu0 0.0
        %2712 = vmatpush1.msra.mxu0 %v2633
        %2713 = vmatprep.subr.mxu0 0.0
        %2714 = vmatpush1.msra.mxu0 %v2634
        %2715 = vmatprep.subr.mxu0 0.0
        %2716 = vmatpush1.msra.mxu0 %v2635
        %2717 = vmatprep.subr.mxu0 0.0
        %2718 = vmatpush1.msra.mxu0 %v2636
        %2719 = vmatprep.subr.mxu0 0.0
        %2720 = vmatpush1.msra.mxu0 %v2637
        %2721 = vmatprep.subr.mxu0 0.0
        %2722 = vmatpush1.msra.mxu0 %v2638
        %2723 = vmatprep.subr.mxu0 0.0
        %2724 = vmatpush1.msra.mxu0 %v2639
        %2725 = vmatprep.subr.mxu0 0.0
        %2726 = vmatpush1.msra.mxu0 %v2640
        %2727 = vmatprep.subr.mxu0 0.0
        %2728 = vmatpush1.msra.mxu0 %v2641
        %2729 = vmatprep.subr.mxu0 0.0
        %2730 = vmatpush1.msra.mxu0 %v2642
        %2731 = vmatprep.subr.mxu0 0.0
        %2732 = vmatpush1.msra.mxu0 %v2643
        %2733 = vmatprep.subr.mxu0 0.0
        %2734 = vmatpush1.msra.mxu0 %v2644
        %2735 = vmatprep.subr.mxu0 0.0
        %2736 = vmatpush1.msra.mxu0 %v2645
        %2737 = vmatprep.subr.mxu0 0.0
        %2738 = vmatpush1.msra.mxu0 %v2646
        %2739 = vmatprep.subr.mxu0 0.0
        %2740 = vmatpush1.msra.mxu0 %v2647
        %2741 = vmatprep.subr.mxu0 0.0
        %2742 = vmatpush1.msra.mxu0 %v2648
        %2743 = vmatprep.subr.mxu0 0.0
        %2744 = vmatpush1.msra.mxu0 %v2649
        %2745 = vmatprep.subr.mxu0 0.0
        %2746 = vmatpush1.msra.mxu0 %v2650
        %2747 = vmatprep.mubr.f32.mxu0 %v2615
        %2748 = vmatmul.mubr.f32.gmra.mrb[0].mxu0 %v2614
        %v2749 = vpop.f32.mrb[0].mxu0
        %v2750 = vadd.f32 0.0, %v2749
        %v2751 = vpop.f32.mrb[0].mxu0
        %2752 = vdwg.mxu0
        %2753 = vmatprep.subr.mxu0 0.0
        %2754 = vmatpush1.msra.mxu0 %v2651
        %2755 = vmatprep.subr.mxu0 0.0
        %2756 = vmatpush1.msra.mxu0 %v2652
        %2757 = vmatprep.subr.mxu0 0.0
        %2758 = vmatpush1.msra.mxu0 %v2653
        %2759 = vmatprep.subr.mxu0 0.0
        %2760 = vmatpush1.msra.mxu0 %v2654
        %2761 = vmatprep.subr.mxu0 0.0
        %2762 = vmatpush1.msra.mxu0 %v2655
        %2763 = vmatprep.subr.mxu0 0.0
        %2764 = vmatpush1.msra.mxu0 %v2656
        %2765 = vmatprep.subr.mxu0 0.0
        %2766 = vmatpush1.msra.mxu0 %v2657
        %2767 = vmatprep.subr.mxu0 0.0
        %2768 = vmatpush1.msra.mxu0 %v2658
        %2769 = vmatprep.subr.mxu0 0.0
        %2770 = vmatpush1.msra.mxu0 %v2659
        %2771 = vmatprep.subr.mxu0 0.0
        %2772 = vmatpush1.msra.mxu0 %v2660
        %2773 = vmatprep.subr.mxu0 0.0
        %2774 = vmatpush1.msra.mxu0 %v2661
        %2775 = vmatprep.subr.mxu0 0.0
        %2776 = vmatpush1.msra.mxu0 %v2662
        %2777 = vmatprep.subr.mxu0 0.0
        %2778 = vmatpush1.msra.mxu0 %v2663
        %2779 = vmatprep.subr.mxu0 0.0
        %2780 = vmatpush1.msra.mxu0 %v2664
        %2781 = vmatprep.subr.mxu0 0.0
        %2782 = vmatpush1.msra.mxu0 %v2665
        %2783 = vmatprep.subr.mxu0 0.0
        %2784 = vmatpush1.msra.mxu0 %v2666
        %2785 = vmatprep.subr.mxu0 0.0
        %2786 = vmatpush1.msra.mxu0 %v2667
        %2787 = vmatprep.subr.mxu0 0.0
        %2788 = vmatpush1.msra.mxu0 %v2668
        %2789 = vmatprep.subr.mxu0 0.0
        %2790 = vmatpush1.msra.mxu0 %v2669
        %2791 = vmatprep.subr.mxu0 0.0
        %2792 = vmatpush1.msra.mxu0 %v2670
        %2793 = vmatprep.subr.mxu0 0.0
        %2794 = vmatpush1.msra.mxu0 %v2671
        %2795 = vmatprep.subr.mxu0 0.0
        %2796 = vmatpush1.msra.mxu0 %v2672
        %2797 = vmatprep.subr.mxu0 0.0
        %2798 = vmatpush1.msra.mxu0 %v2673
        %2799 = vmatprep.subr.mxu0 0.0
        %2800 = vmatpush1.msra.mxu0 %v2674
        %2801 = vmatprep.subr.mxu0 0.0
        %2802 = vmatpush1.msra.mxu0 %v2675
        %2803 = vmatprep.subr.mxu0 0.0
        %2804 = vmatpush1.msra.mxu0 %v2676
        %2805 = vmatprep.subr.mxu0 0.0
        %2806 = vmatpush1.msra.mxu0 %v2677
        %2807 = vmatprep.subr.mxu0 0.0
        %2808 = vmatpush1.msra.mxu0 %v2678
        %2809 = vmatprep.subr.mxu0 0.0
        %2810 = vmatpush1.msra.mxu0 %v2679
        %2811 = vmatprep.subr.mxu0 0.0
        %2812 = vmatpush1.msra.mxu0 %v2680
        %2813 = vmatprep.subr.mxu0 0.0
        %2814 = vmatpush1.msra.mxu0 %v2681
        %2815 = vmatprep.subr.mxu0 0.0
        %2816 = vmatpush1.msra.mxu0 %v2682
        %2817 = vmatprep.mubr.f32.mxu0 %v2617
        %2818 = vmatmul.mubr.f32.gmra.mrb[0].mxu0 %v2616
        %v2819 = vpop.f32.mrb[0].mxu0
        %v2820 = vadd.f32 %v2750, %v2819
        %v2821 = vpop.f32.mrb[0].mxu0
        %2822 = vdwg.mxu0
        %v2823 = vadd.f32 %v2431, %v2820
        %v2824 = vadd.f32 %v1257, %v2823
        %v2825 = vlaneseq
        %v2826 = vshrl.u32 %v2825, 7
        %v2827 = vsub.s32 0, %v2826
        %v2828 = vrot.slane %v396, %v2827
        %v2829 = vadd.f32 %v2824, %v2828
        %v2830 = vsel %vm424, %v2829, 0.0
        %2831 = vadd.xlane.f32.xlu0 %v2830
        %v2832 = vpop.xlane.xlu0 %2831
        %v2833 = vmul.f32 %v2832, %v1237
        %v2834 = vsub.f32 %v2829, %v2833
        %v2835 = vmul.f32 %v2834, %v2834
        %v2836 = vsel %vm424, %v2835, 0.0
        %2837 = vadd.xlane.f32.xlu0 %v2836
        %v2838 = vpop.xlane.xlu0 %2837
        %v2839 = vmul.f32 %v2838, %v1237
        %v2840 = vadd.f32 %v2839, 1e-05
        %v2841 = vrsqrt.pop %v2840
        %v2842 = vmul.f32 %v2834, %v2841
        %v2843 = vlaneseq
        %v2844 = vshrl.u32 %v2843, 7
        %v2845 = vsub.s32 0, %v2844
        %v2846 = vrot.slane %v397, %v2845
        %v2847 = vmul.f32 %v2842, %v2846
        %v2848 = vlaneseq
        %v2849 = vshrl.u32 %v2848, 7
        %v2850 = vsub.s32 0, %v2849
        %v2851 = vrot.slane %v398, %v2850
        %v2852 = vadd.f32 %v2847, %v2851
        %v2853 = vld [vmem:[%s8] sm:$0xff]
        %v2854 = vld [vmem:[%s8 + $0x8] sm:$0xff]
        %v2855 = vld [vmem:[%s8 + $0x10] sm:$0xff]
        %v2856 = vld [vmem:[%s8 + $0x18] sm:$0xff]
        %v2857 = vld [vmem:[%s9] sm:$0x1]
        %v2859 = vlaneseq
        %v2860 = vshrl.u32 %v2859, 7
        %v2861 = vsub.s32 0, %v2860
        %v2862 = vrot.slane %v2857, %v2861
        %v2865 = vsel %vm424, %v2852, 0
        %2867 = vmatprep.subr.mxu0 0.0
        %2868 = vmatpush1.msra.mxu0 %v2853
        %2869 = vmatprep.subr.mxu0 0.0
        %2870 = vmatpush1.msra.mxu0 %v2854
        %2871 = vmatprep.subr.mxu0 0.0
        %2872 = vmatpush1.msra.mxu0 %v2855
        %2873 = vmatprep.subr.mxu0 0.0
        %2874 = vmatpush1.msra.mxu0 %v2856
        %2875 = vmatprep.subr.mxu0 0.0
        %2876 = vmatpush1.msra.mxu0 0.0
        %2877 = vmatprep.subr.mxu0 0.0
        %2878 = vmatpush1.msra.mxu0 0.0
        %2879 = vmatprep.subr.mxu0 0.0
        %2880 = vmatpush1.msra.mxu0 0.0
        %2881 = vmatprep.subr.mxu0 0.0
        %2882 = vmatpush1.msra.mxu0 0.0
        %2883 = vmatprep.subr.mxu0 0.0
        %2884 = vmatpush1.msra.mxu0 0.0
        %2885 = vmatprep.subr.mxu0 0.0
        %2886 = vmatpush1.msra.mxu0 0.0
        %2887 = vmatprep.subr.mxu0 0.0
        %2888 = vmatpush1.msra.mxu0 0.0
        %2889 = vmatprep.subr.mxu0 0.0
        %2890 = vmatpush1.msra.mxu0 0.0
        %2891 = vmatprep.subr.mxu0 0.0
        %2892 = vmatpush1.msra.mxu0 0.0
        %2893 = vmatprep.subr.mxu0 0.0
        %2894 = vmatpush1.msra.mxu0 0.0
        %2895 = vmatprep.subr.mxu0 0.0
        %2896 = vmatpush1.msra.mxu0 0.0
        %2897 = vmatprep.subr.mxu0 0.0
        %2898 = vmatpush1.msra.mxu0 0.0
        %2899 = vmatprep.subr.mxu0 0.0
        %2900 = vmatpush1.msra.mxu0 0.0
        %2901 = vmatprep.subr.mxu0 0.0
        %2902 = vmatpush1.msra.mxu0 0.0
        %2903 = vmatprep.subr.mxu0 0.0
        %2904 = vmatpush1.msra.mxu0 0.0
        %2905 = vmatprep.subr.mxu0 0.0
        %2906 = vmatpush1.msra.mxu0 0.0
        %2907 = vmatprep.subr.mxu0 0.0
        %2908 = vmatpush1.msra.mxu0 0.0
        %2909 = vmatprep.subr.mxu0 0.0
        %2910 = vmatpush1.msra.mxu0 0.0
        %2911 = vmatprep.subr.mxu0 0.0
        %2912 = vmatpush1.msra.mxu0 0.0
        %2913 = vmatprep.subr.mxu0 0.0
        %2914 = vmatpush1.msra.mxu0 0.0
        %2915 = vmatprep.subr.mxu0 0.0
        %2916 = vmatpush1.msra.mxu0 0.0
        %2917 = vmatprep.subr.mxu0 0.0
        %2918 = vmatpush1.msra.mxu0 0.0
        %2919 = vmatprep.subr.mxu0 0.0
        %2920 = vmatpush1.msra.mxu0 0.0
        %2921 = vmatprep.subr.mxu0 0.0
        %2922 = vmatpush1.msra.mxu0 0.0
        %2923 = vmatprep.subr.mxu0 0.0
        %2924 = vmatpush1.msra.mxu0 0.0
        %2925 = vmatprep.subr.mxu0 0.0
        %2926 = vmatpush1.msra.mxu0 0.0
        %2927 = vmatprep.subr.mxu0 0.0
        %2928 = vmatpush1.msra.mxu0 0.0
        %2929 = vmatprep.subr.mxu0 0.0
        %2930 = vmatpush1.msra.mxu0 0.0
        %2931 = vmatprep.mubr.f32.mxu0 0.0
        %2932 = vmatmul.mubr.f32.gmra.mrb[0].mxu0 %v2865
        %v2933 = vpop.f32.mrb[0].mxu0
        %v2934 = vadd.f32 %v2862, %v2933
        %v2935 = vpop.f32.mrb[0].mxu0
        %2936 = vdwg.mxu0
        %2937 = vmax.xlane.f32.xlu0 %v2934
        %v2938 = vpop.xlane.xlu0 %2937
        %v2939 = vsub.f32 %v2934, %v2938
        %v2940 = vmul.f32 %v2939, 1.442695
        %v2941 = vpow.pop %v2940
        %2942 = vadd.xlane.f32.xlu0 %v2941
        %v2943 = vpop.xlane.xlu0 %2942
        %v2944 = vrcp.pop %v2943
        %v2945 = vmul.f32 %v2941, %v2944
        %2946 = vst [vmem:[%s380] sm:$0xff] %v2945
        %s2947 = sand.u32 %s269, 1
        %s2948 = scalar_lea.sflag [#allocation3], %s2947
        %s2949 = sand.u32 %s269, 1
        %s2950 = smul.addr %s2949, 8
        %s2951 = scalar_lea.vmem [#allocation2], %s2950
        // Predicated region
        $region65: #{tpu_custom_call.1} parent=63 // pred_check
          %p2952 = pneg %p279
        $region66: #{tpu_custom_call.1} parent=63 // pred_check_branch
          %2954 = sbr.rel (%p2952) target = $region68
        $region67: #{tpu_custom_call.1} parent=63 // pred_region
          %s2956 = ssub.s32 128, 128
          %2957 = vsyncadd %s2948, %s2956
          %s2958 = smul.addr %s25, 128
          %s2959 = scalar_lea.hbm %s11, %s2958
          %s2961 = sshll.u32 %s2951, 4
          %s2962 = int_to_ptr.vmem [resolvable:$true] %s2961
          %2964 = dma.vmem_to_hbm [thread:$0]  %s2962, 128, %s2959, %s2948
        $region68: #{tpu_custom_call.1} parent=63 // pred_fallthru
          _
      $region64: #{tpu_custom_call.1} parent=5 // pred_fallthru
        _
      %p2965 = scmp.le.s32.totalorder 2, %s20
      // Predicated region
      $region69: #{tpu_custom_call.1} parent=5 // pred_check
        %p2966 = pneg %p2965
      $region70: #{tpu_custom_call.1} parent=5 // pred_check_branch
        %2968 = sbr.rel (%p2966) target = $region72
      $region71: #{tpu_custom_call.1} parent=5 // pred_region
        %s2969 = ssub.s32 %s20, 2
        // Predicated region
        $region73: #{tpu_custom_call.1} parent=71 // pred_check
          %p2970 = pneg %p285
        $region74: #{tpu_custom_call.1} parent=71 // pred_check_branch
          %2972 = sbr.rel (%p2970) target = $region76
        $region75: #{tpu_custom_call.1} parent=71 // pred_region
          %s2973 = sand.u32 %s270, 1
          %s2974 = scalar_lea.sflag [#allocation3], %s2973
          %s2975 = sand.u32 %s270, 1
          %s2976 = smul.addr %s2975, 8
          %s2977 = scalar_lea.vmem [#allocation2], %s2976
          %2978 = dma.done %s2974, 128
        $region76: #{tpu_custom_call.1} parent=71 // pred_fallthru
          _
      $region72: #{tpu_custom_call.1} parent=5 // pred_fallthru
        _
    $region6: #{tpu_custom_call.1} parent=1 // loop_footer
      %s24 = sadd.s32 1, %s20
    $region7: #{tpu_custom_call.1} parent=1 // loop_footer_branch
      %19 = sbr.rel target = $region3
    $region8: #{tpu_custom_call.1} parent=1 // loop_exit
      _
    %2979 = vsyncpa [#allocation3], 1
    %s2980 = scalar_lea.sflag [#allocation3], 1
    %2981 = vsyncpa %s2980, 1

</llo_original>
